<compile_context>
chip_gen: v6e
topology: v6e:2x2x1
jax: 0.10.0
libtpu: 0.0.40
codegen_flags: <defaults>
</compile_context>

<pallas_src>
import jax
import jax.numpy as jnp
import numpy as np
from jax.experimental import pallas as pl
from jax.experimental.pallas import tpu as pltpu

_EPS = 1e-5
_F32 = jnp.float32
_BF16 = jnp.bfloat16


def _round_up(x, m):
    return (x + m - 1) // m * m


def _l2norm(v):
    # rsqrt lowers to the EUP (its own VLIW slot -> nearly free next to MXU/VPU).
    # The tiny floor keeps all-zero (batch-padding) rows at exactly 0 instead of
    # 0 * inf = NaN.  (PyTorch itself NaNs on a genuinely all-zero input row;
    # padded rows are sliced off before returning, so semantics are preserved.)
    ss = jnp.sum(v * v, axis=-1, keepdims=True)
    return v * jax.lax.rsqrt(jnp.maximum(ss, 1e-30))


def _vmem_capacity_bytes():
    try:
        return int(pltpu.get_tpu_info().vmem_capacity_bytes)
    except Exception:
        return 64 << 20                      # conservative (v7x per-core VMEM)


def _vmem_limit(est, cap):
    hard = int(0.8 * cap)                    # never request near physical VMEM
    return int(min(max(int(1.5 * est) + (8 << 20), 32 << 20), hard))


def _const_spec(shape, single_buffer):
    # Constant-index_map operand (weights / biases / BN stats): fetched once.
    if single_buffer:
        return pl.BlockSpec(shape, lambda *_: (0, 0), pipeline_mode=pl.Buffered(1))
    return pl.BlockSpec(shape, lambda *_: (0, 0))


# --------------------------------------------------------------------------
# Parameter preparation (hoisted out of the per-call path).
# --------------------------------------------------------------------------
def prepare_params(params, embed_dim):
    """Pad weights to lane multiples and cast matmul operands to bf16 once."""
    E = int(embed_dim)
    H = 5 * E
    Ep = _round_up(E, 128)
    Hp = _round_up(H, 128)

    def pad2(a, r, c, dt):
        a = jnp.asarray(a, _F32)
        if a.ndim == 1:
            a = a.reshape(1, -1)
        return jnp.pad(a, ((0, r - a.shape[0]), (0, c - a.shape[1]))).astype(dt)

    # W1 laid out for a single K = 3*Ep matmul against cat([x0p, x1p, x2p]).
    w1 = jnp.asarray(params["w1"], _F32)                 # (3E, 5E), x @ W layout
    w1p = jnp.zeros((3 * Ep, Hp), _F32)
    for k in range(3):
        w1p = w1p.at[k * Ep:k * Ep + E, :H].set(w1[k * E:(k + 1) * E])

    return dict(
        E=E, Ep=Ep, Hp=Hp,
        w1=w1p.astype(_BF16),
        b1=pad2(params["b1"], 1, Hp, _F32),
        w2=pad2(params["w2"], Hp, Hp, _BF16),
        b2=pad2(params["b2"], 1, Hp, _F32),
        w3=pad2(params["w3"], Hp, Ep, _BF16),
        b3=pad2(params["b3"], 1, Ep, _F32),
        gamma=pad2(params["gamma"], 1, Hp, _F32),
        beta=pad2(params["beta"], 1, Hp, _F32),
        a=jnp.asarray(params["a"], _F32).reshape(-1),    # (2,) scalars -> SMEM
    )


# --------------------------------------------------------------------------
# Fused single-kernel path: h2 lives in a bf16 VMEM scratch, no HBM round-trip.
# --------------------------------------------------------------------------
def _make_fused_kernel(B, TB, Ep, Hp, need_mask):
    inv_b = 1.0 / float(B)

    def kernel(xc_ref, w1_ref, b1_ref, w2_ref, b2_ref, gamma_ref, beta_ref,
               w3_ref, b3_ref, a_ref, out_ref, h2_sc, n0_sc, sum_sc, ssq_sc):
        p = pl.program_id(0)                 # 0: stream + stats, 1: finalize
        i = pl.program_id(1)                 # batch tile
        last = pl.num_programs(1) - 1
        row0 = pl.multiple_of(i * TB, TB)

        @pl.when(p == 0)
        def _stream():
            @pl.when(i == 0)
            def _():
                sum_sc[...] = jnp.zeros_like(sum_sc)
                ssq_sc[...] = jnp.zeros_like(ssq_sc)

            xc = xc_ref[...].astype(_F32)
            n0 = _l2norm(xc[:, :Ep])
            n1 = _l2norm(xc[:, Ep:2 * Ep])
            n2 = _l2norm(xc[:, 2 * Ep:])
            n0_sc[pl.ds(row0, TB), :] = n0

            # Single K=3*Ep bf16 MXU pass against W1 (f32 accumulation).
            f = jnp.concatenate([n0, n1, n2], axis=-1).astype(_BF16)
            h = jnp.maximum(
                jnp.dot(f, w1_ref[...], preferred_element_type=_F32) + b1_ref[...],
                0.0)
            h2 = jnp.dot(h.astype(_BF16), w2_ref[...],
                         preferred_element_type=_F32) + b2_ref[...]
            h2_sc[pl.ds(row0, TB), :] = h2.astype(_BF16)

            # BN batch statistics in f32 (mask only needed on the last tile).
            if need_mask:
                @pl.when(i == last)
                def _():
                    rows = i * TB + jax.lax.broadcasted_iota(jnp.int32, h2.shape, 0)
                    h2m = jnp.where(rows < B, h2, 0.0)
                    sum_sc[...] += jnp.sum(h2m, axis=0, keepdims=True)
                    ssq_sc[...] += jnp.sum(h2m * h2m, axis=0, keepdims=True)

                @pl.when(i != last)
                def _():
                    sum_sc[...] += jnp.sum(h2, axis=0, keepdims=True)
                    ssq_sc[...] += jnp.sum(h2 * h2, axis=0, keepdims=True)
            else:
                sum_sc[...] += jnp.sum(h2, axis=0, keepdims=True)
                ssq_sc[...] += jnp.sum(h2 * h2, axis=0, keepdims=True)

        @pl.when(p == 1)
        def _finalize():
            # BatchNorm1d (training-mode stats, biased variance), folded into a
            # per-column scale/shift.
            mean = sum_sc[...] * inv_b
            var = jnp.maximum(ssq_sc[...] * inv_b - mean * mean, 0.0)
            scale = gamma_ref[...] * jax.lax.rsqrt(var + _EPS)
            shift = beta_ref[...] - mean * scale

            h = jnp.maximum(h2_sc[pl.ds(row0, TB), :].astype(_F32) * scale + shift,
                            0.0)
            y = jnp.dot(h.astype(_BF16), w3_ref[...],
                        preferred_element_type=_F32) + b3_ref[...]
            n0 = n0_sc[pl.ds(row0, TB), :]
            out_ref[...] = (a_ref[0] * n0 + a_ref[1] * _l2norm(y)).astype(out_ref.dtype)

    return kernel


# --------------------------------------------------------------------------
# Two-stage fallback (large B*E): bf16 h2 HBM intermediate.
# --------------------------------------------------------------------------
def _make_stage1_kernel(B, TB, Ep, need_mask):
    def kernel(xc_ref, w1_ref, b1_ref, w2_ref, b2_ref, h2_ref, sum_ref, ssq_ref):
        i = pl.program_id(0)
        last = pl.num_programs(0) - 1

        xc = xc_ref[...].astype(_F32)
        n0 = _l2norm(xc[:, :Ep])
        n1 = _l2norm(xc[:, Ep:2 * Ep])
        n2 = _l2norm(xc[:, 2 * Ep:])
        f = jnp.concatenate([n0, n1, n2], axis=-1).astype(_BF16)
        h = jnp.maximum(
            jnp.dot(f, w1_ref[...], preferred_element_type=_F32) + b1_ref[...], 0.0)
        h2 = jnp.dot(h.astype(_BF16), w2_ref[...],
                     preferred_element_type=_F32) + b2_ref[...]
        h2_ref[...] = h2.astype(h2_ref.dtype)            # bf16 HBM intermediate

        @pl.when(i == 0)
        def _():
            sum_ref[...] = jnp.zeros_like(sum_ref)
            ssq_ref[...] = jnp.zeros_like(ssq_ref)

        if need_mask:
            @pl.when(i == last)
            def _():
                rows = i * TB + jax.lax.broadcasted_iota(jnp.int32, h2.shape, 0)
                h2m = jnp.where(rows < B, h2, 0.0)
                sum_ref[...] += jnp.sum(h2m, axis=0, keepdims=True)
                ssq_ref[...] += jnp.sum(h2m * h2m, axis=0, keepdims=True)

            @pl.when(i != last)
            def _():
                sum_ref[...] += jnp.sum(h2, axis=0, keepdims=True)
                ssq_ref[...] += jnp.sum(h2 * h2, axis=0, keepdims=True)
        else:
            sum_ref[...] += jnp.sum(h2, axis=0, keepdims=True)
            ssq_ref[...] += jnp.sum(h2 * h2, axis=0, keepdims=True)

    return kernel


def _make_stage2_kernel(B):
    inv_b = 1.0 / float(B)

    def kernel(x0_ref, h2_ref, sum_ref, ssq_ref, gamma_ref, beta_ref,
               w3_ref, b3_ref, a_ref, out_ref):
        mean = sum_ref[...] * inv_b
        var = jnp.maximum(ssq_ref[...] * inv_b - mean * mean, 0.0)
        scale = gamma_ref[...] * jax.lax.rsqrt(var + _EPS)
        shift = beta_ref[...] - mean * scale

        h = jnp.maximum(h2_ref[...].astype(_F32) * scale + shift, 0.0)
        y = jnp.dot(h.astype(_BF16), w3_ref[...],
                    preferred_element_type=_F32) + b3_ref[...]
        n0 = _l2norm(x0_ref[...].astype(_F32))
        out_ref[...] = (a_ref[0] * n0 + a_ref[1] * _l2norm(y)).astype(out_ref.dtype)

    return kernel


# --------------------------------------------------------------------------
# Wrapper.
# --------------------------------------------------------------------------
def _apply(xc, prep, B, TB, Bp, use_fused, single_buffer, cap):
    E, Ep, Hp = prep["E"], prep["Ep"], prep["Hp"]
    grid_b = Bp // TB
    need_mask = Bp != B
    cspec = lambda shape: _const_spec(shape, single_buffer)
    weight_bytes = (3 * Ep * Hp + Hp * Hp + Hp * Ep) * 2 + (4 * Hp + 2 * Ep) * 4

    if use_fused:
        est = ((1 if single_buffer else 2) * weight_bytes
               + Bp * Hp * 2 + Bp * Ep * 4 + 2 * 8 * Hp * 4
               + 2 * TB * 3 * Ep * 4 + 2 * TB * Ep * 4)
        flops = 2 * B * Hp * (3 * Ep + Hp) + 2 * B * Hp * Ep + 10 * B * Hp
        return pl.pallas_call(
            _make_fused_kernel(B, TB, Ep, Hp, need_mask),
            grid=(2, grid_b),
            in_specs=[
                # pass 0: stream batch tiles; pass 1: pinned to block 0 (unused).
                pl.BlockSpec((TB, 3 * Ep), lambda p, i: (i * (1 - p), 0)),
                cspec((3 * Ep, Hp)), cspec((1, Hp)),
                cspec((Hp, Hp)), cspec((1, Hp)),
                cspec((1, Hp)), cspec((1, Hp)),
                cspec((Hp, Ep)), cspec((1, Ep)),
                pl.BlockSpec(memory_space=pltpu.MemorySpace.SMEM),
            ],
            # pass 0 never writes -> pin to block 0 so no garbage writebacks.
            out_specs=pl.BlockSpec((TB, Ep), lambda p, i: (i * p, 0)),
            out_shape=jax.ShapeDtypeStruct((Bp, Ep), _F32),
            scratch_shapes=[
                pltpu.VMEM((Bp, Hp), _BF16),     # resident h2 (no HBM round-trip)
                pltpu.VMEM((Bp, Ep), _F32),      # resident norm(x0)
                pltpu.VMEM((1, Hp), _F32),       # BN sum
                pltpu.VMEM((1, Hp), _F32),       # BN sum of squares
            ],
            compiler_params=pltpu.CompilerParams(
                dimension_semantics=("arbitrary", "arbitrary"),
                vmem_limit_bytes=_vmem_limit(est, cap)),
            cost_estimate=pl.CostEstimate(
                flops=int(flops),
                transcendentals=int(4 * B + 2 * Hp),
                bytes_accessed=int(Bp * 3 * Ep * 4 + weight_bytes + Bp * Ep * 4)),
        )(xc, prep["w1"], prep["b1"], prep["w2"], prep["b2"],
          prep["gamma"], prep["beta"], prep["w3"], prep["b3"], prep["a"])

    # ---------------- two-stage fallback (bf16 h2 through HBM) ----------------
    tile_xc = pl.BlockSpec((TB, 3 * Ep), lambda i: (i, 0))
    tile_x0 = pl.BlockSpec((TB, Ep), lambda i: (i, 0))      # first Ep lanes of xc
    tile_h = pl.BlockSpec((TB, Hp), lambda i: (i, 0))
    tile_e = pl.BlockSpec((TB, Ep), lambda i: (i, 0))

    w1_bytes = (3 * Ep * Hp + Hp * Hp) * 2 + 2 * Hp * 4
    est1 = ((1 if single_buffer else 2) * w1_bytes
            + 2 * TB * 3 * Ep * 4 + 2 * TB * Hp * 2 + 2 * 8 * Hp * 4)
    h2, h_sum, h_ssq = pl.pallas_call(
        _make_stage1_kernel(B, TB, Ep, need_mask),
        grid=(grid_b,),
        in_specs=[tile_xc, cspec((3 * Ep, Hp)), cspec((1, Hp)),
                  cspec((Hp, Hp)), cspec((1, Hp))],
        out_specs=(tile_h,
                   pl.BlockSpec((1, Hp), lambda i: (0, 0)),
                   pl.BlockSpec((1, Hp), lambda i: (0, 0))),
        out_shape=(jax.ShapeDtypeStruct((Bp, Hp), _BF16),
                   jax.ShapeDtypeStruct((1, Hp), _F32),
                   jax.ShapeDtypeStruct((1, Hp), _F32)),
        compiler_params=pltpu.CompilerParams(
            dimension_semantics=("arbitrary",),      # cross-tile stat accumulation
            vmem_limit_bytes=_vmem_limit(est1, cap)),
        cost_estimate=pl.CostEstimate(
            flops=int(2 * B * Hp * (3 * Ep + Hp)), transcendentals=int(3 * B),
            bytes_accessed=int(Bp * 3 * Ep * 4 + w1_bytes + Bp * Hp * 2)),
    )(xc, prep["w1"], prep["b1"], prep["w2"], prep["b2"])

    w2_bytes = Hp * Ep * 2 + (4 * Hp + Ep) * 4
    est2 = ((1 if single_buffer else 2) * w2_bytes
            + 2 * TB * Ep * 4 + 2 * TB * Hp * 2 + 2 * TB * Ep * 4)
    return pl.pallas_call(
        _make_stage2_kernel(B),
        grid=(grid_b,),
        in_specs=[tile_x0, tile_h,
                  cspec((1, Hp)), cspec((1, Hp)), cspec((1, Hp)), cspec((1, Hp)),
                  cspec((Hp, Ep)), cspec((1, Ep)),
                  pl.BlockSpec(memory_space=pltpu.MemorySpace.SMEM)],
        out_specs=tile_e,
        out_shape=jax.ShapeDtypeStruct((Bp, Ep), _F32),
        compiler_params=pltpu.CompilerParams(
            dimension_semantics=("parallel",),       # megacore-shardable
            vmem_limit_bytes=_vmem_limit(est2, cap)),
        cost_estimate=pl.CostEstimate(
            flops=int(2 * B * Hp * Ep + 8 * B * Hp), transcendentals=int(2 * B + Hp),
            bytes_accessed=int(2 * Bp * Ep * 4 + Bp * Hp * 2 + w2_bytes)),
    )(xc, h2, h_sum, h_ssq, prep["gamma"], prep["beta"],
      prep["w3"], prep["b3"], prep["a"])


def mtirg_transform(x_list, prepared, *, tb=None, force_two_stage=False):
    """x_list: three (B, E) arrays.  prepared: output of prepare_params()."""
    E, Ep, Hp = prepared["E"], prepared["Ep"], prepared["Hp"]
    x0, x1, x2 = (jnp.asarray(v, _F32) for v in x_list)
    B = x0.shape[0]
    assert x0.shape == (B, E) and x1.shape == (B, E) and x2.shape == (B, E)

    cap = _vmem_capacity_bytes()
    if tb is None:
        tb = 512 if cap >= (96 << 20) else 256     # v5e/v6e: 512; v7x (64 MiB): 256
    TB = min(_round_up(tb, 8), _round_up(B, 8))
    Bp = _round_up(B, TB)

    weight_bytes = (3 * Ep * Hp + Hp * Hp + Hp * Ep) * 2 + (4 * Hp + 2 * Ep) * 4
    fused_bytes = (Bp * Hp * 2 + Bp * Ep * 4 + weight_bytes
                   + 2 * TB * 3 * Ep * 4 + 2 * TB * Ep * 4)
    use_fused = (not force_two_stage) and fused_bytes <= int(0.55 * cap)

    if not use_fused:
        # Shrink the batch tile until the two-stage working set fits the budget.
        def est2s(tb_):
            return (2 * weight_bytes + 2 * tb_ * 3 * Ep * 4
                    + 4 * tb_ * Hp * 2 + 4 * tb_ * Ep * 4)
        while TB > 64 and est2s(TB) > int(0.7 * cap):
            TB = max(64, TB // 2)
        TB = min(TB, _round_up(B, 8))
        Bp = _round_up(B, TB)

    # Pad + concatenate the three inputs into one lane-aligned (Bp, 3*Ep) stream
    # (single activation DMA stream, single K=3*Ep MXU pass against W1).
    xc = jnp.zeros((Bp, 3 * Ep), _F32)
    xc = (xc.at[:B, 0:E].set(x0)
             .at[:B, Ep:Ep + E].set(x1)
             .at[:B, 2 * Ep:2 * Ep + E].set(x2))

    try:
        out = _apply(xc, prepared, B, TB, Bp, use_fused, True, cap)
    except Exception:
        # pl.Buffered(1) (single-buffered resident weights) not supported by
        # this jax build -> retry with default double-buffered weight specs.
        out = _apply(xc, prepared, B, TB, Bp, use_fused, False, cap)
    return out[:B, :E]


# --------------------------------------------------------------------------
# Parameter init + pure-JAX reference (mirrors the PyTorch forward).
# --------------------------------------------------------------------------
def init_params(key, embed_dim):
    E = embed_dim
    ks = jax.random.split(key, 6)
    # Weights stored as (in_features, out_features) so the math is x @ W.
    return {
        "w1": jax.random.normal(ks[0], (3 * E, 5 * E), _F32) * (1.0 / np.sqrt(3 * E)),
        "b1": jax.random.normal(ks[1], (1, 5 * E), _F32) * 0.01,
        "w2": jax.random.normal(ks[2], (5 * E, 5 * E), _F32) * (1.0 / np.sqrt(5 * E)),
        "b2": jax.random.normal(ks[3], (1, 5 * E), _F32) * 0.01,
        "w3": jax.random.normal(ks[4], (5 * E, E), _F32) * (1.0 / np.sqrt(5 * E)),
        "b3": jax.random.normal(ks[5], (1, E), _F32) * 0.01,
        "gamma": jnp.ones((1, 5 * E), _F32),      # BatchNorm1d weight init
        "beta": jnp.zeros((1, 5 * E), _F32),      # BatchNorm1d bias init
        "a": jnp.array([1.0, 0.1], _F32),         # self.a = [1.0, 0.1]
    }


def reference(x_list, p):
    def l2n(v):
        return v / jnp.sqrt(jnp.sum(v * v, axis=-1, keepdims=True))
    n = [l2n(xi) for xi in x_list]
    f = jnp.concatenate(n, axis=1)
    h = jnp.maximum(f @ p["w1"] + p["b1"], 0.0)
    h = h @ p["w2"] + p["b2"]
    mean = jnp.mean(h, axis=0, keepdims=True)
    var = jnp.mean((h - mean) ** 2, axis=0, keepdims=True)
    h = p["gamma"] * (h - mean) / jnp.sqrt(var + _EPS) + p["beta"]
    h = jnp.maximum(h, 0.0)
    y = h @ p["w3"] + p["b3"]
    return p["a"][0] * n[0] + p["a"][1] * l2n(y)


if __name__ == "__main__":
    key = jax.random.PRNGKey(0)
    kx0, kx1, kx2, kp = jax.random.split(key, 4)

    B, E = 16, 32
    x = [jax.random.normal(kx0, (B, E), _F32),
         jax.random.normal(kx1, (B, E), _F32),
         jax.random.normal(kx2, (B, E), _F32)]
    params = init_params(kp, E)
    prepared = prepare_params(params, E)     # one-time pad/cast (hoisted)

    # bf16 MXU matmuls (f32 accumulation) + bf16 h2 -> relaxed tolerance vs f32.
    out = jax.block_until_ready(mtirg_transform(x, prepared))
    ref = reference(x, params)
    np.testing.assert_allclose(np.asarray(out), np.asarray(ref), rtol=2e-2, atol=2e-2)

    # Ragged batch: exercises batch padding, last-tile masked BN stats and the
    # NaN-safe L2 norm on zero padded rows.
    B2 = 13
    x_small = [xi[:B2] for xi in x]
    out2 = jax.block_until_ready(mtirg_transform(x_small, prepared))
    ref2 = reference(x_small, params)
    np.testing.assert_allclose(np.asarray(out2), np.asarray(ref2), rtol=2e-2, atol=2e-2)

    # Forced two-stage path (bf16 h2 HBM round-trip) for coverage of the
    # large-B*E fallback.
    out3 = jax.block_until_ready(mtirg_transform(x, prepared, force_two_stage=True))
    np.testing.assert_allclose(np.asarray(out3), np.asarray(ref), rtol=2e-2, atol=2e-2)

    print("KERNEL_OK")
</pallas_src>

<mosaic_0001>
module attributes {stable_mosaic.version = 11 : i64} {
  func.func @kernel(%arg0: i32, %arg1: i32, %arg2: memref<16x384xf32, #tpu.memory_space<vmem>>, %arg3: memref<384x256xbf16, #tpu.memory_space<vmem>>, %arg4: memref<1x256xf32, #tpu.memory_space<vmem>>, %arg5: memref<256x256xbf16, #tpu.memory_space<vmem>>, %arg6: memref<1x256xf32, #tpu.memory_space<vmem>>, %arg7: memref<1x256xf32, #tpu.memory_space<vmem>>, %arg8: memref<1x256xf32, #tpu.memory_space<vmem>>, %arg9: memref<256x128xbf16, #tpu.memory_space<vmem>>, %arg10: memref<1x128xf32, #tpu.memory_space<vmem>>, %arg11: memref<2xf32, #tpu.memory_space<smem>>, %arg12: memref<16x128xf32, #tpu.memory_space<vmem>>, %arg13: memref<16x256xbf16, #tpu.memory_space<vmem>>, %arg14: memref<16x128xf32, #tpu.memory_space<vmem>>, %arg15: memref<1x256xf32, #tpu.memory_space<vmem>>, %arg16: memref<1x256xf32, #tpu.memory_space<vmem>>) attributes {dimension_semantics = [#tpu.dimension_semantics<arbitrary>, #tpu.dimension_semantics<arbitrary>], iteration_bounds = array<i64: 2, 1>, scalar_prefetch = 0 : i64, scratch_operands = 4 : i64, tpu.core_type = #tpu.core_type<tc>, window_params = [{transform_indices = @transform_0, window_bounds = array<i64: 16, 384>}, {pipeline_mode = #tpu.pipeline_mode<synchronous>, transform_indices = @transform_1, window_bounds = array<i64: 384, 256>}, {pipeline_mode = #tpu.pipeline_mode<synchronous>, transform_indices = @transform_2, window_bounds = array<i64: 1, 256>}, {pipeline_mode = #tpu.pipeline_mode<synchronous>, transform_indices = @transform_3, window_bounds = array<i64: 256, 256>}, {pipeline_mode = #tpu.pipeline_mode<synchronous>, transform_indices = @transform_4, window_bounds = array<i64: 1, 256>}, {pipeline_mode = #tpu.pipeline_mode<synchronous>, transform_indices = @transform_5, window_bounds = array<i64: 1, 256>}, {pipeline_mode = #tpu.pipeline_mode<synchronous>, transform_indices = @transform_6, window_bounds = array<i64: 1, 256>}, {pipeline_mode = #tpu.pipeline_mode<synchronous>, transform_indices = @transform_7, window_bounds = array<i64: 256, 128>}, {pipeline_mode = #tpu.pipeline_mode<synchronous>, transform_indices = @transform_8, window_bounds = array<i64: 1, 128>}, {transform_indices = @transform_9, window_bounds = array<i64: 2>}, {transform_indices = @transform_10, window_bounds = array<i64: 16, 128>}]} {
    %c16_i32 = arith.constant 16 : i32
    %0 = arith.muli %arg1, %c16_i32 : i32
    %1 = tpu.assume_multiple %0, 16 : i32
    %c0_i32 = arith.constant 0 : i32
    %2 = arith.cmpi eq, %arg0, %c0_i32 : i32
    %3 = arith.extui %2 : i1 to i32
    %c0_i32_0 = arith.constant 0 : i32
    %4 = arith.cmpi ne, %3, %c0_i32_0 : i32
    scf.if %4 {
      %c0_i32_2 = arith.constant 0 : i32
      %8 = arith.cmpi eq, %arg1, %c0_i32_2 : i32
      %9 = arith.extui %8 : i1 to i32
      %c0_i32_3 = arith.constant 0 : i32
      %10 = arith.cmpi ne, %9, %c0_i32_3 : i32
      scf.if %10 {
        %cst_33 = arith.constant 0.000000e+00 : f32
        %70 = vector.broadcast %cst_33 : f32 to vector<1x256xf32>
        %c0_34 = arith.constant 0 : index
        %c0_35 = arith.constant 0 : index
        %71 = vector.load %arg15[%c0_34, %c0_35] : memref<1x256xf32, #tpu.memory_space<vmem>>, vector<1x256xf32>
        tpu.vector_store %arg15[%c0_34, %c0_35], %70 {strides = array<i32>} : memref<1x256xf32, #tpu.memory_space<vmem>>, vector<1x256xf32>,
        %cst_36 = arith.constant 0.000000e+00 : f32
        %72 = vector.broadcast %cst_36 : f32 to vector<1x256xf32>
        %c0_37 = arith.constant 0 : index
        %c0_38 = arith.constant 0 : index
        %73 = vector.load %arg16[%c0_37, %c0_38] : memref<1x256xf32, #tpu.memory_space<vmem>>, vector<1x256xf32>
        tpu.vector_store %arg16[%c0_37, %c0_38], %72 {strides = array<i32>} : memref<1x256xf32, #tpu.memory_space<vmem>>, vector<1x256xf32>,
      } else {
      }
      %c0 = arith.constant 0 : index
      %c0_4 = arith.constant 0 : index
      %11 = vector.load %arg2[%c0, %c0_4] : memref<16x384xf32, #tpu.memory_space<vmem>>, vector<16x384xf32>
      %12 = vector.extract_strided_slice %11 {offsets = [0, 0], sizes = [16, 128], strides = [1, 1]} : vector<16x384xf32> to vector<16x128xf32>
      %13 = arith.mulf %12, %12 : vector<16x128xf32>
      %cst = arith.constant dense<0.000000e+00> : vector<16xf32>
      %14 = vector.multi_reduction <add>, %13, %cst [1] : vector<16x128xf32> to vector<16xf32>
      %15 = vector.shape_cast %14 : vector<16xf32> to vector<16x1xf32>
      %cst_5 = arith.constant 1.000000e-30 : f32
      %16 = vector.broadcast %cst_5 : f32 to vector<16x1xf32>
      %17 = arith.maximumf %15, %16 : vector<16x1xf32>
      %18 = math.rsqrt %17 : vector<16x1xf32>
      %19 = vector.broadcast %18 : vector<16x1xf32> to vector<16x128xf32>
      %20 = arith.mulf %12, %19 : vector<16x128xf32>
      %21 = vector.extract_strided_slice %11 {offsets = [0, 128], sizes = [16, 128], strides = [1, 1]} : vector<16x384xf32> to vector<16x128xf32>
      %22 = arith.mulf %21, %21 : vector<16x128xf32>
      %cst_6 = arith.constant dense<0.000000e+00> : vector<16xf32>
      %23 = vector.multi_reduction <add>, %22, %cst_6 [1] : vector<16x128xf32> to vector<16xf32>
      %24 = vector.shape_cast %23 : vector<16xf32> to vector<16x1xf32>
      %cst_7 = arith.constant 1.000000e-30 : f32
      %25 = vector.broadcast %cst_7 : f32 to vector<16x1xf32>
      %26 = arith.maximumf %24, %25 : vector<16x1xf32>
      %27 = math.rsqrt %26 : vector<16x1xf32>
      %28 = vector.broadcast %27 : vector<16x1xf32> to vector<16x128xf32>
      %29 = arith.mulf %21, %28 : vector<16x128xf32>
      %30 = vector.extract_strided_slice %11 {offsets = [0, 256], sizes = [16, 128], strides = [1, 1]} : vector<16x384xf32> to vector<16x128xf32>
      %31 = arith.mulf %30, %30 : vector<16x128xf32>
      %cst_8 = arith.constant dense<0.000000e+00> : vector<16xf32>
      %32 = vector.multi_reduction <add>, %31, %cst_8 [1] : vector<16x128xf32> to vector<16xf32>
      %33 = vector.shape_cast %32 : vector<16xf32> to vector<16x1xf32>
      %cst_9 = arith.constant 1.000000e-30 : f32
      %34 = vector.broadcast %cst_9 : f32 to vector<16x1xf32>
      %35 = arith.maximumf %33, %34 : vector<16x1xf32>
      %36 = math.rsqrt %35 : vector<16x1xf32>
      %37 = vector.broadcast %36 : vector<16x1xf32> to vector<16x128xf32>
      %38 = arith.mulf %30, %37 : vector<16x128xf32>
      %39 = arith.index_cast %1 : i32 to index
      %c0_10 = arith.constant 0 : index
      %40 = vector.load %arg14[%39, %c0_10] : memref<16x128xf32, #tpu.memory_space<vmem>>, vector<16x128xf32>
      tpu.vector_store %arg14[%39, %c0_10], %20 {strides = array<i32>} : memref<16x128xf32, #tpu.memory_space<vmem>>, vector<16x128xf32>,
      %41 = tpu.concatenate %20, %29, %38 in 1 : vector<16x128xf32>, vector<16x128xf32>, vector<16x128xf32> -> vector<16x384xf32>
      %42 = arith.truncf %41 : vector<16x384xf32> to vector<16x384xbf16>
      %c0_11 = arith.constant 0 : index
      %c0_12 = arith.constant 0 : index
      %43 = vector.load %arg3[%c0_11, %c0_12] : memref<384x256xbf16, #tpu.memory_space<vmem>>, vector<384x256xbf16>
      %cst_13 = arith.constant dense<0.000000e+00> : vector<16x256xf32>
      %44 = tpu.matmul %42, %43, %cst_13 {dimension_numbers = #tpu.dot_dimension_numbers<[1], [0], [0], [1], [0, 0, 1, 1], [], []>} : vector<16x384xbf16>, vector<384x256xbf16>, vector<16x256xf32> -> vector<16x256xf32>
      %c0_14 = arith.constant 0 : index
      %c0_15 = arith.constant 0 : index
      %45 = vector.load %arg4[%c0_14, %c0_15] : memref<1x256xf32, #tpu.memory_space<vmem>>, vector<1x256xf32>
      %46 = vector.broadcast %45 : vector<1x256xf32> to vector<16x256xf32>
      %47 = arith.addf %44, %46 : vector<16x256xf32>
      %cst_16 = arith.constant 0.000000e+00 : f32
      %48 = vector.broadcast %cst_16 : f32 to vector<16x256xf32>
      %49 = arith.maximumf %47, %48 : vector<16x256xf32>
      %50 = arith.truncf %49 : vector<16x256xf32> to vector<16x256xbf16>
      %c0_17 = arith.constant 0 : index
      %c0_18 = arith.constant 0 : index
      %51 = vector.load %arg5[%c0_17, %c0_18] : memref<256x256xbf16, #tpu.memory_space<vmem>>, vector<256x256xbf16>
      %cst_19 = arith.constant dense<0.000000e+00> : vector<16x256xf32>
      %52 = tpu.matmul %50, %51, %cst_19 {dimension_numbers = #tpu.dot_dimension_numbers<[1], [0], [0], [1], [0, 0, 1, 1], [], []>} : vector<16x256xbf16>, vector<256x256xbf16>, vector<16x256xf32> -> vector<16x256xf32>
      %c0_20 = arith.constant 0 : index
      %c0_21 = arith.constant 0 : index
      %53 = vector.load %arg6[%c0_20, %c0_21] : memref<1x256xf32, #tpu.memory_space<vmem>>, vector<1x256xf32>
      %54 = vector.broadcast %53 : vector<1x256xf32> to vector<16x256xf32>
      %55 = arith.addf %52, %54 : vector<16x256xf32>
      %56 = arith.truncf %55 : vector<16x256xf32> to vector<16x256xbf16>
      %57 = arith.index_cast %1 : i32 to index
      %c0_22 = arith.constant 0 : index
      %58 = vector.load %arg13[%57, %c0_22] : memref<16x256xbf16, #tpu.memory_space<vmem>>, vector<16x256xbf16>
      tpu.vector_store %arg13[%57, %c0_22], %56 {strides = array<i32>} : memref<16x256xbf16, #tpu.memory_space<vmem>>, vector<16x256xbf16>,
      %c0_23 = arith.constant 0 : index
      %c0_24 = arith.constant 0 : index
      %59 = vector.load %arg15[%c0_23, %c0_24] : memref<1x256xf32, #tpu.memory_space<vmem>>, vector<1x256xf32>
      %cst_25 = arith.constant dense<0.000000e+00> : vector<256xf32>
      %60 = vector.multi_reduction <add>, %55, %cst_25 [0] : vector<16x256xf32> to vector<256xf32>
      %61 = vector.shape_cast %60 : vector<256xf32> to vector<1x256xf32>
      %62 = arith.addf %59, %61 : vector<1x256xf32>
      %c0_26 = arith.constant 0 : index
      %c0_27 = arith.constant 0 : index
      %63 = vector.load %arg15[%c0_26, %c0_27] : memref<1x256xf32, #tpu.memory_space<vmem>>, vector<1x256xf32>
      tpu.vector_store %arg15[%c0_26, %c0_27], %62 {strides = array<i32>} : memref<1x256xf32, #tpu.memory_space<vmem>>, vector<1x256xf32>,
      %c0_28 = arith.constant 0 : index
      %c0_29 = arith.constant 0 : index
      %64 = vector.load %arg16[%c0_28, %c0_29] : memref<1x256xf32, #tpu.memory_space<vmem>>, vector<1x256xf32>
      %65 = arith.mulf %55, %55 : vector<16x256xf32>
      %cst_30 = arith.constant dense<0.000000e+00> : vector<256xf32>
      %66 = vector.multi_reduction <add>, %65, %cst_30 [0] : vector<16x256xf32> to vector<256xf32>
      %67 = vector.shape_cast %66 : vector<256xf32> to vector<1x256xf32>
      %68 = arith.addf %64, %67 : vector<1x256xf32>
      %c0_31 = arith.constant 0 : index
      %c0_32 = arith.constant 0 : index
      %69 = vector.load %arg16[%c0_31, %c0_32] : memref<1x256xf32, #tpu.memory_space<vmem>>, vector<1x256xf32>
      tpu.vector_store %arg16[%c0_31, %c0_32], %68 {strides = array<i32>} : memref<1x256xf32, #tpu.memory_space<vmem>>, vector<1x256xf32>,
    } else {
    }
    %c1_i32 = arith.constant 1 : i32
    %5 = arith.cmpi eq, %arg0, %c1_i32 : i32
    %6 = arith.extui %5 : i1 to i32
    %c0_i32_1 = arith.constant 0 : i32
    %7 = arith.cmpi ne, %6, %c0_i32_1 : i32
    scf.if %7 {
      %c0 = arith.constant 0 : index
      %c0_2 = arith.constant 0 : index
      %8 = vector.load %arg15[%c0, %c0_2] : memref<1x256xf32, #tpu.memory_space<vmem>>, vector<1x256xf32>
      %cst = arith.constant 6.250000e-02 : f32
      %9 = vector.broadcast %cst : f32 to vector<1x256xf32>
      %10 = arith.mulf %8, %9 : vector<1x256xf32>
      %c0_3 = arith.constant 0 : index
      %c0_4 = arith.constant 0 : index
      %11 = vector.load %arg16[%c0_3, %c0_4] : memref<1x256xf32, #tpu.memory_space<vmem>>, vector<1x256xf32>
      %cst_5 = arith.constant 6.250000e-02 : f32
      %12 = vector.broadcast %cst_5 : f32 to vector<1x256xf32>
      %13 = arith.mulf %11, %12 : vector<1x256xf32>
      %14 = arith.mulf %10, %10 : vector<1x256xf32>
      %15 = arith.subf %13, %14 : vector<1x256xf32>
      %cst_6 = arith.constant 0.000000e+00 : f32
      %16 = vector.broadcast %cst_6 : f32 to vector<1x256xf32>
      %17 = arith.maximumf %15, %16 : vector<1x256xf32>
      %c0_7 = arith.constant 0 : index
      %c0_8 = arith.constant 0 : index
      %18 = vector.load %arg7[%c0_7, %c0_8] : memref<1x256xf32, #tpu.memory_space<vmem>>, vector<1x256xf32>
      %cst_9 = arith.constant 9.99999974E-6 : f32
      %19 = vector.broadcast %cst_9 : f32 to vector<1x256xf32>
      %20 = arith.addf %17, %19 : vector<1x256xf32>
      %21 = math.rsqrt %20 : vector<1x256xf32>
      %22 = arith.mulf %18, %21 : vector<1x256xf32>
      %c0_10 = arith.constant 0 : index
      %c0_11 = arith.constant 0 : index
      %23 = vector.load %arg8[%c0_10, %c0_11] : memref<1x256xf32, #tpu.memory_space<vmem>>, vector<1x256xf32>
      %24 = arith.mulf %10, %22 : vector<1x256xf32>
      %25 = arith.subf %23, %24 : vector<1x256xf32>
      %26 = arith.index_cast %1 : i32 to index
      %c0_12 = arith.constant 0 : index
      %27 = vector.load %arg13[%26, %c0_12] : memref<16x256xbf16, #tpu.memory_space<vmem>>, vector<16x256xbf16>
      %28 = arith.extf %27 : vector<16x256xbf16> to vector<16x256xf32>
      %29 = vector.broadcast %22 : vector<1x256xf32> to vector<16x256xf32>
      %30 = arith.mulf %28, %29 : vector<16x256xf32>
      %31 = vector.broadcast %25 : vector<1x256xf32> to vector<16x256xf32>
      %32 = arith.addf %30, %31 : vector<16x256xf32>
      %cst_13 = arith.constant 0.000000e+00 : f32
      %33 = vector.broadcast %cst_13 : f32 to vector<16x256xf32>
      %34 = arith.maximumf %32, %33 : vector<16x256xf32>
      %35 = arith.truncf %34 : vector<16x256xf32> to vector<16x256xbf16>
      %c0_14 = arith.constant 0 : index
      %c0_15 = arith.constant 0 : index
      %36 = vector.load %arg9[%c0_14, %c0_15] : memref<256x128xbf16, #tpu.memory_space<vmem>>, vector<256x128xbf16>
      %cst_16 = arith.constant dense<0.000000e+00> : vector<16x128xf32>
      %37 = tpu.matmul %35, %36, %cst_16 {dimension_numbers = #tpu.dot_dimension_numbers<[1], [0], [0], [1], [0, 0, 1, 1], [], []>} : vector<16x256xbf16>, vector<256x128xbf16>, vector<16x128xf32> -> vector<16x128xf32>
      %c0_17 = arith.constant 0 : index
      %c0_18 = arith.constant 0 : index
      %38 = vector.load %arg10[%c0_17, %c0_18] : memref<1x128xf32, #tpu.memory_space<vmem>>, vector<1x128xf32>
      %39 = vector.broadcast %38 : vector<1x128xf32> to vector<16x128xf32>
      %40 = arith.addf %37, %39 : vector<16x128xf32>
      %41 = arith.index_cast %1 : i32 to index
      %c0_19 = arith.constant 0 : index
      %42 = vector.load %arg14[%41, %c0_19] : memref<16x128xf32, #tpu.memory_space<vmem>>, vector<16x128xf32>
      %c0_20 = arith.constant 0 : index
      %43 = memref.load %arg11[%c0_20] : memref<2xf32, #tpu.memory_space<smem>>
      %44 = vector.broadcast %43 : f32 to vector<16x128xf32>
      %45 = arith.mulf %44, %42 : vector<16x128xf32>
      %c1 = arith.constant 1 : index
      %46 = memref.load %arg11[%c1] : memref<2xf32, #tpu.memory_space<smem>>
      %47 = arith.mulf %40, %40 : vector<16x128xf32>
      %cst_21 = arith.constant dense<0.000000e+00> : vector<16xf32>
      %48 = vector.multi_reduction <add>, %47, %cst_21 [1] : vector<16x128xf32> to vector<16xf32>
      %49 = vector.shape_cast %48 : vector<16xf32> to vector<16x1xf32>
      %cst_22 = arith.constant 1.000000e-30 : f32
      %50 = vector.broadcast %cst_22 : f32 to vector<16x1xf32>
      %51 = arith.maximumf %49, %50 : vector<16x1xf32>
      %52 = math.rsqrt %51 : vector<16x1xf32>
      %53 = vector.broadcast %52 : vector<16x1xf32> to vector<16x128xf32>
      %54 = arith.mulf %40, %53 : vector<16x128xf32>
      %55 = vector.broadcast %46 : f32 to vector<16x128xf32>
      %56 = arith.mulf %55, %54 : vector<16x128xf32>
      %57 = arith.addf %45, %56 : vector<16x128xf32>
      %c0_23 = arith.constant 0 : index
      %c0_24 = arith.constant 0 : index
      %58 = vector.load %arg12[%c0_23, %c0_24] : memref<16x128xf32, #tpu.memory_space<vmem>>, vector<16x128xf32>
      tpu.vector_store %arg12[%c0_23, %c0_24], %57 {strides = array<i32>} : memref<16x128xf32, #tpu.memory_space<vmem>>, vector<16x128xf32>,
    } else {
    }
    return
  }
  func.func @transform_0(%arg0: i32, %arg1: i32) -> (i32, i32) {
    %c1_i32 = arith.constant 1 : i32
    %0 = arith.subi %c1_i32, %arg0 : i32
    %1 = arith.muli %arg1, %0 : i32
    %c0_i32 = arith.constant 0 : i32
    %c0_i32_0 = arith.constant 0 : i32
    return %1, %c0_i32 : i32, i32
  }
  func.func @transform_1(%arg0: i32, %arg1: i32) -> (i32, i32) {
    %c0_i32 = arith.constant 0 : i32
    %c0_i32_0 = arith.constant 0 : i32
    %c0_i32_1 = arith.constant 0 : i32
    return %c0_i32, %c0_i32_0 : i32, i32
  }
  func.func @transform_2(%arg0: i32, %arg1: i32) -> (i32, i32) {
    %c0_i32 = arith.constant 0 : i32
    %c0_i32_0 = arith.constant 0 : i32
    %c0_i32_1 = arith.constant 0 : i32
    return %c0_i32, %c0_i32_0 : i32, i32
  }
  func.func @transform_3(%arg0: i32, %arg1: i32) -> (i32, i32) {
    %c0_i32 = arith.constant 0 : i32
    %c0_i32_0 = arith.constant 0 : i32
    %c0_i32_1 = arith.constant 0 : i32
    return %c0_i32, %c0_i32_0 : i32, i32
  }
  func.func @transform_4(%arg0: i32, %arg1: i32) -> (i32, i32) {
    %c0_i32 = arith.constant 0 : i32
    %c0_i32_0 = arith.constant 0 : i32
    %c0_i32_1 = arith.constant 0 : i32
    return %c0_i32, %c0_i32_0 : i32, i32
  }
  func.func @transform_5(%arg0: i32, %arg1: i32) -> (i32, i32) {
    %c0_i32 = arith.constant 0 : i32
    %c0_i32_0 = arith.constant 0 : i32
    %c0_i32_1 = arith.constant 0 : i32
    return %c0_i32, %c0_i32_0 : i32, i32
  }
  func.func @transform_6(%arg0: i32, %arg1: i32) -> (i32, i32) {
    %c0_i32 = arith.constant 0 : i32
    %c0_i32_0 = arith.constant 0 : i32
    %c0_i32_1 = arith.constant 0 : i32
    return %c0_i32, %c0_i32_0 : i32, i32
  }
  func.func @transform_7(%arg0: i32, %arg1: i32) -> (i32, i32) {
    %c0_i32 = arith.constant 0 : i32
    %c0_i32_0 = arith.constant 0 : i32
    %c0_i32_1 = arith.constant 0 : i32
    return %c0_i32, %c0_i32_0 : i32, i32
  }
  func.func @transform_8(%arg0: i32, %arg1: i32) -> (i32, i32) {
    %c0_i32 = arith.constant 0 : i32
    %c0_i32_0 = arith.constant 0 : i32
    %c0_i32_1 = arith.constant 0 : i32
    return %c0_i32, %c0_i32_0 : i32, i32
  }
  func.func @transform_9(%arg0: i32, %arg1: i32) -> i32 {
    %c0_i32 = arith.constant 0 : i32
    %c0_i32_0 = arith.constant 0 : i32
    return %c0_i32 : i32
  }
  func.func @transform_10(%arg0: i32, %arg1: i32) -> (i32, i32) {
    %0 = arith.muli %arg1, %arg0 : i32
    %c0_i32 = arith.constant 0 : i32
    %c0_i32_0 = arith.constant 0 : i32
    return %0, %c0_i32 : i32, i32
  }
}

module attributes {stable_mosaic.version = 11 : i64} {
  func.func @kernel(%arg0: i32, %arg1: i32, %arg2: memref<16x384xf32, #tpu.memory_space<vmem>>, %arg3: memref<384x256xbf16, #tpu.memory_space<vmem>>, %arg4: memref<1x256xf32, #tpu.memory_space<vmem>>, %arg5: memref<256x256xbf16, #tpu.memory_space<vmem>>, %arg6: memref<1x256xf32, #tpu.memory_space<vmem>>, %arg7: memref<1x256xf32, #tpu.memory_space<vmem>>, %arg8: memref<1x256xf32, #tpu.memory_space<vmem>>, %arg9: memref<256x128xbf16, #tpu.memory_space<vmem>>, %arg10: memref<1x128xf32, #tpu.memory_space<vmem>>, %arg11: memref<2xf32, #tpu.memory_space<smem>>, %arg12: memref<16x128xf32, #tpu.memory_space<vmem>>, %arg13: memref<16x256xbf16, #tpu.memory_space<vmem>>, %arg14: memref<16x128xf32, #tpu.memory_space<vmem>>, %arg15: memref<1x256xf32, #tpu.memory_space<vmem>>, %arg16: memref<1x256xf32, #tpu.memory_space<vmem>>) attributes {dimension_semantics = [#tpu.dimension_semantics<arbitrary>, #tpu.dimension_semantics<arbitrary>], iteration_bounds = array<i64: 2, 1>, scalar_prefetch = 0 : i64, scratch_operands = 4 : i64, tpu.core_type = #tpu.core_type<tc>, window_params = [{transform_indices = @transform_0, window_bounds = array<i64: 16, 384>}, {pipeline_mode = #tpu.pipeline_mode<synchronous>, transform_indices = @transform_1, window_bounds = array<i64: 384, 256>}, {pipeline_mode = #tpu.pipeline_mode<synchronous>, transform_indices = @transform_2, window_bounds = array<i64: 1, 256>}, {pipeline_mode = #tpu.pipeline_mode<synchronous>, transform_indices = @transform_3, window_bounds = array<i64: 256, 256>}, {pipeline_mode = #tpu.pipeline_mode<synchronous>, transform_indices = @transform_4, window_bounds = array<i64: 1, 256>}, {pipeline_mode = #tpu.pipeline_mode<synchronous>, transform_indices = @transform_5, window_bounds = array<i64: 1, 256>}, {pipeline_mode = #tpu.pipeline_mode<synchronous>, transform_indices = @transform_6, window_bounds = array<i64: 1, 256>}, {pipeline_mode = #tpu.pipeline_mode<synchronous>, transform_indices = @transform_7, window_bounds = array<i64: 256, 128>}, {pipeline_mode = #tpu.pipeline_mode<synchronous>, transform_indices = @transform_8, window_bounds = array<i64: 1, 128>}, {transform_indices = @transform_9, window_bounds = array<i64: 2>}, {transform_indices = @transform_10, window_bounds = array<i64: 16, 128>}]} {
    %c16_i32 = arith.constant 16 : i32
    %0 = arith.muli %arg1, %c16_i32 : i32
    %1 = tpu.assume_multiple %0, 16 : i32
    %c0_i32 = arith.constant 0 : i32
    %2 = arith.cmpi eq, %arg0, %c0_i32 : i32
    %3 = arith.extui %2 : i1 to i32
    %c0_i32_0 = arith.constant 0 : i32
    %4 = arith.cmpi ne, %3, %c0_i32_0 : i32
    scf.if %4 {
      %c0_i32_2 = arith.constant 0 : i32
      %8 = arith.cmpi eq, %arg1, %c0_i32_2 : i32
      %9 = arith.extui %8 : i1 to i32
      %c0_i32_3 = arith.constant 0 : i32
      %10 = arith.cmpi ne, %9, %c0_i32_3 : i32
      scf.if %10 {
        %cst_33 = arith.constant 0.000000e+00 : f32
        %70 = vector.broadcast %cst_33 : f32 to vector<1x256xf32>
        %c0_34 = arith.constant 0 : index
        %c0_35 = arith.constant 0 : index
        %71 = vector.load %arg15[%c0_34, %c0_35] : memref<1x256xf32, #tpu.memory_space<vmem>>, vector<1x256xf32>
        tpu.vector_store %arg15[%c0_34, %c0_35], %70 {strides = array<i32>} : memref<1x256xf32, #tpu.memory_space<vmem>>, vector<1x256xf32>,
        %cst_36 = arith.constant 0.000000e+00 : f32
        %72 = vector.broadcast %cst_36 : f32 to vector<1x256xf32>
        %c0_37 = arith.constant 0 : index
        %c0_38 = arith.constant 0 : index
        %73 = vector.load %arg16[%c0_37, %c0_38] : memref<1x256xf32, #tpu.memory_space<vmem>>, vector<1x256xf32>
        tpu.vector_store %arg16[%c0_37, %c0_38], %72 {strides = array<i32>} : memref<1x256xf32, #tpu.memory_space<vmem>>, vector<1x256xf32>,
      } else {
      }
      %c0 = arith.constant 0 : index
      %c0_4 = arith.constant 0 : index
      %11 = vector.load %arg2[%c0, %c0_4] : memref<16x384xf32, #tpu.memory_space<vmem>>, vector<16x384xf32>
      %12 = vector.extract_strided_slice %11 {offsets = [0, 0], sizes = [16, 128], strides = [1, 1]} : vector<16x384xf32> to vector<16x128xf32>
      %13 = arith.mulf %12, %12 : vector<16x128xf32>
      %cst = arith.constant dense<0.000000e+00> : vector<16xf32>
      %14 = vector.multi_reduction <add>, %13, %cst [1] : vector<16x128xf32> to vector<16xf32>
      %15 = vector.shape_cast %14 : vector<16xf32> to vector<16x1xf32>
      %cst_5 = arith.constant 1.000000e-30 : f32
      %16 = vector.broadcast %cst_5 : f32 to vector<16x1xf32>
      %17 = arith.maximumf %15, %16 : vector<16x1xf32>
      %18 = math.rsqrt %17 : vector<16x1xf32>
      %19 = vector.broadcast %18 : vector<16x1xf32> to vector<16x128xf32>
      %20 = arith.mulf %12, %19 : vector<16x128xf32>
      %21 = vector.extract_strided_slice %11 {offsets = [0, 128], sizes = [16, 128], strides = [1, 1]} : vector<16x384xf32> to vector<16x128xf32>
      %22 = arith.mulf %21, %21 : vector<16x128xf32>
      %cst_6 = arith.constant dense<0.000000e+00> : vector<16xf32>
      %23 = vector.multi_reduction <add>, %22, %cst_6 [1] : vector<16x128xf32> to vector<16xf32>
      %24 = vector.shape_cast %23 : vector<16xf32> to vector<16x1xf32>
      %cst_7 = arith.constant 1.000000e-30 : f32
      %25 = vector.broadcast %cst_7 : f32 to vector<16x1xf32>
      %26 = arith.maximumf %24, %25 : vector<16x1xf32>
      %27 = math.rsqrt %26 : vector<16x1xf32>
      %28 = vector.broadcast %27 : vector<16x1xf32> to vector<16x128xf32>
      %29 = arith.mulf %21, %28 : vector<16x128xf32>
      %30 = vector.extract_strided_slice %11 {offsets = [0, 256], sizes = [16, 128], strides = [1, 1]} : vector<16x384xf32> to vector<16x128xf32>
      %31 = arith.mulf %30, %30 : vector<16x128xf32>
      %cst_8 = arith.constant dense<0.000000e+00> : vector<16xf32>
      %32 = vector.multi_reduction <add>, %31, %cst_8 [1] : vector<16x128xf32> to vector<16xf32>
      %33 = vector.shape_cast %32 : vector<16xf32> to vector<16x1xf32>
      %cst_9 = arith.constant 1.000000e-30 : f32
      %34 = vector.broadcast %cst_9 : f32 to vector<16x1xf32>
      %35 = arith.maximumf %33, %34 : vector<16x1xf32>
      %36 = math.rsqrt %35 : vector<16x1xf32>
      %37 = vector.broadcast %36 : vector<16x1xf32> to vector<16x128xf32>
      %38 = arith.mulf %30, %37 : vector<16x128xf32>
      %39 = arith.index_cast %1 : i32 to index
      %c0_10 = arith.constant 0 : index
      %40 = vector.load %arg14[%39, %c0_10] : memref<16x128xf32, #tpu.memory_space<vmem>>, vector<16x128xf32>
      tpu.vector_store %arg14[%39, %c0_10], %20 {strides = array<i32>} : memref<16x128xf32, #tpu.memory_space<vmem>>, vector<16x128xf32>,
      %41 = tpu.concatenate %20, %29, %38 in 1 : vector<16x128xf32>, vector<16x128xf32>, vector<16x128xf32> -> vector<16x384xf32>
      %42 = arith.truncf %41 : vector<16x384xf32> to vector<16x384xbf16>
      %c0_11 = arith.constant 0 : index
      %c0_12 = arith.constant 0 : index
      %43 = vector.load %arg3[%c0_11, %c0_12] : memref<384x256xbf16, #tpu.memory_space<vmem>>, vector<384x256xbf16>
      %cst_13 = arith.constant dense<0.000000e+00> : vector<16x256xf32>
      %44 = tpu.matmul %42, %43, %cst_13 {dimension_numbers = #tpu.dot_dimension_numbers<[1], [0], [0], [1], [0, 0, 1, 1], [], []>} : vector<16x384xbf16>, vector<384x256xbf16>, vector<16x256xf32> -> vector<16x256xf32>
      %c0_14 = arith.constant 0 : index
      %c0_15 = arith.constant 0 : index
      %45 = vector.load %arg4[%c0_14, %c0_15] : memref<1x256xf32, #tpu.memory_space<vmem>>, vector<1x256xf32>
      %46 = vector.broadcast %45 : vector<1x256xf32> to vector<16x256xf32>
      %47 = arith.addf %44, %46 : vector<16x256xf32>
      %cst_16 = arith.constant 0.000000e+00 : f32
      %48 = vector.broadcast %cst_16 : f32 to vector<16x256xf32>
      %49 = arith.maximumf %47, %48 : vector<16x256xf32>
      %50 = arith.truncf %49 : vector<16x256xf32> to vector<16x256xbf16>
      %c0_17 = arith.constant 0 : index
      %c0_18 = arith.constant 0 : index
      %51 = vector.load %arg5[%c0_17, %c0_18] : memref<256x256xbf16, #tpu.memory_space<vmem>>, vector<256x256xbf16>
      %cst_19 = arith.constant dense<0.000000e+00> : vector<16x256xf32>
      %52 = tpu.matmul %50, %51, %cst_19 {dimension_numbers = #tpu.dot_dimension_numbers<[1], [0], [0], [1], [0, 0, 1, 1], [], []>} : vector<16x256xbf16>, vector<256x256xbf16>, vector<16x256xf32> -> vector<16x256xf32>
      %c0_20 = arith.constant 0 : index
      %c0_21 = arith.constant 0 : index
      %53 = vector.load %arg6[%c0_20, %c0_21] : memref<1x256xf32, #tpu.memory_space<vmem>>, vector<1x256xf32>
      %54 = vector.broadcast %53 : vector<1x256xf32> to vector<16x256xf32>
      %55 = arith.addf %52, %54 : vector<16x256xf32>
      %56 = arith.truncf %55 : vector<16x256xf32> to vector<16x256xbf16>
      %57 = arith.index_cast %1 : i32 to index
      %c0_22 = arith.constant 0 : index
      %58 = vector.load %arg13[%57, %c0_22] : memref<16x256xbf16, #tpu.memory_space<vmem>>, vector<16x256xbf16>
      tpu.vector_store %arg13[%57, %c0_22], %56 {strides = array<i32>} : memref<16x256xbf16, #tpu.memory_space<vmem>>, vector<16x256xbf16>,
      %c0_23 = arith.constant 0 : index
      %c0_24 = arith.constant 0 : index
      %59 = vector.load %arg15[%c0_23, %c0_24] : memref<1x256xf32, #tpu.memory_space<vmem>>, vector<1x256xf32>
      %cst_25 = arith.constant dense<0.000000e+00> : vector<256xf32>
      %60 = vector.multi_reduction <add>, %55, %cst_25 [0] : vector<16x256xf32> to vector<256xf32>
      %61 = vector.shape_cast %60 : vector<256xf32> to vector<1x256xf32>
      %62 = arith.addf %59, %61 : vector<1x256xf32>
      %c0_26 = arith.constant 0 : index
      %c0_27 = arith.constant 0 : index
      %63 = vector.load %arg15[%c0_26, %c0_27] : memref<1x256xf32, #tpu.memory_space<vmem>>, vector<1x256xf32>
      tpu.vector_store %arg15[%c0_26, %c0_27], %62 {strides = array<i32>} : memref<1x256xf32, #tpu.memory_space<vmem>>, vector<1x256xf32>,
      %c0_28 = arith.constant 0 : index
      %c0_29 = arith.constant 0 : index
      %64 = vector.load %arg16[%c0_28, %c0_29] : memref<1x256xf32, #tpu.memory_space<vmem>>, vector<1x256xf32>
      %65 = arith.mulf %55, %55 : vector<16x256xf32>
      %cst_30 = arith.constant dense<0.000000e+00> : vector<256xf32>
      %66 = vector.multi_reduction <add>, %65, %cst_30 [0] : vector<16x256xf32> to vector<256xf32>
      %67 = vector.shape_cast %66 : vector<256xf32> to vector<1x256xf32>
      %68 = arith.addf %64, %67 : vector<1x256xf32>
      %c0_31 = arith.constant 0 : index
      %c0_32 = arith.constant 0 : index
      %69 = vector.load %arg16[%c0_31, %c0_32] : memref<1x256xf32, #tpu.memory_space<vmem>>, vector<1x256xf32>
      tpu.vector_store %arg16[%c0_31, %c0_32], %68 {strides = array<i32>} : memref<1x256xf32, #tpu.memory_space<vmem>>, vector<1x256xf32>,
    } else {
    }
    %c1_i32 = arith.constant 1 : i32
    %5 = arith.cmpi eq, %arg0, %c1_i32 : i32
    %6 = arith.extui %5 : i1 to i32
    %c0_i32_1 = arith.constant 0 : i32
    %7 = arith.cmpi ne, %6, %c0_i32_1 : i32
    scf.if %7 {
      %c0 = arith.constant 0 : index
      %c0_2 = arith.constant 0 : index
      %8 = vector.load %arg15[%c0, %c0_2] : memref<1x256xf32, #tpu.memory_space<vmem>>, vector<1x256xf32>
      %cst = arith.constant 6.250000e-02 : f32
      %9 = vector.broadcast %cst : f32 to vector<1x256xf32>
      %10 = arith.mulf %8, %9 : vector<1x256xf32>
      %c0_3 = arith.constant 0 : index
      %c0_4 = arith.constant 0 : index
      %11 = vector.load %arg16[%c0_3, %c0_4] : memref<1x256xf32, #tpu.memory_space<vmem>>, vector<1x256xf32>
      %cst_5 = arith.constant 6.250000e-02 : f32
      %12 = vector.broadcast %cst_5 : f32 to vector<1x256xf32>
      %13 = arith.mulf %11, %12 : vector<1x256xf32>
      %14 = arith.mulf %10, %10 : vector<1x256xf32>
      %15 = arith.subf %13, %14 : vector<1x256xf32>
      %cst_6 = arith.constant 0.000000e+00 : f32
      %16 = vector.broadcast %cst_6 : f32 to vector<1x256xf32>
      %17 = arith.maximumf %15, %16 : vector<1x256xf32>
      %c0_7 = arith.constant 0 : index
      %c0_8 = arith.constant 0 : index
      %18 = vector.load %arg7[%c0_7, %c0_8] : memref<1x256xf32, #tpu.memory_space<vmem>>, vector<1x256xf32>
      %cst_9 = arith.constant 9.99999974E-6 : f32
      %19 = vector.broadcast %cst_9 : f32 to vector<1x256xf32>
      %20 = arith.addf %17, %19 : vector<1x256xf32>
      %21 = math.rsqrt %20 : vector<1x256xf32>
      %22 = arith.mulf %18, %21 : vector<1x256xf32>
      %c0_10 = arith.constant 0 : index
      %c0_11 = arith.constant 0 : index
      %23 = vector.load %arg8[%c0_10, %c0_11] : memref<1x256xf32, #tpu.memory_space<vmem>>, vector<1x256xf32>
      %24 = arith.mulf %10, %22 : vector<1x256xf32>
      %25 = arith.subf %23, %24 : vector<1x256xf32>
      %26 = arith.index_cast %1 : i32 to index
      %c0_12 = arith.constant 0 : index
      %27 = vector.load %arg13[%26, %c0_12] : memref<16x256xbf16, #tpu.memory_space<vmem>>, vector<16x256xbf16>
      %28 = arith.extf %27 : vector<16x256xbf16> to vector<16x256xf32>
      %29 = vector.broadcast %22 : vector<1x256xf32> to vector<16x256xf32>
      %30 = arith.mulf %28, %29 : vector<16x256xf32>
      %31 = vector.broadcast %25 : vector<1x256xf32> to vector<16x256xf32>
      %32 = arith.addf %30, %31 : vector<16x256xf32>
      %cst_13 = arith.constant 0.000000e+00 : f32
      %33 = vector.broadcast %cst_13 : f32 to vector<16x256xf32>
      %34 = arith.maximumf %32, %33 : vector<16x256xf32>
      %35 = arith.truncf %34 : vector<16x256xf32> to vector<16x256xbf16>
      %c0_14 = arith.constant 0 : index
      %c0_15 = arith.constant 0 : index
      %36 = vector.load %arg9[%c0_14, %c0_15] : memref<256x128xbf16, #tpu.memory_space<vmem>>, vector<256x128xbf16>
      %cst_16 = arith.constant dense<0.000000e+00> : vector<16x128xf32>
      %37 = tpu.matmul %35, %36, %cst_16 {dimension_numbers = #tpu.dot_dimension_numbers<[1], [0], [0], [1], [0, 0, 1, 1], [], []>} : vector<16x256xbf16>, vector<256x128xbf16>, vector<16x128xf32> -> vector<16x128xf32>
      %c0_17 = arith.constant 0 : index
      %c0_18 = arith.constant 0 : index
      %38 = vector.load %arg10[%c0_17, %c0_18] : memref<1x128xf32, #tpu.memory_space<vmem>>, vector<1x128xf32>
      %39 = vector.broadcast %38 : vector<1x128xf32> to vector<16x128xf32>
      %40 = arith.addf %37, %39 : vector<16x128xf32>
      %41 = arith.index_cast %1 : i32 to index
      %c0_19 = arith.constant 0 : index
      %42 = vector.load %arg14[%41, %c0_19] : memref<16x128xf32, #tpu.memory_space<vmem>>, vector<16x128xf32>
      %c0_20 = arith.constant 0 : index
      %43 = memref.load %arg11[%c0_20] : memref<2xf32, #tpu.memory_space<smem>>
      %44 = vector.broadcast %43 : f32 to vector<16x128xf32>
      %45 = arith.mulf %44, %42 : vector<16x128xf32>
      %c1 = arith.constant 1 : index
      %46 = memref.load %arg11[%c1] : memref<2xf32, #tpu.memory_space<smem>>
      %47 = arith.mulf %40, %40 : vector<16x128xf32>
      %cst_21 = arith.constant dense<0.000000e+00> : vector<16xf32>
      %48 = vector.multi_reduction <add>, %47, %cst_21 [1] : vector<16x128xf32> to vector<16xf32>
      %49 = vector.shape_cast %48 : vector<16xf32> to vector<16x1xf32>
      %cst_22 = arith.constant 1.000000e-30 : f32
      %50 = vector.broadcast %cst_22 : f32 to vector<16x1xf32>
      %51 = arith.maximumf %49, %50 : vector<16x1xf32>
      %52 = math.rsqrt %51 : vector<16x1xf32>
      %53 = vector.broadcast %52 : vector<16x1xf32> to vector<16x128xf32>
      %54 = arith.mulf %40, %53 : vector<16x128xf32>
      %55 = vector.broadcast %46 : f32 to vector<16x128xf32>
      %56 = arith.mulf %55, %54 : vector<16x128xf32>
      %57 = arith.addf %45, %56 : vector<16x128xf32>
      %c0_23 = arith.constant 0 : index
      %c0_24 = arith.constant 0 : index
      %58 = vector.load %arg12[%c0_23, %c0_24] : memref<16x128xf32, #tpu.memory_space<vmem>>, vector<16x128xf32>
      tpu.vector_store %arg12[%c0_23, %c0_24], %57 {strides = array<i32>} : memref<16x128xf32, #tpu.memory_space<vmem>>, vector<16x128xf32>,
    } else {
    }
    return
  }
  func.func @transform_0(%arg0: i32, %arg1: i32) -> (i32, i32) {
    %c1_i32 = arith.constant 1 : i32
    %0 = arith.subi %c1_i32, %arg0 : i32
    %1 = arith.muli %arg1, %0 : i32
    %c0_i32 = arith.constant 0 : i32
    %c0_i32_0 = arith.constant 0 : i32
    return %1, %c0_i32 : i32, i32
  }
  func.func @transform_1(%arg0: i32, %arg1: i32) -> (i32, i32) {
    %c0_i32 = arith.constant 0 : i32
    %c0_i32_0 = arith.constant 0 : i32
    %c0_i32_1 = arith.constant 0 : i32
    return %c0_i32, %c0_i32_0 : i32, i32
  }
  func.func @transform_2(%arg0: i32, %arg1: i32) -> (i32, i32) {
    %c0_i32 = arith.constant 0 : i32
    %c0_i32_0 = arith.constant 0 : i32
    %c0_i32_1 = arith.constant 0 : i32
    return %c0_i32, %c0_i32_0 : i32, i32
  }
  func.func @transform_3(%arg0: i32, %arg1: i32) -> (i32, i32) {
    %c0_i32 = arith.constant 0 : i32
    %c0_i32_0 = arith.constant 0 : i32
    %c0_i32_1 = arith.constant 0 : i32
    return %c0_i32, %c0_i32_0 : i32, i32
  }
  func.func @transform_4(%arg0: i32, %arg1: i32) -> (i32, i32) {
    %c0_i32 = arith.constant 0 : i32
    %c0_i32_0 = arith.constant 0 : i32
    %c0_i32_1 = arith.constant 0 : i32
    return %c0_i32, %c0_i32_0 : i32, i32
  }
  func.func @transform_5(%arg0: i32, %arg1: i32) -> (i32, i32) {
    %c0_i32 = arith.constant 0 : i32
    %c0_i32_0 = arith.constant 0 : i32
    %c0_i32_1 = arith.constant 0 : i32
    return %c0_i32, %c0_i32_0 : i32, i32
  }
  func.func @transform_6(%arg0: i32, %arg1: i32) -> (i32, i32) {
    %c0_i32 = arith.constant 0 : i32
    %c0_i32_0 = arith.constant 0 : i32
    %c0_i32_1 = arith.constant 0 : i32
    return %c0_i32, %c0_i32_0 : i32, i32
  }
  func.func @transform_7(%arg0: i32, %arg1: i32) -> (i32, i32) {
    %c0_i32 = arith.constant 0 : i32
    %c0_i32_0 = arith.constant 0 : i32
    %c0_i32_1 = arith.constant 0 : i32
    return %c0_i32, %c0_i32_0 : i32, i32
  }
  func.func @transform_8(%arg0: i32, %arg1: i32) -> (i32, i32) {
    %c0_i32 = arith.constant 0 : i32
    %c0_i32_0 = arith.constant 0 : i32
    %c0_i32_1 = arith.constant 0 : i32
    return %c0_i32, %c0_i32_0 : i32, i32
  }
  func.func @transform_9(%arg0: i32, %arg1: i32) -> i32 {
    %c0_i32 = arith.constant 0 : i32
    %c0_i32_0 = arith.constant 0 : i32
    return %c0_i32 : i32
  }
  func.func @transform_10(%arg0: i32, %arg1: i32) -> (i32, i32) {
    %0 = arith.muli %arg1, %arg0 : i32
    %c0_i32 = arith.constant 0 : i32
    %c0_i32_0 = arith.constant 0 : i32
    return %0, %c0_i32 : i32, i32
  }
}

</mosaic_0001>

<llo_original>
// kernel: tpu_custom_call.1
$region0: #{tpu_custom_call.1}
  #allocation0 [shape = 'u32[]', space=smem, size = 0x4, offset = 0x4, fixed_abs, tag = 'smem constant byte address 0x4 - core index']
  #allocation1 [shape = 'u32[144,128]{1,0:T(1,128)}', space=vmem, size = 0x12000, scoped, tag = 'internal scratch']
  #allocation2 [shape = 'bf16[16,256]{1,0:T(8,128)(2,1)}', space=vmem, size = 0x2000, scoped, tag = 'scratch operand']
  #allocation3 [shape = 'f32[16,128]{1,0:T(8,128)}', space=vmem, size = 0x2000, scoped, tag = 'scratch operand']
  #allocation4 [shape = 'f32[1,256]{1,0:T(1,128)}', space=vmem, size = 0x400, scoped, tag = 'scratch operand']
  #allocation5 [shape = 'f32[1,256]{1,0:T(1,128)}', space=vmem, size = 0x400, scoped, tag = 'scratch operand']
  %s0 = inlined_call_operand.hbm [shape: f32[16,384], index: 0, kind: input, shape index: {}]
  %s1 = inlined_call_operand.hbm [shape: bf16[384,256], index: 1, kind: input, shape index: {}]
  %s2 = inlined_call_operand.vmem [shape: f32[1,256], index: 2, kind: input, shape index: {}]
  %s3 = inlined_call_operand.hbm [shape: bf16[256,256], index: 3, kind: input, shape index: {}]
  %s4 = inlined_call_operand.vmem [shape: f32[1,256], index: 4, kind: input, shape index: {}]
  %s5 = inlined_call_operand.vmem [shape: f32[1,256], index: 5, kind: input, shape index: {}]
  %s6 = inlined_call_operand.vmem [shape: f32[1,256], index: 6, kind: input, shape index: {}]
  %s7 = inlined_call_operand.hbm [shape: bf16[256,128], index: 7, kind: input, shape index: {}]
  %s8 = inlined_call_operand.vmem [shape: f32[1,128], index: 8, kind: input, shape index: {}]
  %s9 = inlined_call_operand.vmem [shape: f32[2], index: 9, kind: input, shape index: {}]
  %s10 = inlined_call_operand.hbm [shape: f32[16,128], index: 10, kind: output, shape index: {}]
  %s11 = sld [smem:[#allocation0]]
  $region105: #{tpu_custom_call.1} parent=0
    _
  %s13 = ssub.s32 1, %s11
  %s14 = scalar_select 0, %s13, %s11
  $region1: #{tpu_custom_call.1} parent=0
    #allocation6 [shape = 'u8[49152]{0}', space=vmem, size = 0xc000, scoped, tag = 'input window, operand 0']
    #allocation7 [shape = 's32[2]{0}', space=sflag, size = 0x8, scoped, tag = 'scoped memory for tpu_custom_call.1']
    #allocation8 [shape = 's32[2]{0}', space=sflag, size = 0x8, scoped, tag = 'scoped memory for tpu_custom_call.1']
    #allocation9 [shape = 's32[2]{0}', space=sflag, size = 0x8, scoped, tag = 'scoped memory for tpu_custom_call.1']
    #allocation10 [shape = 'u8[196608]{0}', space=vmem, size = 0x30000, scoped, tag = 'input window, operand 1, single buffered']
    #allocation11 [shape = 's32[1]{0}', space=sflag, size = 0x4, scoped, tag = 'scoped memory for tpu_custom_call.1']
    #allocation12 [shape = 'u8[131072]{0}', space=vmem, size = 0x20000, scoped, tag = 'input window, operand 3, single buffered']
    #allocation13 [shape = 'u8[65536]{0}', space=vmem, size = 0x10000, scoped, tag = 'input window, operand 7, single buffered']
    #allocation14 [shape = 's32[1]{0}', space=sflag, size = 0x4, scoped, tag = 'scoped memory for tpu_custom_call.1']
    #allocation15 [shape = 'u8[512]{0}', space=smem, size = 0x200, scoped, tag = 'input window, operand 9, single buffered']
    #allocation16 [shape = 'u8[16384]{0}', space=vmem, size = 0x4000, scoped, tag = 'output window, operand 0']
    %15 = vsyncpa [#allocation7], 0
    %s16 = scalar_lea.sflag [#allocation7], 1
    %17 = vsyncpa %s16, 0
    %18 = vsyncpa [#allocation11], 0
    %19 = vsyncpa [#allocation14], 0
    %20 = vsyncpa [#allocation9], 0
    %21 = vsyncpa [#allocation8], 0
    %s22 = scalar_lea.sflag [#allocation8], 1
    %23 = vsyncpa %s22, 0
    loop: start=0, step=1, limit=4
    $region2: #{tpu_custom_call.1} parent=1 // loop_pre_header
      _
    $region3: #{tpu_custom_call.1} parent=1 // loop_header
      %s25 = sphi 0, %s29
      %p26 = scmp.ge.s32.totalorder %s25, 4
      %s32 = sphi 0, %s44
      %s33 = sphi 0, %s40
      %s34 = sphi 0, %s32
      %s35 = sphi 0, %s33
      %s36 = sphi 0, %s34
      %s37 = sphi 0, %s35
      %s51 = sphi 0, %s53
      %s54 = sphi 0, %s51
      %s55 = sphi 0, %s54
      %s71 = sphi 0, %s55
      %s75 = sphi 0, %s75
      %s77 = sphi 0, %s75
      %s78 = sphi 0, %s77
      %s92 = sphi 0, %s78
      %s96 = sphi 0, %s96
      %s98 = sphi 0, %s96
      %s99 = sphi 0, %s98
      %s113 = sphi 0, %s99
      %s117 = sphi 0, %s117
      %s119 = sphi 0, %s117
      %s120 = sphi 0, %s119
      %s134 = sphi 0, %s120
      %s138 = sphi 0, %s138
      %s140 = sphi 0, %s138
      %s141 = sphi 0, %s140
      %s155 = sphi 0, %s141
      %s159 = sphi 0, %s159
      %s161 = sphi 0, %s159
      %s162 = sphi 0, %s161
      %s176 = sphi 0, %s162
      %s180 = sphi 0, %s180
      %s182 = sphi 0, %s180
      %s183 = sphi 0, %s182
      %s197 = sphi 0, %s183
      %s201 = sphi 0, %s201
      %s203 = sphi 0, %s201
      %s204 = sphi 0, %s203
      %s218 = sphi 0, %s204
      %s222 = sphi 0, %s222
      %s224 = sphi 0, %s222
      %s225 = sphi 0, %s224
      %s239 = sphi 0, %s225
      %s243 = sphi 0, %s243
      %s245 = sphi 0, %s243
      %s246 = sphi 0, %s245
      %s260 = sphi 0, %s246
      %s268 = sphi 0, %s270
      %s271 = sphi 0, %s268
      %s272 = sphi 0, %s271
      %s288 = sphi 0, %s272
    $region4: #{tpu_custom_call.1} parent=1 // loop_header_branch
      %28 = sbr.rel (%p26) target = $region8
    $region5: #{tpu_custom_call.1} parent=1 // loop_body
      %s30 = ssub.s32 %s25, 1
      %s31 = ssub.s32 %s25, 2
      %s38 = sadd.s32 1, %s33
      %p39 = scmp.ge.s32.totalorder %s38, 1
      %s40 = scalar_select %p39, 0, %s38
      %s41 = sadd.s32 1, %s32
      %s42 = scalar_select %p39, %s41, %s32
      %p43 = scmp.ge.s32.totalorder %s42, 2
      %s44 = scalar_select %p43, 0, %s42
      %s45 = ssub.s32 1, %s32
      %s46 = smul.u32 %s33, %s45
      %s47 = ssub.s32 1, %s44
      %s48 = smul.u32 %s40, %s47
      %s49 = ssub.s32 %s46, %s48
      %p50 = scmp.eq.s32.totalorder %s49, 0
      %s52 = sadd.s32 %s51, 1
      %s53 = scalar_select %p50, %s51, %s52
      %p56 = pneg %p50
      %p57 = scmp.eq.s32.totalorder %s25, 1
      %p58 = por %p56, %p57
      %p59 = scmp.ne.s32.totalorder %s51, %s54
      %p60 = scmp.eq.s32.totalorder %s25, 0
      %p61 = por %p59, %p60
      %p62 = scmp.ne.s32.totalorder %s51, %s54
      %p63 = scmp.eq.s32.totalorder %s30, 1
      %p64 = por %p62, %p63
      %p65 = scmp.ne.s32.totalorder %s54, %s55
      %p66 = scmp.eq.s32.totalorder %s30, 0
      %p67 = por %p65, %p66
      %p68 = scmp.ne.s32.totalorder %s54, %s55
      %p69 = scmp.eq.s32.totalorder %s31, 1
      %p70 = por %p68, %p69
      %p72 = scmp.ne.s32.totalorder %s55, %s71
      %p73 = scmp.eq.s32.totalorder %s31, 0
      %p74 = por %p72, %p73
      %s76 = sadd.s32 %s75, 1
      %p79 = scmp.eq.s32.totalorder %s25, 1
      %p80 = scmp.ne.s32.totalorder %s75, %s77
      %p81 = scmp.eq.s32.totalorder %s25, 0
      %p82 = por %p80, %p81
      %p83 = scmp.ne.s32.totalorder %s75, %s77
      %p84 = scmp.eq.s32.totalorder %s30, 1
      %p85 = por %p83, %p84
      %p86 = scmp.ne.s32.totalorder %s77, %s78
      %p87 = scmp.eq.s32.totalorder %s30, 0
      %p88 = por %p86, %p87
      %p89 = scmp.ne.s32.totalorder %s77, %s78
      %p90 = scmp.eq.s32.totalorder %s31, 1
      %p91 = por %p89, %p90
      %p93 = scmp.ne.s32.totalorder %s78, %s92
      %p94 = scmp.eq.s32.totalorder %s31, 0
      %p95 = por %p93, %p94
      %s97 = sadd.s32 %s96, 1
      %p100 = scmp.eq.s32.totalorder %s25, 1
      %p101 = scmp.ne.s32.totalorder %s96, %s98
      %p102 = scmp.eq.s32.totalorder %s25, 0
      %p103 = por %p101, %p102
      %p104 = scmp.ne.s32.totalorder %s96, %s98
      %p105 = scmp.eq.s32.totalorder %s30, 1
      %p106 = por %p104, %p105
      %p107 = scmp.ne.s32.totalorder %s98, %s99
      %p108 = scmp.eq.s32.totalorder %s30, 0
      %p109 = por %p107, %p108
      %p110 = scmp.ne.s32.totalorder %s98, %s99
      %p111 = scmp.eq.s32.totalorder %s31, 1
      %p112 = por %p110, %p111
      %p114 = scmp.ne.s32.totalorder %s99, %s113
      %p115 = scmp.eq.s32.totalorder %s31, 0
      %p116 = por %p114, %p115
      %s118 = sadd.s32 %s117, 1
      %p121 = scmp.eq.s32.totalorder %s25, 1
      %p122 = scmp.ne.s32.totalorder %s117, %s119
      %p123 = scmp.eq.s32.totalorder %s25, 0
      %p124 = por %p122, %p123
      %p125 = scmp.ne.s32.totalorder %s117, %s119
      %p126 = scmp.eq.s32.totalorder %s30, 1
      %p127 = por %p125, %p126
      %p128 = scmp.ne.s32.totalorder %s119, %s120
      %p129 = scmp.eq.s32.totalorder %s30, 0
      %p130 = por %p128, %p129
      %p131 = scmp.ne.s32.totalorder %s119, %s120
      %p132 = scmp.eq.s32.totalorder %s31, 1
      %p133 = por %p131, %p132
      %p135 = scmp.ne.s32.totalorder %s120, %s134
      %p136 = scmp.eq.s32.totalorder %s31, 0
      %p137 = por %p135, %p136
      %s139 = sadd.s32 %s138, 1
      %p142 = scmp.eq.s32.totalorder %s25, 1
      %p143 = scmp.ne.s32.totalorder %s138, %s140
      %p144 = scmp.eq.s32.totalorder %s25, 0
      %p145 = por %p143, %p144
      %p146 = scmp.ne.s32.totalorder %s138, %s140
      %p147 = scmp.eq.s32.totalorder %s30, 1
      %p148 = por %p146, %p147
      %p149 = scmp.ne.s32.totalorder %s140, %s141
      %p150 = scmp.eq.s32.totalorder %s30, 0
      %p151 = por %p149, %p150
      %p152 = scmp.ne.s32.totalorder %s140, %s141
      %p153 = scmp.eq.s32.totalorder %s31, 1
      %p154 = por %p152, %p153
      %p156 = scmp.ne.s32.totalorder %s141, %s155
      %p157 = scmp.eq.s32.totalorder %s31, 0
      %p158 = por %p156, %p157
      %s160 = sadd.s32 %s159, 1
      %p163 = scmp.eq.s32.totalorder %s25, 1
      %p164 = scmp.ne.s32.totalorder %s159, %s161
      %p165 = scmp.eq.s32.totalorder %s25, 0
      %p166 = por %p164, %p165
      %p167 = scmp.ne.s32.totalorder %s159, %s161
      %p168 = scmp.eq.s32.totalorder %s30, 1
      %p169 = por %p167, %p168
      %p170 = scmp.ne.s32.totalorder %s161, %s162
      %p171 = scmp.eq.s32.totalorder %s30, 0
      %p172 = por %p170, %p171
      %p173 = scmp.ne.s32.totalorder %s161, %s162
      %p174 = scmp.eq.s32.totalorder %s31, 1
      %p175 = por %p173, %p174
      %p177 = scmp.ne.s32.totalorder %s162, %s176
      %p178 = scmp.eq.s32.totalorder %s31, 0
      %p179 = por %p177, %p178
      %s181 = sadd.s32 %s180, 1
      %p184 = scmp.eq.s32.totalorder %s25, 1
      %p185 = scmp.ne.s32.totalorder %s180, %s182
      %p186 = scmp.eq.s32.totalorder %s25, 0
      %p187 = por %p185, %p186
      %p188 = scmp.ne.s32.totalorder %s180, %s182
      %p189 = scmp.eq.s32.totalorder %s30, 1
      %p190 = por %p188, %p189
      %p191 = scmp.ne.s32.totalorder %s182, %s183
      %p192 = scmp.eq.s32.totalorder %s30, 0
      %p193 = por %p191, %p192
      %p194 = scmp.ne.s32.totalorder %s182, %s183
      %p195 = scmp.eq.s32.totalorder %s31, 1
      %p196 = por %p194, %p195
      %p198 = scmp.ne.s32.totalorder %s183, %s197
      %p199 = scmp.eq.s32.totalorder %s31, 0
      %p200 = por %p198, %p199
      %s202 = sadd.s32 %s201, 1
      %p205 = scmp.eq.s32.totalorder %s25, 1
      %p206 = scmp.ne.s32.totalorder %s201, %s203
      %p207 = scmp.eq.s32.totalorder %s25, 0
      %p208 = por %p206, %p207
      %p209 = scmp.ne.s32.totalorder %s201, %s203
      %p210 = scmp.eq.s32.totalorder %s30, 1
      %p211 = por %p209, %p210
      %p212 = scmp.ne.s32.totalorder %s203, %s204
      %p213 = scmp.eq.s32.totalorder %s30, 0
      %p214 = por %p212, %p213
      %p215 = scmp.ne.s32.totalorder %s203, %s204
      %p216 = scmp.eq.s32.totalorder %s31, 1
      %p217 = por %p215, %p216
      %p219 = scmp.ne.s32.totalorder %s204, %s218
      %p220 = scmp.eq.s32.totalorder %s31, 0
      %p221 = por %p219, %p220
      %s223 = sadd.s32 %s222, 1
      %p226 = scmp.eq.s32.totalorder %s25, 1
      %p227 = scmp.ne.s32.totalorder %s222, %s224
      %p228 = scmp.eq.s32.totalorder %s25, 0
      %p229 = por %p227, %p228
      %p230 = scmp.ne.s32.totalorder %s222, %s224
      %p231 = scmp.eq.s32.totalorder %s30, 1
      %p232 = por %p230, %p231
      %p233 = scmp.ne.s32.totalorder %s224, %s225
      %p234 = scmp.eq.s32.totalorder %s30, 0
      %p235 = por %p233, %p234
      %p236 = scmp.ne.s32.totalorder %s224, %s225
      %p237 = scmp.eq.s32.totalorder %s31, 1
      %p238 = por %p236, %p237
      %p240 = scmp.ne.s32.totalorder %s225, %s239
      %p241 = scmp.eq.s32.totalorder %s31, 0
      %p242 = por %p240, %p241
      %s244 = sadd.s32 %s243, 1
      %p247 = scmp.eq.s32.totalorder %s25, 1
      %p248 = scmp.ne.s32.totalorder %s243, %s245
      %p249 = scmp.eq.s32.totalorder %s25, 0
      %p250 = por %p248, %p249
      %p251 = scmp.ne.s32.totalorder %s243, %s245
      %p252 = scmp.eq.s32.totalorder %s30, 1
      %p253 = por %p251, %p252
      %p254 = scmp.ne.s32.totalorder %s245, %s246
      %p255 = scmp.eq.s32.totalorder %s30, 0
      %p256 = por %p254, %p255
      %p257 = scmp.ne.s32.totalorder %s245, %s246
      %p258 = scmp.eq.s32.totalorder %s31, 1
      %p259 = por %p257, %p258
      %p261 = scmp.ne.s32.totalorder %s246, %s260
      %p262 = scmp.eq.s32.totalorder %s31, 0
      %p263 = por %p261, %p262
      %s264 = smul.u32 %s33, %s32
      %s265 = smul.u32 %s40, %s44
      %s266 = ssub.s32 %s264, %s265
      %p267 = scmp.eq.s32.totalorder %s266, 0
      %s269 = sadd.s32 %s268, 1
      %s270 = scalar_select %p267, %s268, %s269
      %p273 = pneg %p267
      %p274 = scmp.eq.s32.totalorder %s25, 1
      %p275 = por %p273, %p274
      %p276 = scmp.ne.s32.totalorder %s268, %s271
      %p277 = scmp.eq.s32.totalorder %s25, 0
      %p278 = por %p276, %p277
      %p279 = scmp.ne.s32.totalorder %s268, %s271
      %p280 = scmp.eq.s32.totalorder %s30, 1
      %p281 = por %p279, %p280
      %p282 = scmp.ne.s32.totalorder %s271, %s272
      %p283 = scmp.eq.s32.totalorder %s30, 0
      %p284 = por %p282, %p283
      %p285 = scmp.ne.s32.totalorder %s271, %s272
      %p286 = scmp.eq.s32.totalorder %s31, 1
      %p287 = por %p285, %p286
      %p289 = scmp.ne.s32.totalorder %s272, %s288
      %p290 = scmp.eq.s32.totalorder %s31, 0
      %p291 = por %p289, %p290
      %p292 = scmp.le.s32.totalorder 1, %s25
      %p293 = scmp.lt.s32.totalorder %s25, 3
      %p294 = pnand %p292, %p293
      %p295 = pneg %p294
      // Predicated region
      $region9: #{tpu_custom_call.1} parent=5 // pred_check
        _
      $region10: #{tpu_custom_call.1} parent=5 // pred_check_branch
        %297 = sbr.rel (%p294) target = $region12
      $region11: #{tpu_custom_call.1} parent=5 // pred_region
        %s298 = ssub.s32 %s25, 1
        // Predicated region
        $region13: #{tpu_custom_call.1} parent=11 // pred_check
          %p299 = pneg %p88
        $region14: #{tpu_custom_call.1} parent=11 // pred_check_branch
          %301 = sbr.rel (%p299) target = $region16
        $region15: #{tpu_custom_call.1} parent=11 // pred_region
          %s303 = ssub.s32 6144, 6144
          %304 = vsyncadd [#allocation11], %s303
          %s305 = sshll.u32 [#allocation10], 4
          %s306 = int_to_ptr.vmem [resolvable:$true] %s305
          %311 = dma.hbm_to_vmem [thread:$0]  %s1, 6144, %s306, [#allocation11], 128, 128, 8
        $region16: #{tpu_custom_call.1} parent=11 // pred_fallthru
          _
        // Predicated region
        $region17: #{tpu_custom_call.1} parent=11 // pred_check
          %p312 = pneg %p109
        $region18: #{tpu_custom_call.1} parent=11 // pred_check_branch
          %314 = sbr.rel (%p312) target = $region20
        $region19: #{tpu_custom_call.1} parent=11 // pred_region
          _
        $region20: #{tpu_custom_call.1} parent=11 // pred_fallthru
          _
        // Predicated region
        $region21: #{tpu_custom_call.1} parent=11 // pred_check
          %p315 = pneg %p130
        $region22: #{tpu_custom_call.1} parent=11 // pred_check_branch
          %317 = sbr.rel (%p315) target = $region24
        $region23: #{tpu_custom_call.1} parent=11 // pred_region
          %s319 = ssub.s32 4096, 4096
          %320 = vsyncadd [#allocation11], %s319
          %s321 = sshll.u32 [#allocation12], 4
          %s322 = int_to_ptr.vmem [resolvable:$true] %s321
          %327 = dma.hbm_to_vmem [thread:$0]  %s3, 4096, %s322, [#allocation11], 128, 128, 8
        $region24: #{tpu_custom_call.1} parent=11 // pred_fallthru
          _
        // Predicated region
        $region25: #{tpu_custom_call.1} parent=11 // pred_check
          %p328 = pneg %p151
        $region26: #{tpu_custom_call.1} parent=11 // pred_check_branch
          %330 = sbr.rel (%p328) target = $region28
        $region27: #{tpu_custom_call.1} parent=11 // pred_region
          _
        $region28: #{tpu_custom_call.1} parent=11 // pred_fallthru
          _
        // Predicated region
        $region29: #{tpu_custom_call.1} parent=11 // pred_check
          %p331 = pneg %p172
        $region30: #{tpu_custom_call.1} parent=11 // pred_check_branch
          %333 = sbr.rel (%p331) target = $region32
        $region31: #{tpu_custom_call.1} parent=11 // pred_region
          _
        $region32: #{tpu_custom_call.1} parent=11 // pred_fallthru
          _
        // Predicated region
        $region33: #{tpu_custom_call.1} parent=11 // pred_check
          %p334 = pneg %p193
        $region34: #{tpu_custom_call.1} parent=11 // pred_check_branch
          %336 = sbr.rel (%p334) target = $region36
        $region35: #{tpu_custom_call.1} parent=11 // pred_region
          _
        $region36: #{tpu_custom_call.1} parent=11 // pred_fallthru
          _
        // Predicated region
        $region37: #{tpu_custom_call.1} parent=11 // pred_check
          %p337 = pneg %p214
        $region38: #{tpu_custom_call.1} parent=11 // pred_check_branch
          %339 = sbr.rel (%p337) target = $region40
        $region39: #{tpu_custom_call.1} parent=11 // pred_region
          %s341 = ssub.s32 2048, 2048
          %342 = vsyncadd [#allocation14], %s341
          %s343 = sshll.u32 [#allocation13], 4
          %s344 = int_to_ptr.vmem [resolvable:$true] %s343
          %349 = dma.hbm_to_vmem [thread:$0]  %s7, 2048, %s344, [#allocation14], 64, 64, 4
        $region40: #{tpu_custom_call.1} parent=11 // pred_fallthru
          _
        // Predicated region
        $region41: #{tpu_custom_call.1} parent=11 // pred_check
          %p350 = pneg %p235
        $region42: #{tpu_custom_call.1} parent=11 // pred_check_branch
          %352 = sbr.rel (%p350) target = $region44
        $region43: #{tpu_custom_call.1} parent=11 // pred_region
          _
        $region44: #{tpu_custom_call.1} parent=11 // pred_fallthru
          _
        // Predicated region
        $region45: #{tpu_custom_call.1} parent=11 // pred_check
          %p353 = pneg %p256
        $region46: #{tpu_custom_call.1} parent=11 // pred_check_branch
          %355 = sbr.rel (%p353) target = $region48
        $region47: #{tpu_custom_call.1} parent=11 // pred_region
          %s357 = ssub.s32 16, 16
          %358 = vsyncadd [#allocation9], %s357
          %s360 = sshll.u32 %s9, 4
          %s361 = int_to_ptr.vmem [resolvable:$true] %s360
          %363 = dma.vmem_to_smem %s361, 16, [#allocation15], [#allocation9]
        $region48: #{tpu_custom_call.1} parent=11 // pred_fallthru
          _
      $region12: #{tpu_custom_call.1} parent=5 // pred_fallthru
        _
      %p364 = scmp.lt.s32.totalorder %s25, 2
      // Predicated region
      $region49: #{tpu_custom_call.1} parent=5 // pred_check
        %p365 = pneg %p364
      $region50: #{tpu_custom_call.1} parent=5 // pred_check_branch
        %367 = sbr.rel (%p365) target = $region52
      $region51: #{tpu_custom_call.1} parent=5 // pred_region
        // Predicated region
        $region53: #{tpu_custom_call.1} parent=51 // pred_check
          %p368 = pneg %p61
        $region54: #{tpu_custom_call.1} parent=51 // pred_check_branch
          %370 = sbr.rel (%p368) target = $region56
        $region55: #{tpu_custom_call.1} parent=51 // pred_region
          %s371 = sand.u32 %s51, 1
          %s372 = scalar_lea.sflag [#allocation7], %s371
          %s373 = sand.u32 %s51, 1
          %s374 = smul.addr %s373, 48
          %s375 = scalar_lea.vmem [#allocation6], %s374
          %s376 = ssub.s32 1, %s32
          %s377 = smul.u32 %s33, %s376
          %s378 = smul.u32 2, %s377
          %s380 = ssub.s32 768, 768
          %381 = vsyncadd %s372, %s380
          %s382 = smul.addr %s378, 3
          %s383 = smul.addr %s382, 128
          %s384 = scalar_lea.hbm %s0, %s383
          %s385 = sshll.u32 %s375, 4
          %s386 = int_to_ptr.vmem [resolvable:$true] %s385
          %391 = dma.hbm_to_vmem [thread:$0]  %s384, 768, %s386, %s372, 384, 384, 24
        $region56: #{tpu_custom_call.1} parent=51 // pred_fallthru
          _
      $region52: #{tpu_custom_call.1} parent=5 // pred_fallthru
        _
      %p392 = scmp.le.s32.totalorder 1, %s25
      %p393 = scmp.lt.s32.totalorder %s25, 3
      %p394 = pnand %p392, %p393
      %p395 = pneg %p394
      // Predicated region
      $region57: #{tpu_custom_call.1} parent=5 // pred_check
        _
      $region58: #{tpu_custom_call.1} parent=5 // pred_check_branch
        %397 = sbr.rel (%p394) target = $region60
      $region59: #{tpu_custom_call.1} parent=5 // pred_region
        %s398 = ssub.s32 %s25, 1
        %s399 = sand.u32 %s54, 1
        %s400 = scalar_lea.sflag [#allocation7], %s399
        %s401 = sand.u32 %s54, 1
        %s402 = smul.addr %s401, 48
        %s403 = scalar_lea.vmem [#allocation6], %s402
        // Predicated region
        $region61: #{tpu_custom_call.1} parent=59 // pred_check
          %p404 = pneg %p67
        $region62: #{tpu_custom_call.1} parent=59 // pred_check_branch
          %406 = sbr.rel (%p404) target = $region64
        $region63: #{tpu_custom_call.1} parent=59 // pred_region
          %407 = dma.done %s400, 768
        $region64: #{tpu_custom_call.1} parent=59 // pred_fallthru
          _
        // Predicated region
        $region65: #{tpu_custom_call.1} parent=59 // pred_check
          %p408 = pneg %p88
        $region66: #{tpu_custom_call.1} parent=59 // pred_check_branch
          %410 = sbr.rel (%p408) target = $region68
        $region67: #{tpu_custom_call.1} parent=59 // pred_region
          %411 = dma.done [#allocation11], 6144
        $region68: #{tpu_custom_call.1} parent=59 // pred_fallthru
          _
        // Predicated region
        $region69: #{tpu_custom_call.1} parent=59 // pred_check
          %p412 = pneg %p130
        $region70: #{tpu_custom_call.1} parent=59 // pred_check_branch
          %414 = sbr.rel (%p412) target = $region72
        $region71: #{tpu_custom_call.1} parent=59 // pred_region
          %415 = dma.done [#allocation11], 4096
        $region72: #{tpu_custom_call.1} parent=59 // pred_fallthru
          _
        // Predicated region
        $region73: #{tpu_custom_call.1} parent=59 // pred_check
          %p416 = pneg %p214
        $region74: #{tpu_custom_call.1} parent=59 // pred_check_branch
          %418 = sbr.rel (%p416) target = $region76
        $region75: #{tpu_custom_call.1} parent=59 // pred_region
          %419 = dma.done [#allocation14], 2048
        $region76: #{tpu_custom_call.1} parent=59 // pred_fallthru
          _
        // Predicated region
        $region77: #{tpu_custom_call.1} parent=59 // pred_check
          %p420 = pneg %p256
        $region78: #{tpu_custom_call.1} parent=59 // pred_check_branch
          %422 = sbr.rel (%p420) target = $region80
        $region79: #{tpu_custom_call.1} parent=59 // pred_region
          %423 = dma.done [#allocation9], 16
        $region80: #{tpu_custom_call.1} parent=59 // pred_fallthru
          _
        %424 = sfence
        %s425 = sand.u32 %s54, 1
        %s426 = scalar_lea.sflag [#allocation7], %s425
        %s427 = sand.u32 %s54, 1
        %s428 = smul.addr %s427, 48
        %s429 = scalar_lea.vmem [#allocation6], %s428
        %p430 = pneg %p67
        %p431 = pneg %p64
        %p432 = pneg %p88
        %p433 = pneg %p85
        %p434 = pneg %p109
        %p435 = pneg %p106
        %p436 = pneg %p130
        %p437 = pneg %p127
        %p438 = pneg %p151
        %p439 = pneg %p148
        %p440 = pneg %p172
        %p441 = pneg %p169
        %p442 = pneg %p193
        %p443 = pneg %p190
        %p444 = pneg %p214
        %p445 = pneg %p211
        %p446 = pneg %p235
        %p447 = pneg %p232
        %p448 = pneg %p256
        %p449 = pneg %p253
        %p450 = pneg %p284
        %p451 = pneg %p281
        %s452 = sand.u32 %s271, 1
        %s453 = scalar_lea.sflag [#allocation8], %s452
        %s454 = sand.u32 %s271, 1
        %s455 = smul.addr %s454, 16
        %s456 = scalar_lea.vmem [#allocation16], %s455
        %s457 = ssub.s32 1, %s34
        %s458 = smul.u32 %s35, %s457
        %s459 = smul.u32 2, %s458
        %s460 = smul.u32 %s35, %s34
        %s461 = smul.u32 2, %s460
        %s463 = smul.u32 %s35, 16
        %p464 = scmp.eq.s32.totalorder %s34, 0
        // Predicated region
        $region81: #{tpu_custom_call.1} parent=59 // pred_check
          %p465 = pneg %p464
        $region82: #{tpu_custom_call.1} parent=59 // pred_check_branch
          %467 = sbr.rel (%p465) target = $region84
        $region83: #{tpu_custom_call.1} parent=59 // pred_region
          %p468 = scmp.eq.s32.totalorder %s35, 0
          // Predicated region
          $region85: #{tpu_custom_call.1} parent=83 // pred_check
            %p469 = pneg %p468
          $region86: #{tpu_custom_call.1} parent=83 // pred_check_branch
            %471 = sbr.rel (%p469) target = $region88
          $region87: #{tpu_custom_call.1} parent=83 // pred_region
            %v472 = vlaneseq
            %vm473 = vcmp.ge.s32.totalorder %v472, 0
            %vm474 = vcmp.lt.s32.totalorder %v472, 256
            %vm475 = vmand %vm473, %vm474
            %476 = vst.msk [vmem:[#allocation4] sm:$0x3] %vm475, 0.0
            %477 = vst.msk [vmem:[#allocation5] sm:$0x3] %vm475, 0.0
          $region88: #{tpu_custom_call.1} parent=83 // pred_fallthru
            _
          %v478 = vld [vmem:[%s403] sm:$0xff]
          %v479 = vld [vmem:[%s403 + $0x8] sm:$0xff]
          %v480 = vld [vmem:[%s403 + $0x10] sm:$0xff]
          %v481 = vld [vmem:[%s403 + $0x18] sm:$0xff]
          %v482 = vld [vmem:[%s403 + $0x20] sm:$0xff]
          %v483 = vld [vmem:[%s403 + $0x28] sm:$0xff]
          %v484 = vmul.f32 %v478, %v478
          %v485 = vmul.f32 %v481, %v481
          %486 = vadd.xlane.f32.xlu0 %v484
          %v487 = vpop.xlane.xlu0 %486
          %488 = vadd.xlane.f32.xlu0 %v485
          %v489 = vpop.xlane.xlu0 %488
          %v490 = vmax.f32 %v487, 1e-30
          %v491 = vmax.f32 %v489, 1e-30
          %v492 = vrsqrt.pop %v490
          %v493 = vrsqrt.pop %v491
          %v494 = vmul.f32 %v478, %v492
          %v495 = vmul.f32 %v481, %v493
          %v496 = vmul.f32 %v479, %v479
          %v497 = vmul.f32 %v482, %v482
          %498 = vadd.xlane.f32.xlu0 %v496
          %v499 = vpop.xlane.xlu0 %498
          %500 = vadd.xlane.f32.xlu0 %v497
          %v501 = vpop.xlane.xlu0 %500
          %v502 = vmax.f32 %v499, 1e-30
          %v503 = vmax.f32 %v501, 1e-30
          %v504 = vrsqrt.pop %v502
          %v505 = vrsqrt.pop %v503
          %v506 = vmul.f32 %v479, %v504
          %v507 = vmul.f32 %v482, %v505
          %v508 = vmul.f32 %v480, %v480
          %v509 = vmul.f32 %v483, %v483
          %510 = vadd.xlane.f32.xlu0 %v508
          %v511 = vpop.xlane.xlu0 %510
          %512 = vadd.xlane.f32.xlu0 %v509
          %v513 = vpop.xlane.xlu0 %512
          %v514 = vmax.f32 %v511, 1e-30
          %v515 = vmax.f32 %v513, 1e-30
          %v516 = vrsqrt.pop %v514
          %v517 = vrsqrt.pop %v515
          %v518 = vmul.f32 %v480, %v516
          %v519 = vmul.f32 %v483, %v517
          %s520 = scalar_lea.vmem [#allocation3], %s463
          %521 = vst [vmem:[%s520] sm:$0xff] %v494
          %522 = vst [vmem:[%s520 + $0x8] sm:$0xff] %v495
          %v523 = vpack.c.bf16 %v495, %v494
          %v524 = vpack.c.bf16 %v507, %v506
          %v525 = vpack.c.bf16 %v519, %v518
          %v526 = vld [vmem:[#allocation10] sm:$0xff]
          %v527 = vld [vmem:[#allocation10 + $0x8] sm:$0xff]
          %v528 = vld [vmem:[#allocation10 + $0x10] sm:$0xff]
          %v529 = vld [vmem:[#allocation10 + $0x18] sm:$0xff]
          %v530 = vld [vmem:[#allocation10 + $0x20] sm:$0xff]
          %v531 = vld [vmem:[#allocation10 + $0x28] sm:$0xff]
          %v532 = vld [vmem:[#allocation10 + $0x30] sm:$0xff]
          %v533 = vld [vmem:[#allocation10 + $0x38] sm:$0xff]
          %v534 = vld [vmem:[#allocation10 + $0x40] sm:$0xff]
          %v535 = vld [vmem:[#allocation10 + $0x48] sm:$0xff]
          %v536 = vld [vmem:[#allocation10 + $0x50] sm:$0xff]
          %v537 = vld [vmem:[#allocation10 + $0x58] sm:$0xff]
          %v538 = vld [vmem:[#allocation10 + $0x60] sm:$0xff]
          %v539 = vld [vmem:[#allocation10 + $0x68] sm:$0xff]
          %v540 = vld [vmem:[#allocation10 + $0x70] sm:$0xff]
          %v541 = vld [vmem:[#allocation10 + $0x78] sm:$0xff]
          %v542 = vld [vmem:[#allocation10 + $0x80] sm:$0xff]
          %v543 = vld [vmem:[#allocation10 + $0x88] sm:$0xff]
          %v544 = vld [vmem:[#allocation10 + $0x90] sm:$0xff]
          %v545 = vld [vmem:[#allocation10 + $0x98] sm:$0xff]
          %v546 = vld [vmem:[#allocation10 + $0xa0] sm:$0xff]
          %v547 = vld [vmem:[#allocation10 + $0xa8] sm:$0xff]
          %v548 = vld [vmem:[#allocation10 + $0xb0] sm:$0xff]
          %v549 = vld [vmem:[#allocation10 + $0xb8] sm:$0xff]
          %v550 = vld [vmem:[#allocation10 + $0xc0] sm:$0xff]
          %v551 = vld [vmem:[#allocation10 + $0xc8] sm:$0xff]
          %v552 = vld [vmem:[#allocation10 + $0xd0] sm:$0xff]
          %v553 = vld [vmem:[#allocation10 + $0xd8] sm:$0xff]
          %v554 = vld [vmem:[#allocation10 + $0xe0] sm:$0xff]
          %v555 = vld [vmem:[#allocation10 + $0xe8] sm:$0xff]
          %v556 = vld [vmem:[#allocation10 + $0xf0] sm:$0xff]
          %v557 = vld [vmem:[#allocation10 + $0xf8] sm:$0xff]
          %v558 = vld [vmem:[#allocation10 + $0x100] sm:$0xff]
          %v559 = vld [vmem:[#allocation10 + $0x108] sm:$0xff]
          %v560 = vld [vmem:[#allocation10 + $0x110] sm:$0xff]
          %v561 = vld [vmem:[#allocation10 + $0x118] sm:$0xff]
          %v562 = vld [vmem:[#allocation10 + $0x120] sm:$0xff]
          %v563 = vld [vmem:[#allocation10 + $0x128] sm:$0xff]
          %v564 = vld [vmem:[#allocation10 + $0x130] sm:$0xff]
          %v565 = vld [vmem:[#allocation10 + $0x138] sm:$0xff]
          %v566 = vld [vmem:[#allocation10 + $0x140] sm:$0xff]
          %v567 = vld [vmem:[#allocation10 + $0x148] sm:$0xff]
          %v568 = vld [vmem:[#allocation10 + $0x150] sm:$0xff]
          %v569 = vld [vmem:[#allocation10 + $0x158] sm:$0xff]
          %v570 = vld [vmem:[#allocation10 + $0x160] sm:$0xff]
          %v571 = vld [vmem:[#allocation10 + $0x168] sm:$0xff]
          %v572 = vld [vmem:[#allocation10 + $0x170] sm:$0xff]
          %v573 = vld [vmem:[#allocation10 + $0x178] sm:$0xff]
          %v574 = vld [vmem:[%s2] sm:$0x3]
          %v576 = vlaneseq
          %v577 = vshrl.u32 %v576, 7
          %v578 = vsub.s32 0, %v577
          %v579 = vrot.slane %v574, %v578
          %v580 = vlaneseq
          %v581 = vshrl.u32 %v580, 7
          %v582 = vsub.s32 1, %v581
          %v583 = vrot.slane %v574, %v582
          %v634 = vunpack.c.l.b16 %v526
          %v635 = vunpack.c.h.b16 %v526
          %v636 = vunpack.c.l.b16 %v527
          %v637 = vunpack.c.h.b16 %v527
          %v638 = vunpack.c.l.b16 %v528
          %v639 = vunpack.c.h.b16 %v528
          %v640 = vunpack.c.l.b16 %v529
          %v641 = vunpack.c.h.b16 %v529
          %v642 = vunpack.c.l.b16 %v530
          %v643 = vunpack.c.h.b16 %v530
          %v644 = vunpack.c.l.b16 %v531
          %v645 = vunpack.c.h.b16 %v531
          %v646 = vunpack.c.l.b16 %v532
          %v647 = vunpack.c.h.b16 %v532
          %v648 = vunpack.c.l.b16 %v533
          %v649 = vunpack.c.h.b16 %v533
          %v650 = vunpack.c.l.b16 %v534
          %v651 = vunpack.c.h.b16 %v534
          %v652 = vunpack.c.l.b16 %v535
          %v653 = vunpack.c.h.b16 %v535
          %v654 = vunpack.c.l.b16 %v536
          %v655 = vunpack.c.h.b16 %v536
          %v656 = vunpack.c.l.b16 %v537
          %v657 = vunpack.c.h.b16 %v537
          %v658 = vunpack.c.l.b16 %v538
          %v659 = vunpack.c.h.b16 %v538
          %v660 = vunpack.c.l.b16 %v539
          %v661 = vunpack.c.h.b16 %v539
          %v662 = vunpack.c.l.b16 %v540
          %v663 = vunpack.c.h.b16 %v540
          %v664 = vunpack.c.l.b16 %v541
          %v665 = vunpack.c.h.b16 %v541
          %v666 = vunpack.c.l.b16 %v542
          %v667 = vunpack.c.h.b16 %v542
          %v668 = vunpack.c.l.b16 %v543
          %v669 = vunpack.c.h.b16 %v543
          %v670 = vunpack.c.l.b16 %v544
          %v671 = vunpack.c.h.b16 %v544
          %v672 = vunpack.c.l.b16 %v545
          %v673 = vunpack.c.h.b16 %v545
          %v674 = vunpack.c.l.b16 %v546
          %v675 = vunpack.c.h.b16 %v546
          %v676 = vunpack.c.l.b16 %v547
          %v677 = vunpack.c.h.b16 %v547
          %v678 = vunpack.c.l.b16 %v548
          %v679 = vunpack.c.h.b16 %v548
          %v680 = vunpack.c.l.b16 %v549
          %v681 = vunpack.c.h.b16 %v549
          %v682 = vunpack.c.l.b16 %v550
          %v683 = vunpack.c.h.b16 %v550
          %v684 = vunpack.c.l.b16 %v551
          %v685 = vunpack.c.h.b16 %v551
          %v686 = vunpack.c.l.b16 %v552
          %v687 = vunpack.c.h.b16 %v552
          %v688 = vunpack.c.l.b16 %v553
          %v689 = vunpack.c.h.b16 %v553
          %v690 = vunpack.c.l.b16 %v554
          %v691 = vunpack.c.h.b16 %v554
          %v692 = vunpack.c.l.b16 %v555
          %v693 = vunpack.c.h.b16 %v555
          %v694 = vunpack.c.l.b16 %v556
          %v695 = vunpack.c.h.b16 %v556
          %v696 = vunpack.c.l.b16 %v557
          %v697 = vunpack.c.h.b16 %v557
          %v698 = vunpack.c.l.b16 %v558
          %v699 = vunpack.c.h.b16 %v558
          %v700 = vunpack.c.l.b16 %v559
          %v701 = vunpack.c.h.b16 %v559
          %v702 = vunpack.c.l.b16 %v560
          %v703 = vunpack.c.h.b16 %v560
          %v704 = vunpack.c.l.b16 %v561
          %v705 = vunpack.c.h.b16 %v561
          %v706 = vunpack.c.l.b16 %v562
          %v707 = vunpack.c.h.b16 %v562
          %v708 = vunpack.c.l.b16 %v563
          %v709 = vunpack.c.h.b16 %v563
          %v710 = vunpack.c.l.b16 %v564
          %v711 = vunpack.c.h.b16 %v564
          %v712 = vunpack.c.l.b16 %v565
          %v713 = vunpack.c.h.b16 %v565
          %v714 = vunpack.c.l.b16 %v566
          %v715 = vunpack.c.h.b16 %v566
          %v716 = vunpack.c.l.b16 %v567
          %v717 = vunpack.c.h.b16 %v567
          %v718 = vunpack.c.l.b16 %v568
          %v719 = vunpack.c.h.b16 %v568
          %v720 = vunpack.c.l.b16 %v569
          %v721 = vunpack.c.h.b16 %v569
          %v722 = vunpack.c.l.b16 %v570
          %v723 = vunpack.c.h.b16 %v570
          %v724 = vunpack.c.l.b16 %v571
          %v725 = vunpack.c.h.b16 %v571
          %v726 = vunpack.c.l.b16 %v572
          %v727 = vunpack.c.h.b16 %v572
          %v728 = vunpack.c.l.b16 %v573
          %v729 = vunpack.c.h.b16 %v573
          %v730 = vpack.c.b16 %v636, %v634
          %v731 = vpack.c.b16 %v637, %v635
          %v732 = vpack.c.b16 %v640, %v638
          %v733 = vpack.c.b16 %v641, %v639
          %v734 = vpack.c.b16 %v644, %v642
          %v735 = vpack.c.b16 %v645, %v643
          %v736 = vpack.c.b16 %v648, %v646
          %v737 = vpack.c.b16 %v649, %v647
          %v738 = vpack.c.b16 %v652, %v650
          %v739 = vpack.c.b16 %v653, %v651
          %v740 = vpack.c.b16 %v656, %v654
          %v741 = vpack.c.b16 %v657, %v655
          %v742 = vpack.c.b16 %v660, %v658
          %v743 = vpack.c.b16 %v661, %v659
          %v744 = vpack.c.b16 %v664, %v662
          %v745 = vpack.c.b16 %v665, %v663
          %v746 = vpack.c.b16 %v668, %v666
          %v747 = vpack.c.b16 %v669, %v667
          %v748 = vpack.c.b16 %v672, %v670
          %v749 = vpack.c.b16 %v673, %v671
          %v750 = vpack.c.b16 %v676, %v674
          %v751 = vpack.c.b16 %v677, %v675
          %v752 = vpack.c.b16 %v680, %v678
          %v753 = vpack.c.b16 %v681, %v679
          %v754 = vpack.c.b16 %v684, %v682
          %v755 = vpack.c.b16 %v685, %v683
          %v756 = vpack.c.b16 %v688, %v686
          %v757 = vpack.c.b16 %v689, %v687
          %v758 = vpack.c.b16 %v692, %v690
          %v759 = vpack.c.b16 %v693, %v691
          %v760 = vpack.c.b16 %v696, %v694
          %v761 = vpack.c.b16 %v697, %v695
          %v762 = vpack.c.b16 %v700, %v698
          %v763 = vpack.c.b16 %v701, %v699
          %v764 = vpack.c.b16 %v704, %v702
          %v765 = vpack.c.b16 %v705, %v703
          %v766 = vpack.c.b16 %v708, %v706
          %v767 = vpack.c.b16 %v709, %v707
          %v768 = vpack.c.b16 %v712, %v710
          %v769 = vpack.c.b16 %v713, %v711
          %v770 = vpack.c.b16 %v716, %v714
          %v771 = vpack.c.b16 %v717, %v715
          %v772 = vpack.c.b16 %v720, %v718
          %v773 = vpack.c.b16 %v721, %v719
          %v774 = vpack.c.b16 %v724, %v722
          %v775 = vpack.c.b16 %v725, %v723
          %v776 = vpack.c.b16 %v728, %v726
          %v777 = vpack.c.b16 %v729, %v727
          %826 = vmatprep.subr.bf16.mxu0 %v745
          %827 = vmatpush1.bf16.msra.mxu0 %v744
          %828 = vmatprep.subr.bf16.mxu0 %v743
          %829 = vmatpush1.bf16.msra.mxu0 %v742
          %830 = vmatprep.subr.bf16.mxu0 %v741
          %831 = vmatpush1.bf16.msra.mxu0 %v740
          %832 = vmatprep.subr.bf16.mxu0 %v739
          %833 = vmatpush1.bf16.msra.mxu0 %v738
          %834 = vmatprep.subr.bf16.mxu0 %v737
          %835 = vmatpush1.bf16.msra.mxu0 %v736
          %836 = vmatprep.subr.bf16.mxu0 %v735
          %837 = vmatpush1.bf16.msra.mxu0 %v734
          %838 = vmatprep.subr.bf16.mxu0 %v733
          %839 = vmatpush1.bf16.msra.mxu0 %v732
          %840 = vmatprep.subr.bf16.mxu0 %v731
          %841 = vmatpush1.bf16.msra.mxu0 %v730
          %842 = vmatprep.subr.bf16.mxu0 %v761
          %843 = vmatpush2.bf16.msra.mxu0 %v760
          %844 = vmatprep.subr.bf16.mxu0 %v759
          %845 = vmatpush2.bf16.msra.mxu0 %v758
          %846 = vmatprep.subr.bf16.mxu0 %v757
          %847 = vmatpush2.bf16.msra.mxu0 %v756
          %848 = vmatprep.subr.bf16.mxu0 %v755
          %849 = vmatpush2.bf16.msra.mxu0 %v754
          %850 = vmatprep.subr.bf16.mxu0 %v753
          %851 = vmatpush2.bf16.msra.mxu0 %v752
          %852 = vmatprep.subr.bf16.mxu0 %v751
          %853 = vmatpush2.bf16.msra.mxu0 %v750
          %854 = vmatprep.subr.bf16.mxu0 %v749
          %855 = vmatpush2.bf16.msra.mxu0 %v748
          %856 = vmatprep.subr.bf16.mxu0 %v747
          %857 = vmatpush2.bf16.msra.mxu0 %v746
          %858 = vmatprep.mubr.bf16.mxu0 %v524
          %859 = vmatmul.mubr.bf16.gmra.mxu0 %v523
          %v860 = vpop.f32.mrf.mxu0
          %v861 = vadd.f32 %v579, %v860
          %v862 = vpop.f32.mrf.mxu0
          %v863 = vadd.f32 %v583, %v862
          %v864 = vpop.f32.mrf.mxu0
          %v865 = vadd.f32 %v579, %v864
          %v866 = vpop.f32.mrf.mxu0
          %v867 = vadd.f32 %v583, %v866
          %868 = vdwg.mxu0
          %869 = vmatprep.subr.bf16.mxu0 %v777
          %870 = vmatpush1.bf16.msra.mxu0 %v776
          %871 = vmatprep.subr.bf16.mxu0 %v775
          %872 = vmatpush1.bf16.msra.mxu0 %v774
          %873 = vmatprep.subr.bf16.mxu0 %v773
          %874 = vmatpush1.bf16.msra.mxu0 %v772
          %875 = vmatprep.subr.bf16.mxu0 %v771
          %876 = vmatpush1.bf16.msra.mxu0 %v770
          %877 = vmatprep.subr.bf16.mxu0 %v769
          %878 = vmatpush1.bf16.msra.mxu0 %v768
          %879 = vmatprep.subr.bf16.mxu0 %v767
          %880 = vmatpush1.bf16.msra.mxu0 %v766
          %881 = vmatprep.subr.bf16.mxu0 %v765
          %882 = vmatpush1.bf16.msra.mxu0 %v764
          %883 = vmatprep.subr.bf16.mxu0 %v763
          %884 = vmatpush1.bf16.msra.mxu0 %v762
          %885 = vmatprep.subr.bf16.mxu0 0
          %886 = vmatpush2.bf16.msra.mxu0 0
          %887 = vmatprep.subr.bf16.mxu0 0
          %888 = vmatpush2.bf16.msra.mxu0 0
          %889 = vmatprep.subr.bf16.mxu0 0
          %890 = vmatpush2.bf16.msra.mxu0 0
          %891 = vmatprep.subr.bf16.mxu0 0
          %892 = vmatpush2.bf16.msra.mxu0 0
          %893 = vmatprep.subr.bf16.mxu0 0
          %894 = vmatpush2.bf16.msra.mxu0 0
          %895 = vmatprep.subr.bf16.mxu0 0
          %896 = vmatpush2.bf16.msra.mxu0 0
          %897 = vmatprep.subr.bf16.mxu0 0
          %898 = vmatpush2.bf16.msra.mxu0 0
          %899 = vmatprep.subr.bf16.mxu0 0
          %900 = vmatpush2.bf16.msra.mxu0 0
          %901 = vmatprep.mubr.bf16.mxu0 0
          %902 = vmatmul.mubr.bf16.gmra.mxu0 %v525
          %v903 = vpop.f32.mrf.mxu0
          %v904 = vadd.f32 %v861, %v903
          %v905 = vpop.f32.mrf.mxu0
          %v906 = vadd.f32 %v863, %v905
          %v907 = vpop.f32.mrf.mxu0
          %v908 = vadd.f32 %v865, %v907
          %v909 = vpop.f32.mrf.mxu0
          %v910 = vadd.f32 %v867, %v909
          %911 = vdwg.mxu0
          %v912 = vmax.f32 %v904, 0.0
          %v913 = vmax.f32 %v906, 0.0
          %v914 = vmax.f32 %v908, 0.0
          %v915 = vmax.f32 %v910, 0.0
          %v916 = vpack.c.bf16 %v914, %v912
          %v917 = vpack.c.bf16 %v915, %v913
          %v918 = vld [vmem:[#allocation12] sm:$0xff]
          %v919 = vld [vmem:[#allocation12 + $0x8] sm:$0xff]
          %v920 = vld [vmem:[#allocation12 + $0x10] sm:$0xff]
          %v921 = vld [vmem:[#allocation12 + $0x18] sm:$0xff]
          %v922 = vld [vmem:[#allocation12 + $0x20] sm:$0xff]
          %v923 = vld [vmem:[#allocation12 + $0x28] sm:$0xff]
          %v924 = vld [vmem:[#allocation12 + $0x30] sm:$0xff]
          %v925 = vld [vmem:[#allocation12 + $0x38] sm:$0xff]
          %v926 = vld [vmem:[#allocation12 + $0x40] sm:$0xff]
          %v927 = vld [vmem:[#allocation12 + $0x48] sm:$0xff]
          %v928 = vld [vmem:[#allocation12 + $0x50] sm:$0xff]
          %v929 = vld [vmem:[#allocation12 + $0x58] sm:$0xff]
          %v930 = vld [vmem:[#allocation12 + $0x60] sm:$0xff]
          %v931 = vld [vmem:[#allocation12 + $0x68] sm:$0xff]
          %v932 = vld [vmem:[#allocation12 + $0x70] sm:$0xff]
          %v933 = vld [vmem:[#allocation12 + $0x78] sm:$0xff]
          %v934 = vld [vmem:[#allocation12 + $0x80] sm:$0xff]
          %v935 = vld [vmem:[#allocation12 + $0x88] sm:$0xff]
          %v936 = vld [vmem:[#allocation12 + $0x90] sm:$0xff]
          %v937 = vld [vmem:[#allocation12 + $0x98] sm:$0xff]
          %v938 = vld [vmem:[#allocation12 + $0xa0] sm:$0xff]
          %v939 = vld [vmem:[#allocation12 + $0xa8] sm:$0xff]
          %v940 = vld [vmem:[#allocation12 + $0xb0] sm:$0xff]
          %v941 = vld [vmem:[#allocation12 + $0xb8] sm:$0xff]
          %v942 = vld [vmem:[#allocation12 + $0xc0] sm:$0xff]
          %v943 = vld [vmem:[#allocation12 + $0xc8] sm:$0xff]
          %v944 = vld [vmem:[#allocation12 + $0xd0] sm:$0xff]
          %v945 = vld [vmem:[#allocation12 + $0xd8] sm:$0xff]
          %v946 = vld [vmem:[#allocation12 + $0xe0] sm:$0xff]
          %v947 = vld [vmem:[#allocation12 + $0xe8] sm:$0xff]
          %v948 = vld [vmem:[#allocation12 + $0xf0] sm:$0xff]
          %v949 = vld [vmem:[#allocation12 + $0xf8] sm:$0xff]
          %v950 = vld [vmem:[%s4] sm:$0x3]
          %v952 = vlaneseq
          %v953 = vshrl.u32 %v952, 7
          %v954 = vsub.s32 0, %v953
          %v955 = vrot.slane %v950, %v954
          %v956 = vlaneseq
          %v957 = vshrl.u32 %v956, 7
          %v958 = vsub.s32 1, %v957
          %v959 = vrot.slane %v950, %v958
          %v994 = vunpack.c.l.b16 %v918
          %v995 = vunpack.c.h.b16 %v918
          %v996 = vunpack.c.l.b16 %v919
          %v997 = vunpack.c.h.b16 %v919
          %v998 = vunpack.c.l.b16 %v920
          %v999 = vunpack.c.h.b16 %v920
          %v1000 = vunpack.c.l.b16 %v921
          %v1001 = vunpack.c.h.b16 %v921
          %v1002 = vunpack.c.l.b16 %v922
          %v1003 = vunpack.c.h.b16 %v922
          %v1004 = vunpack.c.l.b16 %v923
          %v1005 = vunpack.c.h.b16 %v923
          %v1006 = vunpack.c.l.b16 %v924
          %v1007 = vunpack.c.h.b16 %v924
          %v1008 = vunpack.c.l.b16 %v925
          %v1009 = vunpack.c.h.b16 %v925
          %v1010 = vunpack.c.l.b16 %v926
          %v1011 = vunpack.c.h.b16 %v926
          %v1012 = vunpack.c.l.b16 %v927
          %v1013 = vunpack.c.h.b16 %v927
          %v1014 = vunpack.c.l.b16 %v928
          %v1015 = vunpack.c.h.b16 %v928
          %v1016 = vunpack.c.l.b16 %v929
          %v1017 = vunpack.c.h.b16 %v929
          %v1018 = vunpack.c.l.b16 %v930
          %v1019 = vunpack.c.h.b16 %v930
          %v1020 = vunpack.c.l.b16 %v931
          %v1021 = vunpack.c.h.b16 %v931
          %v1022 = vunpack.c.l.b16 %v932
          %v1023 = vunpack.c.h.b16 %v932
          %v1024 = vunpack.c.l.b16 %v933
          %v1025 = vunpack.c.h.b16 %v933
          %v1026 = vunpack.c.l.b16 %v934
          %v1027 = vunpack.c.h.b16 %v934
          %v1028 = vunpack.c.l.b16 %v935
          %v1029 = vunpack.c.h.b16 %v935
          %v1030 = vunpack.c.l.b16 %v936
          %v1031 = vunpack.c.h.b16 %v936
          %v1032 = vunpack.c.l.b16 %v937
          %v1033 = vunpack.c.h.b16 %v937
          %v1034 = vunpack.c.l.b16 %v938
          %v1035 = vunpack.c.h.b16 %v938
          %v1036 = vunpack.c.l.b16 %v939
          %v1037 = vunpack.c.h.b16 %v939
          %v1038 = vunpack.c.l.b16 %v940
          %v1039 = vunpack.c.h.b16 %v940
          %v1040 = vunpack.c.l.b16 %v941
          %v1041 = vunpack.c.h.b16 %v941
          %v1042 = vunpack.c.l.b16 %v942
          %v1043 = vunpack.c.h.b16 %v942
          %v1044 = vunpack.c.l.b16 %v943
          %v1045 = vunpack.c.h.b16 %v943
          %v1046 = vunpack.c.l.b16 %v944
          %v1047 = vunpack.c.h.b16 %v944
          %v1048 = vunpack.c.l.b16 %v945
          %v1049 = vunpack.c.h.b16 %v945
          %v1050 = vunpack.c.l.b16 %v946
          %v1051 = vunpack.c.h.b16 %v946
          %v1052 = vunpack.c.l.b16 %v947
          %v1053 = vunpack.c.h.b16 %v947
          %v1054 = vunpack.c.l.b16 %v948
          %v1055 = vunpack.c.h.b16 %v948
          %v1056 = vunpack.c.l.b16 %v949
          %v1057 = vunpack.c.h.b16 %v949
          %v1058 = vpack.c.b16 %v996, %v994
          %v1059 = vpack.c.b16 %v997, %v995
          %v1060 = vpack.c.b16 %v1000, %v998
          %v1061 = vpack.c.b16 %v1001, %v999
          %v1062 = vpack.c.b16 %v1004, %v1002
          %v1063 = vpack.c.b16 %v1005, %v1003
          %v1064 = vpack.c.b16 %v1008, %v1006
          %v1065 = vpack.c.b16 %v1009, %v1007
          %v1066 = vpack.c.b16 %v1012, %v1010
          %v1067 = vpack.c.b16 %v1013, %v1011
          %v1068 = vpack.c.b16 %v1016, %v1014
          %v1069 = vpack.c.b16 %v1017, %v1015
          %v1070 = vpack.c.b16 %v1020, %v1018
          %v1071 = vpack.c.b16 %v1021, %v1019
          %v1072 = vpack.c.b16 %v1024, %v1022
          %v1073 = vpack.c.b16 %v1025, %v1023
          %v1074 = vpack.c.b16 %v1028, %v1026
          %v1075 = vpack.c.b16 %v1029, %v1027
          %v1076 = vpack.c.b16 %v1032, %v1030
          %v1077 = vpack.c.b16 %v1033, %v1031
          %v1078 = vpack.c.b16 %v1036, %v1034
          %v1079 = vpack.c.b16 %v1037, %v1035
          %v1080 = vpack.c.b16 %v1040, %v1038
          %v1081 = vpack.c.b16 %v1041, %v1039
          %v1082 = vpack.c.b16 %v1044, %v1042
          %v1083 = vpack.c.b16 %v1045, %v1043
          %v1084 = vpack.c.b16 %v1048, %v1046
          %v1085 = vpack.c.b16 %v1049, %v1047
          %v1086 = vpack.c.b16 %v1052, %v1050
          %v1087 = vpack.c.b16 %v1053, %v1051
          %v1088 = vpack.c.b16 %v1056, %v1054
          %v1089 = vpack.c.b16 %v1057, %v1055
          %1122 = vmatprep.subr.bf16.mxu0 %v1073
          %1123 = vmatpush1.bf16.msra.mxu0 %v1072
          %1124 = vmatprep.subr.bf16.mxu0 %v1071
          %1125 = vmatpush1.bf16.msra.mxu0 %v1070
          %1126 = vmatprep.subr.bf16.mxu0 %v1069
          %1127 = vmatpush1.bf16.msra.mxu0 %v1068
          %1128 = vmatprep.subr.bf16.mxu0 %v1067
          %1129 = vmatpush1.bf16.msra.mxu0 %v1066
          %1130 = vmatprep.subr.bf16.mxu0 %v1065
          %1131 = vmatpush1.bf16.msra.mxu0 %v1064
          %1132 = vmatprep.subr.bf16.mxu0 %v1063
          %1133 = vmatpush1.bf16.msra.mxu0 %v1062
          %1134 = vmatprep.subr.bf16.mxu0 %v1061
          %1135 = vmatpush1.bf16.msra.mxu0 %v1060
          %1136 = vmatprep.subr.bf16.mxu0 %v1059
          %1137 = vmatpush1.bf16.msra.mxu0 %v1058
          %1138 = vmatprep.subr.bf16.mxu0 %v1089
          %1139 = vmatpush2.bf16.msra.mxu0 %v1088
          %1140 = vmatprep.subr.bf16.mxu0 %v1087
          %1141 = vmatpush2.bf16.msra.mxu0 %v1086
          %1142 = vmatprep.subr.bf16.mxu0 %v1085
          %1143 = vmatpush2.bf16.msra.mxu0 %v1084
          %1144 = vmatprep.subr.bf16.mxu0 %v1083
          %1145 = vmatpush2.bf16.msra.mxu0 %v1082
          %1146 = vmatprep.subr.bf16.mxu0 %v1081
          %1147 = vmatpush2.bf16.msra.mxu0 %v1080
          %1148 = vmatprep.subr.bf16.mxu0 %v1079
          %1149 = vmatpush2.bf16.msra.mxu0 %v1078
          %1150 = vmatprep.subr.bf16.mxu0 %v1077
          %1151 = vmatpush2.bf16.msra.mxu0 %v1076
          %1152 = vmatprep.subr.bf16.mxu0 %v1075
          %1153 = vmatpush2.bf16.msra.mxu0 %v1074
          %1154 = vmatprep.mubr.bf16.mxu0 %v917
          %1155 = vmatmul.mubr.bf16.gmra.mxu0 %v916
          %v1156 = vpop.f32.mrf.mxu0
          %v1157 = vadd.f32 %v955, %v1156
          %v1158 = vpop.f32.mrf.mxu0
          %v1159 = vadd.f32 %v959, %v1158
          %v1160 = vpop.f32.mrf.mxu0
          %v1161 = vadd.f32 %v955, %v1160
          %v1162 = vpop.f32.mrf.mxu0
          %v1163 = vadd.f32 %v959, %v1162
          %1164 = vdwg.mxu0
          %v1165 = vpack.c.bf16 %v1161, %v1157
          %v1166 = vpack.c.bf16 %v1163, %v1159
          %v1169 = vunpack.c.l.b16 %v1165
          %v1170 = vunpack.c.l.b16 %v1166
          %v1171 = vunpack.c.h.b16 %v1165
          %v1172 = vunpack.c.h.b16 %v1166
          %v1173 = vpack.c.b16 %v1170, %v1169
          %v1174 = vpack.c.b16 %v1172, %v1171
          %s1177 = sshra.s32 %s463, 3
          %s1178 = sand.u32 %s463, 7
          %s1179 = smul.u32 %s1177, 2
          %s1180 = smul.addr %s1179, 4
          %s1181 = scalar_lea.vmem [#allocation2], %s1180
          %1182 = vst [vmem:[%s1181] sm:$0xff] %v1173
          %1183 = vst [vmem:[%s1181 + $0x8] sm:$0xff] %v1174
          %v1184 = vld [vmem:[#allocation4] sm:$0x3]
          %v1185 = vadd.f32 %v1157, %v1161
          %v1186 = vrot.slane %v1185, 4
          %v1187 = vadd.f32 %v1185, %v1186
          %v1188 = vrot.slane %v1187, 2
          %v1189 = vadd.f32 %v1187, %v1188
          %v1190 = vrot.slane %v1189, 1
          %v1191 = vadd.f32 %v1189, %v1190
          %v1192 = vadd.f32 %v1159, %v1163
          %v1193 = vrot.slane %v1192, 4
          %v1194 = vadd.f32 %v1192, %v1193
          %v1195 = vrot.slane %v1194, 2
          %v1196 = vadd.f32 %v1194, %v1195
          %v1197 = vrot.slane %v1196, 1
          %v1198 = vadd.f32 %v1196, %v1197
          %v1201 = vcombine.low %v1191, %v1198
          %v1203 = vunpack.c.l.s4 1966171168
          %v1204 = vunpack.c.0.s8 %v1203
          %v1205 = vlaneseq
          %v1206 = vshrl.u32 %v1205, 7
          %v1207 = vsub.s32 %v1204, %v1206
          %v1208 = vrot.slane %v1201, %v1207
          %v1210 = vunpack.c.l.s4 1966171168
          %v1211 = vunpack.c.0.s8 %v1210
          %v1212 = vlaneseq
          %v1213 = vshrl.u32 %v1212, 7
          %v1214 = vsub.s32 %v1211, %v1213
          %v1215 = vrot.slane %v1208, %v1214
          %v1217 = vadd.f32 %v1184, %v1215
          %v1218 = vlaneseq
          %vm1219 = vcmp.ge.s32.totalorder %v1218, 0
          %vm1220 = vcmp.lt.s32.totalorder %v1218, 256
          %vm1221 = vmand %vm1219, %vm1220
          %1222 = vst.msk [vmem:[#allocation4] sm:$0x3] %vm1221, %v1217
          %v1223 = vld [vmem:[#allocation5] sm:$0x3]
          %v1224 = vmul.f32 %v1157, %v1157
          %v1225 = vmul.f32 %v1159, %v1159
          %v1226 = vmul.f32 %v1161, %v1161
          %v1227 = vmul.f32 %v1163, %v1163
          %v1228 = vadd.f32 %v1224, %v1226
          %v1229 = vrot.slane %v1228, 4
          %v1230 = vadd.f32 %v1228, %v1229
          %v1231 = vrot.slane %v1230, 2
          %v1232 = vadd.f32 %v1230, %v1231
          %v1233 = vrot.slane %v1232, 1
          %v1234 = vadd.f32 %v1232, %v1233
          %v1235 = vadd.f32 %v1225, %v1227
          %v1236 = vrot.slane %v1235, 4
          %v1237 = vadd.f32 %v1235, %v1236
          %v1238 = vrot.slane %v1237, 2
          %v1239 = vadd.f32 %v1237, %v1238
          %v1240 = vrot.slane %v1239, 1
          %v1241 = vadd.f32 %v1239, %v1240
          %v1244 = vcombine.low %v1234, %v1241
          %v1246 = vunpack.c.l.s4 1966171168
          %v1247 = vunpack.c.0.s8 %v1246
          %v1248 = vlaneseq
          %v1249 = vshrl.u32 %v1248, 7
          %v1250 = vsub.s32 %v1247, %v1249
          %v1251 = vrot.slane %v1244, %v1250
          %v1253 = vunpack.c.l.s4 1966171168
          %v1254 = vunpack.c.0.s8 %v1253
          %v1255 = vlaneseq
          %v1256 = vshrl.u32 %v1255, 7
          %v1257 = vsub.s32 %v1254, %v1256
          %v1258 = vrot.slane %v1251, %v1257
          %v1260 = vadd.f32 %v1223, %v1258
          %1261 = vst.msk [vmem:[#allocation5] sm:$0x3] %vm1221, %v1260
        $region84: #{tpu_custom_call.1} parent=59 // pred_fallthru
          _
        %p1262 = scmp.eq.s32.totalorder %s34, 1
        // Predicated region
        $region89: #{tpu_custom_call.1} parent=59 // pred_check
          %p1263 = pneg %p1262
        $region90: #{tpu_custom_call.1} parent=59 // pred_check_branch
          %1265 = sbr.rel (%p1263) target = $region92
        $region91: #{tpu_custom_call.1} parent=59 // pred_region
          %v1266 = vld [vmem:[#allocation4] sm:$0x3]
          %v1267 = vmul.f32 %v1266, 0.0625
          %v1268 = vld [vmem:[#allocation5] sm:$0x3]
          %v1269 = vmul.f32 %v1268, 0.0625
          %v1270 = vmul.f32 %v1267, %v1267
          %v1271 = vsub.f32 %v1269, %v1270
          %v1272 = vmax.f32 %v1271, 0.0
          %v1273 = vld [vmem:[%s5] sm:$0x3]
          %v1274 = vadd.f32 %v1272, 1e-05
          %v1275 = vrsqrt.pop %v1274
          %v1276 = vmul.f32 %v1273, %v1275
          %v1277 = vld [vmem:[%s6] sm:$0x3]
          %v1278 = vmul.f32 %v1267, %v1276
          %v1279 = vsub.f32 %v1277, %v1278
          %s1280 = sshra.s32 %s463, 3
          %s1281 = sand.u32 %s463, 7
          %s1282 = smul.u32 %s1280, 2
          %s1283 = smul.addr %s1282, 4
          %s1284 = scalar_lea.vmem [#allocation2], %s1283
          %v1285 = vld [vmem:[%s1284] sm:$0xff]
          %v1286 = vld [vmem:[%s1284 + $0x8] sm:$0xff]
          %v1287 = vunpack.c.l.bf16 %v1285
          %v1288 = vunpack.c.h.bf16 %v1285
          %v1289 = vunpack.c.l.bf16 %v1286
          %v1290 = vunpack.c.h.bf16 %v1286
          %v1292 = vlaneseq
          %v1293 = vshrl.u32 %v1292, 7
          %v1294 = vsub.s32 0, %v1293
          %v1295 = vrot.slane %v1276, %v1294
          %v1296 = vlaneseq
          %v1297 = vshrl.u32 %v1296, 7
          %v1298 = vsub.s32 1, %v1297
          %v1299 = vrot.slane %v1276, %v1298
          %v1302 = vmul.f32 %v1287, %v1295
          %v1303 = vmul.f32 %v1288, %v1299
          %v1304 = vmul.f32 %v1289, %v1295
          %v1305 = vmul.f32 %v1290, %v1299
          %v1307 = vlaneseq
          %v1308 = vshrl.u32 %v1307, 7
          %v1309 = vsub.s32 0, %v1308
          %v1310 = vrot.slane %v1279, %v1309
          %v1311 = vlaneseq
          %v1312 = vshrl.u32 %v1311, 7
          %v1313 = vsub.s32 1, %v1312
          %v1314 = vrot.slane %v1279, %v1313
          %v1317 = vadd.f32 %v1302, %v1310
          %v1318 = vadd.f32 %v1303, %v1314
          %v1319 = vadd.f32 %v1304, %v1310
          %v1320 = vadd.f32 %v1305, %v1314
          %v1321 = vmax.f32 %v1317, 0.0
          %v1322 = vmax.f32 %v1318, 0.0
          %v1323 = vmax.f32 %v1319, 0.0
          %v1324 = vmax.f32 %v1320, 0.0
          %v1325 = vpack.c.bf16 %v1323, %v1321
          %v1326 = vpack.c.bf16 %v1324, %v1322
          %v1327 = vld [vmem:[#allocation13] sm:$0xf]
          %v1328 = vld [vmem:[#allocation13 + $0x4] sm:$0xf]
          %v1329 = vld [vmem:[#allocation13 + $0x8] sm:$0xf]
          %v1330 = vld [vmem:[#allocation13 + $0xc] sm:$0xf]
          %v1331 = vld [vmem:[#allocation13 + $0x10] sm:$0xf]
          %v1332 = vld [vmem:[#allocation13 + $0x14] sm:$0xf]
          %v1333 = vld [vmem:[#allocation13 + $0x18] sm:$0xf]
          %v1334 = vld [vmem:[#allocation13 + $0x1c] sm:$0xf]
          %v1335 = vld [vmem:[#allocation13 + $0x20] sm:$0xf]
          %v1336 = vld [vmem:[#allocation13 + $0x24] sm:$0xf]
          %v1337 = vld [vmem:[#allocation13 + $0x28] sm:$0xf]
          %v1338 = vld [vmem:[#allocation13 + $0x2c] sm:$0xf]
          %v1339 = vld [vmem:[#allocation13 + $0x30] sm:$0xf]
          %v1340 = vld [vmem:[#allocation13 + $0x34] sm:$0xf]
          %v1341 = vld [vmem:[#allocation13 + $0x38] sm:$0xf]
          %v1342 = vld [vmem:[#allocation13 + $0x3c] sm:$0xf]
          %v1343 = vld [vmem:[#allocation13 + $0x40] sm:$0xf]
          %v1344 = vld [vmem:[#allocation13 + $0x44] sm:$0xf]
          %v1345 = vld [vmem:[#allocation13 + $0x48] sm:$0xf]
          %v1346 = vld [vmem:[#allocation13 + $0x4c] sm:$0xf]
          %v1347 = vld [vmem:[#allocation13 + $0x50] sm:$0xf]
          %v1348 = vld [vmem:[#allocation13 + $0x54] sm:$0xf]
          %v1349 = vld [vmem:[#allocation13 + $0x58] sm:$0xf]
          %v1350 = vld [vmem:[#allocation13 + $0x5c] sm:$0xf]
          %v1351 = vld [vmem:[#allocation13 + $0x60] sm:$0xf]
          %v1352 = vld [vmem:[#allocation13 + $0x64] sm:$0xf]
          %v1353 = vld [vmem:[#allocation13 + $0x68] sm:$0xf]
          %v1354 = vld [vmem:[#allocation13 + $0x6c] sm:$0xf]
          %v1355 = vld [vmem:[#allocation13 + $0x70] sm:$0xf]
          %v1356 = vld [vmem:[#allocation13 + $0x74] sm:$0xf]
          %v1357 = vld [vmem:[#allocation13 + $0x78] sm:$0xf]
          %v1358 = vld [vmem:[#allocation13 + $0x7c] sm:$0xf]
          %v1359 = vld [vmem:[%s8] sm:$0x1]
          %v1361 = vlaneseq
          %v1362 = vshrl.u32 %v1361, 7
          %v1363 = vsub.s32 0, %v1362
          %v1364 = vrot.slane %v1359, %v1363
          %v1398 = vunpack.c.l.b16 %v1327
          %v1399 = vunpack.c.l.b16 %v1328
          %v1400 = vunpack.c.l.b16 %v1329
          %v1401 = vunpack.c.l.b16 %v1330
          %v1402 = vunpack.c.l.b16 %v1331
          %v1403 = vunpack.c.l.b16 %v1332
          %v1404 = vunpack.c.l.b16 %v1333
          %v1405 = vunpack.c.l.b16 %v1334
          %v1406 = vunpack.c.l.b16 %v1335
          %v1407 = vunpack.c.l.b16 %v1336
          %v1408 = vunpack.c.l.b16 %v1337
          %v1409 = vunpack.c.l.b16 %v1338
          %v1410 = vunpack.c.l.b16 %v1339
          %v1411 = vunpack.c.l.b16 %v1340
          %v1412 = vunpack.c.l.b16 %v1341
          %v1413 = vunpack.c.l.b16 %v1342
          %v1414 = vunpack.c.l.b16 %v1343
          %v1415 = vunpack.c.l.b16 %v1344
          %v1416 = vunpack.c.l.b16 %v1345
          %v1417 = vunpack.c.l.b16 %v1346
          %v1418 = vunpack.c.l.b16 %v1347
          %v1419 = vunpack.c.l.b16 %v1348
          %v1420 = vunpack.c.l.b16 %v1349
          %v1421 = vunpack.c.l.b16 %v1350
          %v1422 = vunpack.c.l.b16 %v1351
          %v1423 = vunpack.c.l.b16 %v1352
          %v1424 = vunpack.c.l.b16 %v1353
          %v1425 = vunpack.c.l.b16 %v1354
          %v1426 = vunpack.c.l.b16 %v1355
          %v1427 = vunpack.c.l.b16 %v1356
          %v1428 = vunpack.c.l.b16 %v1357
          %v1429 = vunpack.c.l.b16 %v1358
          %v1430 = vpack.c.b16 %v1399, %v1398
          %v1431 = vpack.c.b16 %v1401, %v1400
          %v1432 = vpack.c.b16 %v1403, %v1402
          %v1433 = vpack.c.b16 %v1405, %v1404
          %v1434 = vpack.c.b16 %v1407, %v1406
          %v1435 = vpack.c.b16 %v1409, %v1408
          %v1436 = vpack.c.b16 %v1411, %v1410
          %v1437 = vpack.c.b16 %v1413, %v1412
          %v1438 = vpack.c.b16 %v1415, %v1414
          %v1439 = vpack.c.b16 %v1417, %v1416
          %v1440 = vpack.c.b16 %v1419, %v1418
          %v1441 = vpack.c.b16 %v1421, %v1420
          %v1442 = vpack.c.b16 %v1423, %v1422
          %v1443 = vpack.c.b16 %v1425, %v1424
          %v1444 = vpack.c.b16 %v1427, %v1426
          %v1445 = vpack.c.b16 %v1429, %v1428
          %1462 = vmatprep.subr.bf16.mxu0 0
          %1463 = vmatpush1.bf16.msra.mxu0 %v1437
          %1464 = vmatprep.subr.bf16.mxu0 0
          %1465 = vmatpush1.bf16.msra.mxu0 %v1436
          %1466 = vmatprep.subr.bf16.mxu0 0
          %1467 = vmatpush1.bf16.msra.mxu0 %v1435
          %1468 = vmatprep.subr.bf16.mxu0 0
          %1469 = vmatpush1.bf16.msra.mxu0 %v1434
          %1470 = vmatprep.subr.bf16.mxu0 0
          %1471 = vmatpush1.bf16.msra.mxu0 %v1433
          %1472 = vmatprep.subr.bf16.mxu0 0
          %1473 = vmatpush1.bf16.msra.mxu0 %v1432
          %1474 = vmatprep.subr.bf16.mxu0 0
          %1475 = vmatpush1.bf16.msra.mxu0 %v1431
          %1476 = vmatprep.subr.bf16.mxu0 0
          %1477 = vmatpush1.bf16.msra.mxu0 %v1430
          %1478 = vmatprep.subr.bf16.mxu0 0
          %1479 = vmatpush2.bf16.msra.mxu0 %v1445
          %1480 = vmatprep.subr.bf16.mxu0 0
          %1481 = vmatpush2.bf16.msra.mxu0 %v1444
          %1482 = vmatprep.subr.bf16.mxu0 0
          %1483 = vmatpush2.bf16.msra.mxu0 %v1443
          %1484 = vmatprep.subr.bf16.mxu0 0
          %1485 = vmatpush2.bf16.msra.mxu0 %v1442
          %1486 = vmatprep.subr.bf16.mxu0 0
          %1487 = vmatpush2.bf16.msra.mxu0 %v1441
          %1488 = vmatprep.subr.bf16.mxu0 0
          %1489 = vmatpush2.bf16.msra.mxu0 %v1440
          %1490 = vmatprep.subr.bf16.mxu0 0
          %1491 = vmatpush2.bf16.msra.mxu0 %v1439
          %1492 = vmatprep.subr.bf16.mxu0 0
          %1493 = vmatpush2.bf16.msra.mxu0 %v1438
          %1494 = vmatprep.mubr.bf16.mxu0 %v1326
          %1495 = vmatmul.mubr.bf16.gmra.mxu0 %v1325
          %v1496 = vpop.f32.mrf.mxu0
          %v1497 = vadd.f32 %v1364, %v1496
          %v1498 = vpop.f32.mrf.mxu0
          %v1499 = vpop.f32.mrf.mxu0
          %v1500 = vadd.f32 %v1364, %v1499
          %v1501 = vpop.f32.mrf.mxu0
          %1502 = vdwg.mxu0
          %s1503 = scalar_lea.vmem [#allocation3], %s463
          %v1504 = vld [vmem:[%s1503] sm:$0xff]
          %v1505 = vld [vmem:[%s1503 + $0x8] sm:$0xff]
          %s1506 = sld [smem:[#allocation15]]
          %v1507 = vstv %s1506
          %v1508 = vmul.f32 %v1507, %v1504
          %v1509 = vmul.f32 %v1507, %v1505
          %s1510 = sld [smem:[#allocation15 + $0x1]]
          %v1511 = vmul.f32 %v1497, %v1497
          %v1512 = vmul.f32 %v1500, %v1500
          %1513 = vadd.xlane.f32.xlu0 %v1511
          %v1514 = vpop.xlane.xlu0 %1513
          %1515 = vadd.xlane.f32.xlu0 %v1512
          %v1516 = vpop.xlane.xlu0 %1515
          %v1517 = vmax.f32 %v1514, 1e-30
          %v1518 = vmax.f32 %v1516, 1e-30
          %v1519 = vrsqrt.pop %v1517
          %v1520 = vrsqrt.pop %v1518
          %v1521 = vmul.f32 %v1497, %v1519
          %v1522 = vmul.f32 %v1500, %v1520
          %v1523 = vstv %s1510
          %v1524 = vmul.f32 %v1523, %v1521
          %v1525 = vmul.f32 %v1523, %v1522
          %v1526 = vadd.f32 %v1508, %v1524
          %v1527 = vadd.f32 %v1509, %v1525
          %1528 = vst [vmem:[%s456] sm:$0xff] %v1526
          %1529 = vst [vmem:[%s456 + $0x8] sm:$0xff] %v1527
        $region92: #{tpu_custom_call.1} parent=59 // pred_fallthru
          _
        %s1530 = sand.u32 %s271, 1
        %s1531 = scalar_lea.sflag [#allocation8], %s1530
        %s1532 = sand.u32 %s271, 1
        %s1533 = smul.addr %s1532, 16
        %s1534 = scalar_lea.vmem [#allocation16], %s1533
        // Predicated region
        $region93: #{tpu_custom_call.1} parent=59 // pred_check
          %p1535 = pneg %p281
        $region94: #{tpu_custom_call.1} parent=59 // pred_check_branch
          %1537 = sbr.rel (%p1535) target = $region96
        $region95: #{tpu_custom_call.1} parent=59 // pred_region
          %s1538 = smul.u32 %s35, %s34
          %s1539 = smul.u32 2, %s1538
          %s1541 = ssub.s32 256, 256
          %1542 = vsyncadd %s1531, %s1541
          %s1543 = smul.addr %s1539, 128
          %s1544 = scalar_lea.hbm %s10, %s1543
          %s1545 = sshll.u32 %s1534, 4
          %s1546 = int_to_ptr.vmem [resolvable:$true] %s1545
          %1551 = dma.vmem_to_hbm [thread:$0]  %s1546, 256, %s1544, %s1531, 128, 128, 8
        $region96: #{tpu_custom_call.1} parent=59 // pred_fallthru
          _
      $region60: #{tpu_custom_call.1} parent=5 // pred_fallthru
        _
      %p1552 = scmp.le.s32.totalorder 2, %s25
      // Predicated region
      $region97: #{tpu_custom_call.1} parent=5 // pred_check
        %p1553 = pneg %p1552
      $region98: #{tpu_custom_call.1} parent=5 // pred_check_branch
        %1555 = sbr.rel (%p1553) target = $region100
      $region99: #{tpu_custom_call.1} parent=5 // pred_region
        %s1556 = ssub.s32 %s25, 2
        // Predicated region
        $region101: #{tpu_custom_call.1} parent=99 // pred_check
          %p1557 = pneg %p287
        $region102: #{tpu_custom_call.1} parent=99 // pred_check_branch
          %1559 = sbr.rel (%p1557) target = $region104
        $region103: #{tpu_custom_call.1} parent=99 // pred_region
          %s1560 = sand.u32 %s272, 1
          %s1561 = scalar_lea.sflag [#allocation8], %s1560
          %s1562 = sand.u32 %s272, 1
          %s1563 = smul.addr %s1562, 16
          %s1564 = scalar_lea.vmem [#allocation16], %s1563
          %1565 = dma.done %s1561, 256
        $region104: #{tpu_custom_call.1} parent=99 // pred_fallthru
          _
      $region100: #{tpu_custom_call.1} parent=5 // pred_fallthru
        _
    $region6: #{tpu_custom_call.1} parent=1 // loop_footer
      %s29 = sadd.s32 1, %s25
    $region7: #{tpu_custom_call.1} parent=1 // loop_footer_branch
      %24 = sbr.rel target = $region3
    $region8: #{tpu_custom_call.1} parent=1 // loop_exit
      _
    %1566 = vsyncpa [#allocation7], 1
    %s1567 = scalar_lea.sflag [#allocation7], 1
    %1568 = vsyncpa %s1567, 1
    %1569 = vsyncpa [#allocation11], 1
    %1570 = vsyncpa [#allocation14], 1
    %1571 = vsyncpa [#allocation8], 1
    %s1572 = scalar_lea.sflag [#allocation8], 1
    %1573 = vsyncpa %s1572, 1
    %1574 = vsyncpa [#allocation9], 1
    %s1575 = scalar_lea.sflag [#allocation9], 1
    %1576 = vsyncpa %s1575, 1

// kernel: tpu_custom_call.1
$region0: #{tpu_custom_call.1}
  #allocation0 [shape = 'u32[]', space=smem, size = 0x4, offset = 0x4, fixed_abs, tag = 'smem constant byte address 0x4 - core index']
  #allocation1 [shape = 'u32[144,128]{1,0:T(1,128)}', space=vmem, size = 0x12000, scoped, tag = 'internal scratch']
  #allocation2 [shape = 'bf16[16,256]{1,0:T(8,128)(2,1)}', space=vmem, size = 0x2000, scoped, tag = 'scratch operand']
  #allocation3 [shape = 'f32[16,128]{1,0:T(8,128)}', space=vmem, size = 0x2000, scoped, tag = 'scratch operand']
  #allocation4 [shape = 'f32[1,256]{1,0:T(1,128)}', space=vmem, size = 0x400, scoped, tag = 'scratch operand']
  #allocation5 [shape = 'f32[1,256]{1,0:T(1,128)}', space=vmem, size = 0x400, scoped, tag = 'scratch operand']
  %s0 = inlined_call_operand.hbm [shape: f32[16,384], index: 0, kind: input, shape index: {}]
  %s1 = inlined_call_operand.hbm [shape: bf16[384,256], index: 1, kind: input, shape index: {}]
  %s2 = inlined_call_operand.vmem [shape: f32[1,256], index: 2, kind: input, shape index: {}]
  %s3 = inlined_call_operand.hbm [shape: bf16[256,256], index: 3, kind: input, shape index: {}]
  %s4 = inlined_call_operand.vmem [shape: f32[1,256], index: 4, kind: input, shape index: {}]
  %s5 = inlined_call_operand.vmem [shape: f32[1,256], index: 5, kind: input, shape index: {}]
  %s6 = inlined_call_operand.vmem [shape: f32[1,256], index: 6, kind: input, shape index: {}]
  %s7 = inlined_call_operand.hbm [shape: bf16[256,128], index: 7, kind: input, shape index: {}]
  %s8 = inlined_call_operand.vmem [shape: f32[1,128], index: 8, kind: input, shape index: {}]
  %s9 = inlined_call_operand.vmem [shape: f32[2], index: 9, kind: input, shape index: {}]
  %s10 = inlined_call_operand.hbm [shape: f32[16,128], index: 10, kind: output, shape index: {}]
  %s11 = sld [smem:[#allocation0]]
  $region105: #{tpu_custom_call.1} parent=0
    _
  %s13 = ssub.s32 1, %s11
  %s14 = scalar_select 0, %s13, %s11
  $region1: #{tpu_custom_call.1} parent=0
    #allocation6 [shape = 'u8[49152]{0}', space=vmem, size = 0xc000, scoped, tag = 'input window, operand 0']
    #allocation7 [shape = 's32[2]{0}', space=sflag, size = 0x8, scoped, tag = 'scoped memory for tpu_custom_call.1']
    #allocation8 [shape = 's32[2]{0}', space=sflag, size = 0x8, scoped, tag = 'scoped memory for tpu_custom_call.1']
    #allocation9 [shape = 's32[2]{0}', space=sflag, size = 0x8, scoped, tag = 'scoped memory for tpu_custom_call.1']
    #allocation10 [shape = 'u8[196608]{0}', space=vmem, size = 0x30000, scoped, tag = 'input window, operand 1, single buffered']
    #allocation11 [shape = 's32[1]{0}', space=sflag, size = 0x4, scoped, tag = 'scoped memory for tpu_custom_call.1']
    #allocation12 [shape = 'u8[131072]{0}', space=vmem, size = 0x20000, scoped, tag = 'input window, operand 3, single buffered']
    #allocation13 [shape = 'u8[65536]{0}', space=vmem, size = 0x10000, scoped, tag = 'input window, operand 7, single buffered']
    #allocation14 [shape = 's32[1]{0}', space=sflag, size = 0x4, scoped, tag = 'scoped memory for tpu_custom_call.1']
    #allocation15 [shape = 'u8[512]{0}', space=smem, size = 0x200, scoped, tag = 'input window, operand 9, single buffered']
    #allocation16 [shape = 'u8[16384]{0}', space=vmem, size = 0x4000, scoped, tag = 'output window, operand 0']
    %15 = vsyncpa [#allocation7], 0
    %s16 = scalar_lea.sflag [#allocation7], 1
    %17 = vsyncpa %s16, 0
    %18 = vsyncpa [#allocation11], 0
    %19 = vsyncpa [#allocation14], 0
    %20 = vsyncpa [#allocation9], 0
    %21 = vsyncpa [#allocation8], 0
    %s22 = scalar_lea.sflag [#allocation8], 1
    %23 = vsyncpa %s22, 0
    loop: start=0, step=1, limit=4
    $region2: #{tpu_custom_call.1} parent=1 // loop_pre_header
      _
    $region3: #{tpu_custom_call.1} parent=1 // loop_header
      %s25 = sphi 0, %s29
      %p26 = scmp.ge.s32.totalorder %s25, 4
      %s32 = sphi 0, %s44
      %s33 = sphi 0, %s40
      %s34 = sphi 0, %s32
      %s35 = sphi 0, %s33
      %s36 = sphi 0, %s34
      %s37 = sphi 0, %s35
      %s51 = sphi 0, %s53
      %s54 = sphi 0, %s51
      %s55 = sphi 0, %s54
      %s71 = sphi 0, %s55
      %s75 = sphi 0, %s75
      %s77 = sphi 0, %s75
      %s78 = sphi 0, %s77
      %s92 = sphi 0, %s78
      %s96 = sphi 0, %s96
      %s98 = sphi 0, %s96
      %s99 = sphi 0, %s98
      %s113 = sphi 0, %s99
      %s117 = sphi 0, %s117
      %s119 = sphi 0, %s117
      %s120 = sphi 0, %s119
      %s134 = sphi 0, %s120
      %s138 = sphi 0, %s138
      %s140 = sphi 0, %s138
      %s141 = sphi 0, %s140
      %s155 = sphi 0, %s141
      %s159 = sphi 0, %s159
      %s161 = sphi 0, %s159
      %s162 = sphi 0, %s161
      %s176 = sphi 0, %s162
      %s180 = sphi 0, %s180
      %s182 = sphi 0, %s180
      %s183 = sphi 0, %s182
      %s197 = sphi 0, %s183
      %s201 = sphi 0, %s201
      %s203 = sphi 0, %s201
      %s204 = sphi 0, %s203
      %s218 = sphi 0, %s204
      %s222 = sphi 0, %s222
      %s224 = sphi 0, %s222
      %s225 = sphi 0, %s224
      %s239 = sphi 0, %s225
      %s243 = sphi 0, %s243
      %s245 = sphi 0, %s243
      %s246 = sphi 0, %s245
      %s260 = sphi 0, %s246
      %s268 = sphi 0, %s270
      %s271 = sphi 0, %s268
      %s272 = sphi 0, %s271
      %s288 = sphi 0, %s272
    $region4: #{tpu_custom_call.1} parent=1 // loop_header_branch
      %28 = sbr.rel (%p26) target = $region8
    $region5: #{tpu_custom_call.1} parent=1 // loop_body
      %s30 = ssub.s32 %s25, 1
      %s31 = ssub.s32 %s25, 2
      %s38 = sadd.s32 1, %s33
      %p39 = scmp.ge.s32.totalorder %s38, 1
      %s40 = scalar_select %p39, 0, %s38
      %s41 = sadd.s32 1, %s32
      %s42 = scalar_select %p39, %s41, %s32
      %p43 = scmp.ge.s32.totalorder %s42, 2
      %s44 = scalar_select %p43, 0, %s42
      %s45 = ssub.s32 1, %s32
      %s46 = smul.u32 %s33, %s45
      %s47 = ssub.s32 1, %s44
      %s48 = smul.u32 %s40, %s47
      %s49 = ssub.s32 %s46, %s48
      %p50 = scmp.eq.s32.totalorder %s49, 0
      %s52 = sadd.s32 %s51, 1
      %s53 = scalar_select %p50, %s51, %s52
      %p56 = pneg %p50
      %p57 = scmp.eq.s32.totalorder %s25, 1
      %p58 = por %p56, %p57
      %p59 = scmp.ne.s32.totalorder %s51, %s54
      %p60 = scmp.eq.s32.totalorder %s25, 0
      %p61 = por %p59, %p60
      %p62 = scmp.ne.s32.totalorder %s51, %s54
      %p63 = scmp.eq.s32.totalorder %s30, 1
      %p64 = por %p62, %p63
      %p65 = scmp.ne.s32.totalorder %s54, %s55
      %p66 = scmp.eq.s32.totalorder %s30, 0
      %p67 = por %p65, %p66
      %p68 = scmp.ne.s32.totalorder %s54, %s55
      %p69 = scmp.eq.s32.totalorder %s31, 1
      %p70 = por %p68, %p69
      %p72 = scmp.ne.s32.totalorder %s55, %s71
      %p73 = scmp.eq.s32.totalorder %s31, 0
      %p74 = por %p72, %p73
      %s76 = sadd.s32 %s75, 1
      %p79 = scmp.eq.s32.totalorder %s25, 1
      %p80 = scmp.ne.s32.totalorder %s75, %s77
      %p81 = scmp.eq.s32.totalorder %s25, 0
      %p82 = por %p80, %p81
      %p83 = scmp.ne.s32.totalorder %s75, %s77
      %p84 = scmp.eq.s32.totalorder %s30, 1
      %p85 = por %p83, %p84
      %p86 = scmp.ne.s32.totalorder %s77, %s78
      %p87 = scmp.eq.s32.totalorder %s30, 0
      %p88 = por %p86, %p87
      %p89 = scmp.ne.s32.totalorder %s77, %s78
      %p90 = scmp.eq.s32.totalorder %s31, 1
      %p91 = por %p89, %p90
      %p93 = scmp.ne.s32.totalorder %s78, %s92
      %p94 = scmp.eq.s32.totalorder %s31, 0
      %p95 = por %p93, %p94
      %s97 = sadd.s32 %s96, 1
      %p100 = scmp.eq.s32.totalorder %s25, 1
      %p101 = scmp.ne.s32.totalorder %s96, %s98
      %p102 = scmp.eq.s32.totalorder %s25, 0
      %p103 = por %p101, %p102
      %p104 = scmp.ne.s32.totalorder %s96, %s98
      %p105 = scmp.eq.s32.totalorder %s30, 1
      %p106 = por %p104, %p105
      %p107 = scmp.ne.s32.totalorder %s98, %s99
      %p108 = scmp.eq.s32.totalorder %s30, 0
      %p109 = por %p107, %p108
      %p110 = scmp.ne.s32.totalorder %s98, %s99
      %p111 = scmp.eq.s32.totalorder %s31, 1
      %p112 = por %p110, %p111
      %p114 = scmp.ne.s32.totalorder %s99, %s113
      %p115 = scmp.eq.s32.totalorder %s31, 0
      %p116 = por %p114, %p115
      %s118 = sadd.s32 %s117, 1
      %p121 = scmp.eq.s32.totalorder %s25, 1
      %p122 = scmp.ne.s32.totalorder %s117, %s119
      %p123 = scmp.eq.s32.totalorder %s25, 0
      %p124 = por %p122, %p123
      %p125 = scmp.ne.s32.totalorder %s117, %s119
      %p126 = scmp.eq.s32.totalorder %s30, 1
      %p127 = por %p125, %p126
      %p128 = scmp.ne.s32.totalorder %s119, %s120
      %p129 = scmp.eq.s32.totalorder %s30, 0
      %p130 = por %p128, %p129
      %p131 = scmp.ne.s32.totalorder %s119, %s120
      %p132 = scmp.eq.s32.totalorder %s31, 1
      %p133 = por %p131, %p132
      %p135 = scmp.ne.s32.totalorder %s120, %s134
      %p136 = scmp.eq.s32.totalorder %s31, 0
      %p137 = por %p135, %p136
      %s139 = sadd.s32 %s138, 1
      %p142 = scmp.eq.s32.totalorder %s25, 1
      %p143 = scmp.ne.s32.totalorder %s138, %s140
      %p144 = scmp.eq.s32.totalorder %s25, 0
      %p145 = por %p143, %p144
      %p146 = scmp.ne.s32.totalorder %s138, %s140
      %p147 = scmp.eq.s32.totalorder %s30, 1
      %p148 = por %p146, %p147
      %p149 = scmp.ne.s32.totalorder %s140, %s141
      %p150 = scmp.eq.s32.totalorder %s30, 0
      %p151 = por %p149, %p150
      %p152 = scmp.ne.s32.totalorder %s140, %s141
      %p153 = scmp.eq.s32.totalorder %s31, 1
      %p154 = por %p152, %p153
      %p156 = scmp.ne.s32.totalorder %s141, %s155
      %p157 = scmp.eq.s32.totalorder %s31, 0
      %p158 = por %p156, %p157
      %s160 = sadd.s32 %s159, 1
      %p163 = scmp.eq.s32.totalorder %s25, 1
      %p164 = scmp.ne.s32.totalorder %s159, %s161
      %p165 = scmp.eq.s32.totalorder %s25, 0
      %p166 = por %p164, %p165
      %p167 = scmp.ne.s32.totalorder %s159, %s161
      %p168 = scmp.eq.s32.totalorder %s30, 1
      %p169 = por %p167, %p168
      %p170 = scmp.ne.s32.totalorder %s161, %s162
      %p171 = scmp.eq.s32.totalorder %s30, 0
      %p172 = por %p170, %p171
      %p173 = scmp.ne.s32.totalorder %s161, %s162
      %p174 = scmp.eq.s32.totalorder %s31, 1
      %p175 = por %p173, %p174
      %p177 = scmp.ne.s32.totalorder %s162, %s176
      %p178 = scmp.eq.s32.totalorder %s31, 0
      %p179 = por %p177, %p178
      %s181 = sadd.s32 %s180, 1
      %p184 = scmp.eq.s32.totalorder %s25, 1
      %p185 = scmp.ne.s32.totalorder %s180, %s182
      %p186 = scmp.eq.s32.totalorder %s25, 0
      %p187 = por %p185, %p186
      %p188 = scmp.ne.s32.totalorder %s180, %s182
      %p189 = scmp.eq.s32.totalorder %s30, 1
      %p190 = por %p188, %p189
      %p191 = scmp.ne.s32.totalorder %s182, %s183
      %p192 = scmp.eq.s32.totalorder %s30, 0
      %p193 = por %p191, %p192
      %p194 = scmp.ne.s32.totalorder %s182, %s183
      %p195 = scmp.eq.s32.totalorder %s31, 1
      %p196 = por %p194, %p195
      %p198 = scmp.ne.s32.totalorder %s183, %s197
      %p199 = scmp.eq.s32.totalorder %s31, 0
      %p200 = por %p198, %p199
      %s202 = sadd.s32 %s201, 1
      %p205 = scmp.eq.s32.totalorder %s25, 1
      %p206 = scmp.ne.s32.totalorder %s201, %s203
      %p207 = scmp.eq.s32.totalorder %s25, 0
      %p208 = por %p206, %p207
      %p209 = scmp.ne.s32.totalorder %s201, %s203
      %p210 = scmp.eq.s32.totalorder %s30, 1
      %p211 = por %p209, %p210
      %p212 = scmp.ne.s32.totalorder %s203, %s204
      %p213 = scmp.eq.s32.totalorder %s30, 0
      %p214 = por %p212, %p213
      %p215 = scmp.ne.s32.totalorder %s203, %s204
      %p216 = scmp.eq.s32.totalorder %s31, 1
      %p217 = por %p215, %p216
      %p219 = scmp.ne.s32.totalorder %s204, %s218
      %p220 = scmp.eq.s32.totalorder %s31, 0
      %p221 = por %p219, %p220
      %s223 = sadd.s32 %s222, 1
      %p226 = scmp.eq.s32.totalorder %s25, 1
      %p227 = scmp.ne.s32.totalorder %s222, %s224
      %p228 = scmp.eq.s32.totalorder %s25, 0
      %p229 = por %p227, %p228
      %p230 = scmp.ne.s32.totalorder %s222, %s224
      %p231 = scmp.eq.s32.totalorder %s30, 1
      %p232 = por %p230, %p231
      %p233 = scmp.ne.s32.totalorder %s224, %s225
      %p234 = scmp.eq.s32.totalorder %s30, 0
      %p235 = por %p233, %p234
      %p236 = scmp.ne.s32.totalorder %s224, %s225
      %p237 = scmp.eq.s32.totalorder %s31, 1
      %p238 = por %p236, %p237
      %p240 = scmp.ne.s32.totalorder %s225, %s239
      %p241 = scmp.eq.s32.totalorder %s31, 0
      %p242 = por %p240, %p241
      %s244 = sadd.s32 %s243, 1
      %p247 = scmp.eq.s32.totalorder %s25, 1
      %p248 = scmp.ne.s32.totalorder %s243, %s245
      %p249 = scmp.eq.s32.totalorder %s25, 0
      %p250 = por %p248, %p249
      %p251 = scmp.ne.s32.totalorder %s243, %s245
      %p252 = scmp.eq.s32.totalorder %s30, 1
      %p253 = por %p251, %p252
      %p254 = scmp.ne.s32.totalorder %s245, %s246
      %p255 = scmp.eq.s32.totalorder %s30, 0
      %p256 = por %p254, %p255
      %p257 = scmp.ne.s32.totalorder %s245, %s246
      %p258 = scmp.eq.s32.totalorder %s31, 1
      %p259 = por %p257, %p258
      %p261 = scmp.ne.s32.totalorder %s246, %s260
      %p262 = scmp.eq.s32.totalorder %s31, 0
      %p263 = por %p261, %p262
      %s264 = smul.u32 %s33, %s32
      %s265 = smul.u32 %s40, %s44
      %s266 = ssub.s32 %s264, %s265
      %p267 = scmp.eq.s32.totalorder %s266, 0
      %s269 = sadd.s32 %s268, 1
      %s270 = scalar_select %p267, %s268, %s269
      %p273 = pneg %p267
      %p274 = scmp.eq.s32.totalorder %s25, 1
      %p275 = por %p273, %p274
      %p276 = scmp.ne.s32.totalorder %s268, %s271
      %p277 = scmp.eq.s32.totalorder %s25, 0
      %p278 = por %p276, %p277
      %p279 = scmp.ne.s32.totalorder %s268, %s271
      %p280 = scmp.eq.s32.totalorder %s30, 1
      %p281 = por %p279, %p280
      %p282 = scmp.ne.s32.totalorder %s271, %s272
      %p283 = scmp.eq.s32.totalorder %s30, 0
      %p284 = por %p282, %p283
      %p285 = scmp.ne.s32.totalorder %s271, %s272
      %p286 = scmp.eq.s32.totalorder %s31, 1
      %p287 = por %p285, %p286
      %p289 = scmp.ne.s32.totalorder %s272, %s288
      %p290 = scmp.eq.s32.totalorder %s31, 0
      %p291 = por %p289, %p290
      %p292 = scmp.le.s32.totalorder 1, %s25
      %p293 = scmp.lt.s32.totalorder %s25, 3
      %p294 = pnand %p292, %p293
      %p295 = pneg %p294
      // Predicated region
      $region9: #{tpu_custom_call.1} parent=5 // pred_check
        _
      $region10: #{tpu_custom_call.1} parent=5 // pred_check_branch
        %297 = sbr.rel (%p294) target = $region12
      $region11: #{tpu_custom_call.1} parent=5 // pred_region
        %s298 = ssub.s32 %s25, 1
        // Predicated region
        $region13: #{tpu_custom_call.1} parent=11 // pred_check
          %p299 = pneg %p88
        $region14: #{tpu_custom_call.1} parent=11 // pred_check_branch
          %301 = sbr.rel (%p299) target = $region16
        $region15: #{tpu_custom_call.1} parent=11 // pred_region
          %s303 = ssub.s32 6144, 6144
          %304 = vsyncadd [#allocation11], %s303
          %s305 = sshll.u32 [#allocation10], 4
          %s306 = int_to_ptr.vmem [resolvable:$true] %s305
          %311 = dma.hbm_to_vmem [thread:$0]  %s1, 6144, %s306, [#allocation11], 128, 128, 8
        $region16: #{tpu_custom_call.1} parent=11 // pred_fallthru
          _
        // Predicated region
        $region17: #{tpu_custom_call.1} parent=11 // pred_check
          %p312 = pneg %p109
        $region18: #{tpu_custom_call.1} parent=11 // pred_check_branch
          %314 = sbr.rel (%p312) target = $region20
        $region19: #{tpu_custom_call.1} parent=11 // pred_region
          _
        $region20: #{tpu_custom_call.1} parent=11 // pred_fallthru
          _
        // Predicated region
        $region21: #{tpu_custom_call.1} parent=11 // pred_check
          %p315 = pneg %p130
        $region22: #{tpu_custom_call.1} parent=11 // pred_check_branch
          %317 = sbr.rel (%p315) target = $region24
        $region23: #{tpu_custom_call.1} parent=11 // pred_region
          %s319 = ssub.s32 4096, 4096
          %320 = vsyncadd [#allocation11], %s319
          %s321 = sshll.u32 [#allocation12], 4
          %s322 = int_to_ptr.vmem [resolvable:$true] %s321
          %327 = dma.hbm_to_vmem [thread:$0]  %s3, 4096, %s322, [#allocation11], 128, 128, 8
        $region24: #{tpu_custom_call.1} parent=11 // pred_fallthru
          _
        // Predicated region
        $region25: #{tpu_custom_call.1} parent=11 // pred_check
          %p328 = pneg %p151
        $region26: #{tpu_custom_call.1} parent=11 // pred_check_branch
          %330 = sbr.rel (%p328) target = $region28
        $region27: #{tpu_custom_call.1} parent=11 // pred_region
          _
        $region28: #{tpu_custom_call.1} parent=11 // pred_fallthru
          _
        // Predicated region
        $region29: #{tpu_custom_call.1} parent=11 // pred_check
          %p331 = pneg %p172
        $region30: #{tpu_custom_call.1} parent=11 // pred_check_branch
          %333 = sbr.rel (%p331) target = $region32
        $region31: #{tpu_custom_call.1} parent=11 // pred_region
          _
        $region32: #{tpu_custom_call.1} parent=11 // pred_fallthru
          _
        // Predicated region
        $region33: #{tpu_custom_call.1} parent=11 // pred_check
          %p334 = pneg %p193
        $region34: #{tpu_custom_call.1} parent=11 // pred_check_branch
          %336 = sbr.rel (%p334) target = $region36
        $region35: #{tpu_custom_call.1} parent=11 // pred_region
          _
        $region36: #{tpu_custom_call.1} parent=11 // pred_fallthru
          _
        // Predicated region
        $region37: #{tpu_custom_call.1} parent=11 // pred_check
          %p337 = pneg %p214
        $region38: #{tpu_custom_call.1} parent=11 // pred_check_branch
          %339 = sbr.rel (%p337) target = $region40
        $region39: #{tpu_custom_call.1} parent=11 // pred_region
          %s341 = ssub.s32 2048, 2048
          %342 = vsyncadd [#allocation14], %s341
          %s343 = sshll.u32 [#allocation13], 4
          %s344 = int_to_ptr.vmem [resolvable:$true] %s343
          %349 = dma.hbm_to_vmem [thread:$0]  %s7, 2048, %s344, [#allocation14], 64, 64, 4
        $region40: #{tpu_custom_call.1} parent=11 // pred_fallthru
          _
        // Predicated region
        $region41: #{tpu_custom_call.1} parent=11 // pred_check
          %p350 = pneg %p235
        $region42: #{tpu_custom_call.1} parent=11 // pred_check_branch
          %352 = sbr.rel (%p350) target = $region44
        $region43: #{tpu_custom_call.1} parent=11 // pred_region
          _
        $region44: #{tpu_custom_call.1} parent=11 // pred_fallthru
          _
        // Predicated region
        $region45: #{tpu_custom_call.1} parent=11 // pred_check
          %p353 = pneg %p256
        $region46: #{tpu_custom_call.1} parent=11 // pred_check_branch
          %355 = sbr.rel (%p353) target = $region48
        $region47: #{tpu_custom_call.1} parent=11 // pred_region
          %s357 = ssub.s32 16, 16
          %358 = vsyncadd [#allocation9], %s357
          %s360 = sshll.u32 %s9, 4
          %s361 = int_to_ptr.vmem [resolvable:$true] %s360
          %363 = dma.vmem_to_smem %s361, 16, [#allocation15], [#allocation9]
        $region48: #{tpu_custom_call.1} parent=11 // pred_fallthru
          _
      $region12: #{tpu_custom_call.1} parent=5 // pred_fallthru
        _
      %p364 = scmp.lt.s32.totalorder %s25, 2
      // Predicated region
      $region49: #{tpu_custom_call.1} parent=5 // pred_check
        %p365 = pneg %p364
      $region50: #{tpu_custom_call.1} parent=5 // pred_check_branch
        %367 = sbr.rel (%p365) target = $region52
      $region51: #{tpu_custom_call.1} parent=5 // pred_region
        // Predicated region
        $region53: #{tpu_custom_call.1} parent=51 // pred_check
          %p368 = pneg %p61
        $region54: #{tpu_custom_call.1} parent=51 // pred_check_branch
          %370 = sbr.rel (%p368) target = $region56
        $region55: #{tpu_custom_call.1} parent=51 // pred_region
          %s371 = sand.u32 %s51, 1
          %s372 = scalar_lea.sflag [#allocation7], %s371
          %s373 = sand.u32 %s51, 1
          %s374 = smul.addr %s373, 48
          %s375 = scalar_lea.vmem [#allocation6], %s374
          %s376 = ssub.s32 1, %s32
          %s377 = smul.u32 %s33, %s376
          %s378 = smul.u32 2, %s377
          %s380 = ssub.s32 768, 768
          %381 = vsyncadd %s372, %s380
          %s382 = smul.addr %s378, 3
          %s383 = smul.addr %s382, 128
          %s384 = scalar_lea.hbm %s0, %s383
          %s385 = sshll.u32 %s375, 4
          %s386 = int_to_ptr.vmem [resolvable:$true] %s385
          %391 = dma.hbm_to_vmem [thread:$0]  %s384, 768, %s386, %s372, 384, 384, 24
        $region56: #{tpu_custom_call.1} parent=51 // pred_fallthru
          _
      $region52: #{tpu_custom_call.1} parent=5 // pred_fallthru
        _
      %p392 = scmp.le.s32.totalorder 1, %s25
      %p393 = scmp.lt.s32.totalorder %s25, 3
      %p394 = pnand %p392, %p393
      %p395 = pneg %p394
      // Predicated region
      $region57: #{tpu_custom_call.1} parent=5 // pred_check
        _
      $region58: #{tpu_custom_call.1} parent=5 // pred_check_branch
        %397 = sbr.rel (%p394) target = $region60
      $region59: #{tpu_custom_call.1} parent=5 // pred_region
        %s398 = ssub.s32 %s25, 1
        %s399 = sand.u32 %s54, 1
        %s400 = scalar_lea.sflag [#allocation7], %s399
        %s401 = sand.u32 %s54, 1
        %s402 = smul.addr %s401, 48
        %s403 = scalar_lea.vmem [#allocation6], %s402
        // Predicated region
        $region61: #{tpu_custom_call.1} parent=59 // pred_check
          %p404 = pneg %p67
        $region62: #{tpu_custom_call.1} parent=59 // pred_check_branch
          %406 = sbr.rel (%p404) target = $region64
        $region63: #{tpu_custom_call.1} parent=59 // pred_region
          %407 = dma.done %s400, 768
        $region64: #{tpu_custom_call.1} parent=59 // pred_fallthru
          _
        // Predicated region
        $region65: #{tpu_custom_call.1} parent=59 // pred_check
          %p408 = pneg %p88
        $region66: #{tpu_custom_call.1} parent=59 // pred_check_branch
          %410 = sbr.rel (%p408) target = $region68
        $region67: #{tpu_custom_call.1} parent=59 // pred_region
          %411 = dma.done [#allocation11], 6144
        $region68: #{tpu_custom_call.1} parent=59 // pred_fallthru
          _
        // Predicated region
        $region69: #{tpu_custom_call.1} parent=59 // pred_check
          %p412 = pneg %p130
        $region70: #{tpu_custom_call.1} parent=59 // pred_check_branch
          %414 = sbr.rel (%p412) target = $region72
        $region71: #{tpu_custom_call.1} parent=59 // pred_region
          %415 = dma.done [#allocation11], 4096
        $region72: #{tpu_custom_call.1} parent=59 // pred_fallthru
          _
        // Predicated region
        $region73: #{tpu_custom_call.1} parent=59 // pred_check
          %p416 = pneg %p214
        $region74: #{tpu_custom_call.1} parent=59 // pred_check_branch
          %418 = sbr.rel (%p416) target = $region76
        $region75: #{tpu_custom_call.1} parent=59 // pred_region
          %419 = dma.done [#allocation14], 2048
        $region76: #{tpu_custom_call.1} parent=59 // pred_fallthru
          _
        // Predicated region
        $region77: #{tpu_custom_call.1} parent=59 // pred_check
          %p420 = pneg %p256
        $region78: #{tpu_custom_call.1} parent=59 // pred_check_branch
          %422 = sbr.rel (%p420) target = $region80
        $region79: #{tpu_custom_call.1} parent=59 // pred_region
          %423 = dma.done [#allocation9], 16
        $region80: #{tpu_custom_call.1} parent=59 // pred_fallthru
          _
        %424 = sfence
        %s425 = sand.u32 %s54, 1
        %s426 = scalar_lea.sflag [#allocation7], %s425
        %s427 = sand.u32 %s54, 1
        %s428 = smul.addr %s427, 48
        %s429 = scalar_lea.vmem [#allocation6], %s428
        %p430 = pneg %p67
        %p431 = pneg %p64
        %p432 = pneg %p88
        %p433 = pneg %p85
        %p434 = pneg %p109
        %p435 = pneg %p106
        %p436 = pneg %p130
        %p437 = pneg %p127
        %p438 = pneg %p151
        %p439 = pneg %p148
        %p440 = pneg %p172
        %p441 = pneg %p169
        %p442 = pneg %p193
        %p443 = pneg %p190
        %p444 = pneg %p214
        %p445 = pneg %p211
        %p446 = pneg %p235
        %p447 = pneg %p232
        %p448 = pneg %p256
        %p449 = pneg %p253
        %p450 = pneg %p284
        %p451 = pneg %p281
        %s452 = sand.u32 %s271, 1
        %s453 = scalar_lea.sflag [#allocation8], %s452
        %s454 = sand.u32 %s271, 1
        %s455 = smul.addr %s454, 16
        %s456 = scalar_lea.vmem [#allocation16], %s455
        %s457 = ssub.s32 1, %s34
        %s458 = smul.u32 %s35, %s457
        %s459 = smul.u32 2, %s458
        %s460 = smul.u32 %s35, %s34
        %s461 = smul.u32 2, %s460
        %s463 = smul.u32 %s35, 16
        %p464 = scmp.eq.s32.totalorder %s34, 0
        // Predicated region
        $region81: #{tpu_custom_call.1} parent=59 // pred_check
          %p465 = pneg %p464
        $region82: #{tpu_custom_call.1} parent=59 // pred_check_branch
          %467 = sbr.rel (%p465) target = $region84
        $region83: #{tpu_custom_call.1} parent=59 // pred_region
          %p468 = scmp.eq.s32.totalorder %s35, 0
          // Predicated region
          $region85: #{tpu_custom_call.1} parent=83 // pred_check
            %p469 = pneg %p468
          $region86: #{tpu_custom_call.1} parent=83 // pred_check_branch
            %471 = sbr.rel (%p469) target = $region88
          $region87: #{tpu_custom_call.1} parent=83 // pred_region
            %v472 = vlaneseq
            %vm473 = vcmp.ge.s32.totalorder %v472, 0
            %vm474 = vcmp.lt.s32.totalorder %v472, 256
            %vm475 = vmand %vm473, %vm474
            %476 = vst.msk [vmem:[#allocation4] sm:$0x3] %vm475, 0.0
            %477 = vst.msk [vmem:[#allocation5] sm:$0x3] %vm475, 0.0
          $region88: #{tpu_custom_call.1} parent=83 // pred_fallthru
            _
          %v478 = vld [vmem:[%s403] sm:$0xff]
          %v479 = vld [vmem:[%s403 + $0x8] sm:$0xff]
          %v480 = vld [vmem:[%s403 + $0x10] sm:$0xff]
          %v481 = vld [vmem:[%s403 + $0x18] sm:$0xff]
          %v482 = vld [vmem:[%s403 + $0x20] sm:$0xff]
          %v483 = vld [vmem:[%s403 + $0x28] sm:$0xff]
          %v484 = vmul.f32 %v478, %v478
          %v485 = vmul.f32 %v481, %v481
          %486 = vadd.xlane.f32.xlu0 %v484
          %v487 = vpop.xlane.xlu0 %486
          %488 = vadd.xlane.f32.xlu0 %v485
          %v489 = vpop.xlane.xlu0 %488
          %v490 = vmax.f32 %v487, 1e-30
          %v491 = vmax.f32 %v489, 1e-30
          %v492 = vrsqrt.pop %v490
          %v493 = vrsqrt.pop %v491
          %v494 = vmul.f32 %v478, %v492
          %v495 = vmul.f32 %v481, %v493
          %v496 = vmul.f32 %v479, %v479
          %v497 = vmul.f32 %v482, %v482
          %498 = vadd.xlane.f32.xlu0 %v496
          %v499 = vpop.xlane.xlu0 %498
          %500 = vadd.xlane.f32.xlu0 %v497
          %v501 = vpop.xlane.xlu0 %500
          %v502 = vmax.f32 %v499, 1e-30
          %v503 = vmax.f32 %v501, 1e-30
          %v504 = vrsqrt.pop %v502
          %v505 = vrsqrt.pop %v503
          %v506 = vmul.f32 %v479, %v504
          %v507 = vmul.f32 %v482, %v505
          %v508 = vmul.f32 %v480, %v480
          %v509 = vmul.f32 %v483, %v483
          %510 = vadd.xlane.f32.xlu0 %v508
          %v511 = vpop.xlane.xlu0 %510
          %512 = vadd.xlane.f32.xlu0 %v509
          %v513 = vpop.xlane.xlu0 %512
          %v514 = vmax.f32 %v511, 1e-30
          %v515 = vmax.f32 %v513, 1e-30
          %v516 = vrsqrt.pop %v514
          %v517 = vrsqrt.pop %v515
          %v518 = vmul.f32 %v480, %v516
          %v519 = vmul.f32 %v483, %v517
          %s520 = scalar_lea.vmem [#allocation3], %s463
          %521 = vst [vmem:[%s520] sm:$0xff] %v494
          %522 = vst [vmem:[%s520 + $0x8] sm:$0xff] %v495
          %v523 = vpack.c.bf16 %v495, %v494
          %v524 = vpack.c.bf16 %v507, %v506
          %v525 = vpack.c.bf16 %v519, %v518
          %v526 = vld [vmem:[#allocation10] sm:$0xff]
          %v527 = vld [vmem:[#allocation10 + $0x8] sm:$0xff]
          %v528 = vld [vmem:[#allocation10 + $0x10] sm:$0xff]
          %v529 = vld [vmem:[#allocation10 + $0x18] sm:$0xff]
          %v530 = vld [vmem:[#allocation10 + $0x20] sm:$0xff]
          %v531 = vld [vmem:[#allocation10 + $0x28] sm:$0xff]
          %v532 = vld [vmem:[#allocation10 + $0x30] sm:$0xff]
          %v533 = vld [vmem:[#allocation10 + $0x38] sm:$0xff]
          %v534 = vld [vmem:[#allocation10 + $0x40] sm:$0xff]
          %v535 = vld [vmem:[#allocation10 + $0x48] sm:$0xff]
          %v536 = vld [vmem:[#allocation10 + $0x50] sm:$0xff]
          %v537 = vld [vmem:[#allocation10 + $0x58] sm:$0xff]
          %v538 = vld [vmem:[#allocation10 + $0x60] sm:$0xff]
          %v539 = vld [vmem:[#allocation10 + $0x68] sm:$0xff]
          %v540 = vld [vmem:[#allocation10 + $0x70] sm:$0xff]
          %v541 = vld [vmem:[#allocation10 + $0x78] sm:$0xff]
          %v542 = vld [vmem:[#allocation10 + $0x80] sm:$0xff]
          %v543 = vld [vmem:[#allocation10 + $0x88] sm:$0xff]
          %v544 = vld [vmem:[#allocation10 + $0x90] sm:$0xff]
          %v545 = vld [vmem:[#allocation10 + $0x98] sm:$0xff]
          %v546 = vld [vmem:[#allocation10 + $0xa0] sm:$0xff]
          %v547 = vld [vmem:[#allocation10 + $0xa8] sm:$0xff]
          %v548 = vld [vmem:[#allocation10 + $0xb0] sm:$0xff]
          %v549 = vld [vmem:[#allocation10 + $0xb8] sm:$0xff]
          %v550 = vld [vmem:[#allocation10 + $0xc0] sm:$0xff]
          %v551 = vld [vmem:[#allocation10 + $0xc8] sm:$0xff]
          %v552 = vld [vmem:[#allocation10 + $0xd0] sm:$0xff]
          %v553 = vld [vmem:[#allocation10 + $0xd8] sm:$0xff]
          %v554 = vld [vmem:[#allocation10 + $0xe0] sm:$0xff]
          %v555 = vld [vmem:[#allocation10 + $0xe8] sm:$0xff]
          %v556 = vld [vmem:[#allocation10 + $0xf0] sm:$0xff]
          %v557 = vld [vmem:[#allocation10 + $0xf8] sm:$0xff]
          %v558 = vld [vmem:[#allocation10 + $0x100] sm:$0xff]
          %v559 = vld [vmem:[#allocation10 + $0x108] sm:$0xff]
          %v560 = vld [vmem:[#allocation10 + $0x110] sm:$0xff]
          %v561 = vld [vmem:[#allocation10 + $0x118] sm:$0xff]
          %v562 = vld [vmem:[#allocation10 + $0x120] sm:$0xff]
          %v563 = vld [vmem:[#allocation10 + $0x128] sm:$0xff]
          %v564 = vld [vmem:[#allocation10 + $0x130] sm:$0xff]
          %v565 = vld [vmem:[#allocation10 + $0x138] sm:$0xff]
          %v566 = vld [vmem:[#allocation10 + $0x140] sm:$0xff]
          %v567 = vld [vmem:[#allocation10 + $0x148] sm:$0xff]
          %v568 = vld [vmem:[#allocation10 + $0x150] sm:$0xff]
          %v569 = vld [vmem:[#allocation10 + $0x158] sm:$0xff]
          %v570 = vld [vmem:[#allocation10 + $0x160] sm:$0xff]
          %v571 = vld [vmem:[#allocation10 + $0x168] sm:$0xff]
          %v572 = vld [vmem:[#allocation10 + $0x170] sm:$0xff]
          %v573 = vld [vmem:[#allocation10 + $0x178] sm:$0xff]
          %v574 = vld [vmem:[%s2] sm:$0x3]
          %v576 = vlaneseq
          %v577 = vshrl.u32 %v576, 7
          %v578 = vsub.s32 0, %v577
          %v579 = vrot.slane %v574, %v578
          %v580 = vlaneseq
          %v581 = vshrl.u32 %v580, 7
          %v582 = vsub.s32 1, %v581
          %v583 = vrot.slane %v574, %v582
          %v634 = vunpack.c.l.b16 %v526
          %v635 = vunpack.c.h.b16 %v526
          %v636 = vunpack.c.l.b16 %v527
          %v637 = vunpack.c.h.b16 %v527
          %v638 = vunpack.c.l.b16 %v528
          %v639 = vunpack.c.h.b16 %v528
          %v640 = vunpack.c.l.b16 %v529
          %v641 = vunpack.c.h.b16 %v529
          %v642 = vunpack.c.l.b16 %v530
          %v643 = vunpack.c.h.b16 %v530
          %v644 = vunpack.c.l.b16 %v531
          %v645 = vunpack.c.h.b16 %v531
          %v646 = vunpack.c.l.b16 %v532
          %v647 = vunpack.c.h.b16 %v532
          %v648 = vunpack.c.l.b16 %v533
          %v649 = vunpack.c.h.b16 %v533
          %v650 = vunpack.c.l.b16 %v534
          %v651 = vunpack.c.h.b16 %v534
          %v652 = vunpack.c.l.b16 %v535
          %v653 = vunpack.c.h.b16 %v535
          %v654 = vunpack.c.l.b16 %v536
          %v655 = vunpack.c.h.b16 %v536
          %v656 = vunpack.c.l.b16 %v537
          %v657 = vunpack.c.h.b16 %v537
          %v658 = vunpack.c.l.b16 %v538
          %v659 = vunpack.c.h.b16 %v538
          %v660 = vunpack.c.l.b16 %v539
          %v661 = vunpack.c.h.b16 %v539
          %v662 = vunpack.c.l.b16 %v540
          %v663 = vunpack.c.h.b16 %v540
          %v664 = vunpack.c.l.b16 %v541
          %v665 = vunpack.c.h.b16 %v541
          %v666 = vunpack.c.l.b16 %v542
          %v667 = vunpack.c.h.b16 %v542
          %v668 = vunpack.c.l.b16 %v543
          %v669 = vunpack.c.h.b16 %v543
          %v670 = vunpack.c.l.b16 %v544
          %v671 = vunpack.c.h.b16 %v544
          %v672 = vunpack.c.l.b16 %v545
          %v673 = vunpack.c.h.b16 %v545
          %v674 = vunpack.c.l.b16 %v546
          %v675 = vunpack.c.h.b16 %v546
          %v676 = vunpack.c.l.b16 %v547
          %v677 = vunpack.c.h.b16 %v547
          %v678 = vunpack.c.l.b16 %v548
          %v679 = vunpack.c.h.b16 %v548
          %v680 = vunpack.c.l.b16 %v549
          %v681 = vunpack.c.h.b16 %v549
          %v682 = vunpack.c.l.b16 %v550
          %v683 = vunpack.c.h.b16 %v550
          %v684 = vunpack.c.l.b16 %v551
          %v685 = vunpack.c.h.b16 %v551
          %v686 = vunpack.c.l.b16 %v552
          %v687 = vunpack.c.h.b16 %v552
          %v688 = vunpack.c.l.b16 %v553
          %v689 = vunpack.c.h.b16 %v553
          %v690 = vunpack.c.l.b16 %v554
          %v691 = vunpack.c.h.b16 %v554
          %v692 = vunpack.c.l.b16 %v555
          %v693 = vunpack.c.h.b16 %v555
          %v694 = vunpack.c.l.b16 %v556
          %v695 = vunpack.c.h.b16 %v556
          %v696 = vunpack.c.l.b16 %v557
          %v697 = vunpack.c.h.b16 %v557
          %v698 = vunpack.c.l.b16 %v558
          %v699 = vunpack.c.h.b16 %v558
          %v700 = vunpack.c.l.b16 %v559
          %v701 = vunpack.c.h.b16 %v559
          %v702 = vunpack.c.l.b16 %v560
          %v703 = vunpack.c.h.b16 %v560
          %v704 = vunpack.c.l.b16 %v561
          %v705 = vunpack.c.h.b16 %v561
          %v706 = vunpack.c.l.b16 %v562
          %v707 = vunpack.c.h.b16 %v562
          %v708 = vunpack.c.l.b16 %v563
          %v709 = vunpack.c.h.b16 %v563
          %v710 = vunpack.c.l.b16 %v564
          %v711 = vunpack.c.h.b16 %v564
          %v712 = vunpack.c.l.b16 %v565
          %v713 = vunpack.c.h.b16 %v565
          %v714 = vunpack.c.l.b16 %v566
          %v715 = vunpack.c.h.b16 %v566
          %v716 = vunpack.c.l.b16 %v567
          %v717 = vunpack.c.h.b16 %v567
          %v718 = vunpack.c.l.b16 %v568
          %v719 = vunpack.c.h.b16 %v568
          %v720 = vunpack.c.l.b16 %v569
          %v721 = vunpack.c.h.b16 %v569
          %v722 = vunpack.c.l.b16 %v570
          %v723 = vunpack.c.h.b16 %v570
          %v724 = vunpack.c.l.b16 %v571
          %v725 = vunpack.c.h.b16 %v571
          %v726 = vunpack.c.l.b16 %v572
          %v727 = vunpack.c.h.b16 %v572
          %v728 = vunpack.c.l.b16 %v573
          %v729 = vunpack.c.h.b16 %v573
          %v730 = vpack.c.b16 %v636, %v634
          %v731 = vpack.c.b16 %v637, %v635
          %v732 = vpack.c.b16 %v640, %v638
          %v733 = vpack.c.b16 %v641, %v639
          %v734 = vpack.c.b16 %v644, %v642
          %v735 = vpack.c.b16 %v645, %v643
          %v736 = vpack.c.b16 %v648, %v646
          %v737 = vpack.c.b16 %v649, %v647
          %v738 = vpack.c.b16 %v652, %v650
          %v739 = vpack.c.b16 %v653, %v651
          %v740 = vpack.c.b16 %v656, %v654
          %v741 = vpack.c.b16 %v657, %v655
          %v742 = vpack.c.b16 %v660, %v658
          %v743 = vpack.c.b16 %v661, %v659
          %v744 = vpack.c.b16 %v664, %v662
          %v745 = vpack.c.b16 %v665, %v663
          %v746 = vpack.c.b16 %v668, %v666
          %v747 = vpack.c.b16 %v669, %v667
          %v748 = vpack.c.b16 %v672, %v670
          %v749 = vpack.c.b16 %v673, %v671
          %v750 = vpack.c.b16 %v676, %v674
          %v751 = vpack.c.b16 %v677, %v675
          %v752 = vpack.c.b16 %v680, %v678
          %v753 = vpack.c.b16 %v681, %v679
          %v754 = vpack.c.b16 %v684, %v682
          %v755 = vpack.c.b16 %v685, %v683
          %v756 = vpack.c.b16 %v688, %v686
          %v757 = vpack.c.b16 %v689, %v687
          %v758 = vpack.c.b16 %v692, %v690
          %v759 = vpack.c.b16 %v693, %v691
          %v760 = vpack.c.b16 %v696, %v694
          %v761 = vpack.c.b16 %v697, %v695
          %v762 = vpack.c.b16 %v700, %v698
          %v763 = vpack.c.b16 %v701, %v699
          %v764 = vpack.c.b16 %v704, %v702
          %v765 = vpack.c.b16 %v705, %v703
          %v766 = vpack.c.b16 %v708, %v706
          %v767 = vpack.c.b16 %v709, %v707
          %v768 = vpack.c.b16 %v712, %v710
          %v769 = vpack.c.b16 %v713, %v711
          %v770 = vpack.c.b16 %v716, %v714
          %v771 = vpack.c.b16 %v717, %v715
          %v772 = vpack.c.b16 %v720, %v718
          %v773 = vpack.c.b16 %v721, %v719
          %v774 = vpack.c.b16 %v724, %v722
          %v775 = vpack.c.b16 %v725, %v723
          %v776 = vpack.c.b16 %v728, %v726
          %v777 = vpack.c.b16 %v729, %v727
          %826 = vmatprep.subr.bf16.mxu0 %v745
          %827 = vmatpush1.bf16.msra.mxu0 %v744
          %828 = vmatprep.subr.bf16.mxu0 %v743
          %829 = vmatpush1.bf16.msra.mxu0 %v742
          %830 = vmatprep.subr.bf16.mxu0 %v741
          %831 = vmatpush1.bf16.msra.mxu0 %v740
          %832 = vmatprep.subr.bf16.mxu0 %v739
          %833 = vmatpush1.bf16.msra.mxu0 %v738
          %834 = vmatprep.subr.bf16.mxu0 %v737
          %835 = vmatpush1.bf16.msra.mxu0 %v736
          %836 = vmatprep.subr.bf16.mxu0 %v735
          %837 = vmatpush1.bf16.msra.mxu0 %v734
          %838 = vmatprep.subr.bf16.mxu0 %v733
          %839 = vmatpush1.bf16.msra.mxu0 %v732
          %840 = vmatprep.subr.bf16.mxu0 %v731
          %841 = vmatpush1.bf16.msra.mxu0 %v730
          %842 = vmatprep.subr.bf16.mxu0 %v761
          %843 = vmatpush2.bf16.msra.mxu0 %v760
          %844 = vmatprep.subr.bf16.mxu0 %v759
          %845 = vmatpush2.bf16.msra.mxu0 %v758
          %846 = vmatprep.subr.bf16.mxu0 %v757
          %847 = vmatpush2.bf16.msra.mxu0 %v756
          %848 = vmatprep.subr.bf16.mxu0 %v755
          %849 = vmatpush2.bf16.msra.mxu0 %v754
          %850 = vmatprep.subr.bf16.mxu0 %v753
          %851 = vmatpush2.bf16.msra.mxu0 %v752
          %852 = vmatprep.subr.bf16.mxu0 %v751
          %853 = vmatpush2.bf16.msra.mxu0 %v750
          %854 = vmatprep.subr.bf16.mxu0 %v749
          %855 = vmatpush2.bf16.msra.mxu0 %v748
          %856 = vmatprep.subr.bf16.mxu0 %v747
          %857 = vmatpush2.bf16.msra.mxu0 %v746
          %858 = vmatprep.mubr.bf16.mxu0 %v524
          %859 = vmatmul.mubr.bf16.gmra.mxu0 %v523
          %v860 = vpop.f32.mrf.mxu0
          %v861 = vadd.f32 %v579, %v860
          %v862 = vpop.f32.mrf.mxu0
          %v863 = vadd.f32 %v583, %v862
          %v864 = vpop.f32.mrf.mxu0
          %v865 = vadd.f32 %v579, %v864
          %v866 = vpop.f32.mrf.mxu0
          %v867 = vadd.f32 %v583, %v866
          %868 = vdwg.mxu0
          %869 = vmatprep.subr.bf16.mxu0 %v777
          %870 = vmatpush1.bf16.msra.mxu0 %v776
          %871 = vmatprep.subr.bf16.mxu0 %v775
          %872 = vmatpush1.bf16.msra.mxu0 %v774
          %873 = vmatprep.subr.bf16.mxu0 %v773
          %874 = vmatpush1.bf16.msra.mxu0 %v772
          %875 = vmatprep.subr.bf16.mxu0 %v771
          %876 = vmatpush1.bf16.msra.mxu0 %v770
          %877 = vmatprep.subr.bf16.mxu0 %v769
          %878 = vmatpush1.bf16.msra.mxu0 %v768
          %879 = vmatprep.subr.bf16.mxu0 %v767
          %880 = vmatpush1.bf16.msra.mxu0 %v766
          %881 = vmatprep.subr.bf16.mxu0 %v765
          %882 = vmatpush1.bf16.msra.mxu0 %v764
          %883 = vmatprep.subr.bf16.mxu0 %v763
          %884 = vmatpush1.bf16.msra.mxu0 %v762
          %885 = vmatprep.subr.bf16.mxu0 0
          %886 = vmatpush2.bf16.msra.mxu0 0
          %887 = vmatprep.subr.bf16.mxu0 0
          %888 = vmatpush2.bf16.msra.mxu0 0
          %889 = vmatprep.subr.bf16.mxu0 0
          %890 = vmatpush2.bf16.msra.mxu0 0
          %891 = vmatprep.subr.bf16.mxu0 0
          %892 = vmatpush2.bf16.msra.mxu0 0
          %893 = vmatprep.subr.bf16.mxu0 0
          %894 = vmatpush2.bf16.msra.mxu0 0
          %895 = vmatprep.subr.bf16.mxu0 0
          %896 = vmatpush2.bf16.msra.mxu0 0
          %897 = vmatprep.subr.bf16.mxu0 0
          %898 = vmatpush2.bf16.msra.mxu0 0
          %899 = vmatprep.subr.bf16.mxu0 0
          %900 = vmatpush2.bf16.msra.mxu0 0
          %901 = vmatprep.mubr.bf16.mxu0 0
          %902 = vmatmul.mubr.bf16.gmra.mxu0 %v525
          %v903 = vpop.f32.mrf.mxu0
          %v904 = vadd.f32 %v861, %v903
          %v905 = vpop.f32.mrf.mxu0
          %v906 = vadd.f32 %v863, %v905
          %v907 = vpop.f32.mrf.mxu0
          %v908 = vadd.f32 %v865, %v907
          %v909 = vpop.f32.mrf.mxu0
          %v910 = vadd.f32 %v867, %v909
          %911 = vdwg.mxu0
          %v912 = vmax.f32 %v904, 0.0
          %v913 = vmax.f32 %v906, 0.0
          %v914 = vmax.f32 %v908, 0.0
          %v915 = vmax.f32 %v910, 0.0
          %v916 = vpack.c.bf16 %v914, %v912
          %v917 = vpack.c.bf16 %v915, %v913
          %v918 = vld [vmem:[#allocation12] sm:$0xff]
          %v919 = vld [vmem:[#allocation12 + $0x8] sm:$0xff]
          %v920 = vld [vmem:[#allocation12 + $0x10] sm:$0xff]
          %v921 = vld [vmem:[#allocation12 + $0x18] sm:$0xff]
          %v922 = vld [vmem:[#allocation12 + $0x20] sm:$0xff]
          %v923 = vld [vmem:[#allocation12 + $0x28] sm:$0xff]
          %v924 = vld [vmem:[#allocation12 + $0x30] sm:$0xff]
          %v925 = vld [vmem:[#allocation12 + $0x38] sm:$0xff]
          %v926 = vld [vmem:[#allocation12 + $0x40] sm:$0xff]
          %v927 = vld [vmem:[#allocation12 + $0x48] sm:$0xff]
          %v928 = vld [vmem:[#allocation12 + $0x50] sm:$0xff]
          %v929 = vld [vmem:[#allocation12 + $0x58] sm:$0xff]
          %v930 = vld [vmem:[#allocation12 + $0x60] sm:$0xff]
          %v931 = vld [vmem:[#allocation12 + $0x68] sm:$0xff]
          %v932 = vld [vmem:[#allocation12 + $0x70] sm:$0xff]
          %v933 = vld [vmem:[#allocation12 + $0x78] sm:$0xff]
          %v934 = vld [vmem:[#allocation12 + $0x80] sm:$0xff]
          %v935 = vld [vmem:[#allocation12 + $0x88] sm:$0xff]
          %v936 = vld [vmem:[#allocation12 + $0x90] sm:$0xff]
          %v937 = vld [vmem:[#allocation12 + $0x98] sm:$0xff]
          %v938 = vld [vmem:[#allocation12 + $0xa0] sm:$0xff]
          %v939 = vld [vmem:[#allocation12 + $0xa8] sm:$0xff]
          %v940 = vld [vmem:[#allocation12 + $0xb0] sm:$0xff]
          %v941 = vld [vmem:[#allocation12 + $0xb8] sm:$0xff]
          %v942 = vld [vmem:[#allocation12 + $0xc0] sm:$0xff]
          %v943 = vld [vmem:[#allocation12 + $0xc8] sm:$0xff]
          %v944 = vld [vmem:[#allocation12 + $0xd0] sm:$0xff]
          %v945 = vld [vmem:[#allocation12 + $0xd8] sm:$0xff]
          %v946 = vld [vmem:[#allocation12 + $0xe0] sm:$0xff]
          %v947 = vld [vmem:[#allocation12 + $0xe8] sm:$0xff]
          %v948 = vld [vmem:[#allocation12 + $0xf0] sm:$0xff]
          %v949 = vld [vmem:[#allocation12 + $0xf8] sm:$0xff]
          %v950 = vld [vmem:[%s4] sm:$0x3]
          %v952 = vlaneseq
          %v953 = vshrl.u32 %v952, 7
          %v954 = vsub.s32 0, %v953
          %v955 = vrot.slane %v950, %v954
          %v956 = vlaneseq
          %v957 = vshrl.u32 %v956, 7
          %v958 = vsub.s32 1, %v957
          %v959 = vrot.slane %v950, %v958
          %v994 = vunpack.c.l.b16 %v918
          %v995 = vunpack.c.h.b16 %v918
          %v996 = vunpack.c.l.b16 %v919
          %v997 = vunpack.c.h.b16 %v919
          %v998 = vunpack.c.l.b16 %v920
          %v999 = vunpack.c.h.b16 %v920
          %v1000 = vunpack.c.l.b16 %v921
          %v1001 = vunpack.c.h.b16 %v921
          %v1002 = vunpack.c.l.b16 %v922
          %v1003 = vunpack.c.h.b16 %v922
          %v1004 = vunpack.c.l.b16 %v923
          %v1005 = vunpack.c.h.b16 %v923
          %v1006 = vunpack.c.l.b16 %v924
          %v1007 = vunpack.c.h.b16 %v924
          %v1008 = vunpack.c.l.b16 %v925
          %v1009 = vunpack.c.h.b16 %v925
          %v1010 = vunpack.c.l.b16 %v926
          %v1011 = vunpack.c.h.b16 %v926
          %v1012 = vunpack.c.l.b16 %v927
          %v1013 = vunpack.c.h.b16 %v927
          %v1014 = vunpack.c.l.b16 %v928
          %v1015 = vunpack.c.h.b16 %v928
          %v1016 = vunpack.c.l.b16 %v929
          %v1017 = vunpack.c.h.b16 %v929
          %v1018 = vunpack.c.l.b16 %v930
          %v1019 = vunpack.c.h.b16 %v930
          %v1020 = vunpack.c.l.b16 %v931
          %v1021 = vunpack.c.h.b16 %v931
          %v1022 = vunpack.c.l.b16 %v932
          %v1023 = vunpack.c.h.b16 %v932
          %v1024 = vunpack.c.l.b16 %v933
          %v1025 = vunpack.c.h.b16 %v933
          %v1026 = vunpack.c.l.b16 %v934
          %v1027 = vunpack.c.h.b16 %v934
          %v1028 = vunpack.c.l.b16 %v935
          %v1029 = vunpack.c.h.b16 %v935
          %v1030 = vunpack.c.l.b16 %v936
          %v1031 = vunpack.c.h.b16 %v936
          %v1032 = vunpack.c.l.b16 %v937
          %v1033 = vunpack.c.h.b16 %v937
          %v1034 = vunpack.c.l.b16 %v938
          %v1035 = vunpack.c.h.b16 %v938
          %v1036 = vunpack.c.l.b16 %v939
          %v1037 = vunpack.c.h.b16 %v939
          %v1038 = vunpack.c.l.b16 %v940
          %v1039 = vunpack.c.h.b16 %v940
          %v1040 = vunpack.c.l.b16 %v941
          %v1041 = vunpack.c.h.b16 %v941
          %v1042 = vunpack.c.l.b16 %v942
          %v1043 = vunpack.c.h.b16 %v942
          %v1044 = vunpack.c.l.b16 %v943
          %v1045 = vunpack.c.h.b16 %v943
          %v1046 = vunpack.c.l.b16 %v944
          %v1047 = vunpack.c.h.b16 %v944
          %v1048 = vunpack.c.l.b16 %v945
          %v1049 = vunpack.c.h.b16 %v945
          %v1050 = vunpack.c.l.b16 %v946
          %v1051 = vunpack.c.h.b16 %v946
          %v1052 = vunpack.c.l.b16 %v947
          %v1053 = vunpack.c.h.b16 %v947
          %v1054 = vunpack.c.l.b16 %v948
          %v1055 = vunpack.c.h.b16 %v948
          %v1056 = vunpack.c.l.b16 %v949
          %v1057 = vunpack.c.h.b16 %v949
          %v1058 = vpack.c.b16 %v996, %v994
          %v1059 = vpack.c.b16 %v997, %v995
          %v1060 = vpack.c.b16 %v1000, %v998
          %v1061 = vpack.c.b16 %v1001, %v999
          %v1062 = vpack.c.b16 %v1004, %v1002
          %v1063 = vpack.c.b16 %v1005, %v1003
          %v1064 = vpack.c.b16 %v1008, %v1006
          %v1065 = vpack.c.b16 %v1009, %v1007
          %v1066 = vpack.c.b16 %v1012, %v1010
          %v1067 = vpack.c.b16 %v1013, %v1011
          %v1068 = vpack.c.b16 %v1016, %v1014
          %v1069 = vpack.c.b16 %v1017, %v1015
          %v1070 = vpack.c.b16 %v1020, %v1018
          %v1071 = vpack.c.b16 %v1021, %v1019
          %v1072 = vpack.c.b16 %v1024, %v1022
          %v1073 = vpack.c.b16 %v1025, %v1023
          %v1074 = vpack.c.b16 %v1028, %v1026
          %v1075 = vpack.c.b16 %v1029, %v1027
          %v1076 = vpack.c.b16 %v1032, %v1030
          %v1077 = vpack.c.b16 %v1033, %v1031
          %v1078 = vpack.c.b16 %v1036, %v1034
          %v1079 = vpack.c.b16 %v1037, %v1035
          %v1080 = vpack.c.b16 %v1040, %v1038
          %v1081 = vpack.c.b16 %v1041, %v1039
          %v1082 = vpack.c.b16 %v1044, %v1042
          %v1083 = vpack.c.b16 %v1045, %v1043
          %v1084 = vpack.c.b16 %v1048, %v1046
          %v1085 = vpack.c.b16 %v1049, %v1047
          %v1086 = vpack.c.b16 %v1052, %v1050
          %v1087 = vpack.c.b16 %v1053, %v1051
          %v1088 = vpack.c.b16 %v1056, %v1054
          %v1089 = vpack.c.b16 %v1057, %v1055
          %1122 = vmatprep.subr.bf16.mxu0 %v1073
          %1123 = vmatpush1.bf16.msra.mxu0 %v1072
          %1124 = vmatprep.subr.bf16.mxu0 %v1071
          %1125 = vmatpush1.bf16.msra.mxu0 %v1070
          %1126 = vmatprep.subr.bf16.mxu0 %v1069
          %1127 = vmatpush1.bf16.msra.mxu0 %v1068
          %1128 = vmatprep.subr.bf16.mxu0 %v1067
          %1129 = vmatpush1.bf16.msra.mxu0 %v1066
          %1130 = vmatprep.subr.bf16.mxu0 %v1065
          %1131 = vmatpush1.bf16.msra.mxu0 %v1064
          %1132 = vmatprep.subr.bf16.mxu0 %v1063
          %1133 = vmatpush1.bf16.msra.mxu0 %v1062
          %1134 = vmatprep.subr.bf16.mxu0 %v1061
          %1135 = vmatpush1.bf16.msra.mxu0 %v1060
          %1136 = vmatprep.subr.bf16.mxu0 %v1059
          %1137 = vmatpush1.bf16.msra.mxu0 %v1058
          %1138 = vmatprep.subr.bf16.mxu0 %v1089
          %1139 = vmatpush2.bf16.msra.mxu0 %v1088
          %1140 = vmatprep.subr.bf16.mxu0 %v1087
          %1141 = vmatpush2.bf16.msra.mxu0 %v1086
          %1142 = vmatprep.subr.bf16.mxu0 %v1085
          %1143 = vmatpush2.bf16.msra.mxu0 %v1084
          %1144 = vmatprep.subr.bf16.mxu0 %v1083
          %1145 = vmatpush2.bf16.msra.mxu0 %v1082
          %1146 = vmatprep.subr.bf16.mxu0 %v1081
          %1147 = vmatpush2.bf16.msra.mxu0 %v1080
          %1148 = vmatprep.subr.bf16.mxu0 %v1079
          %1149 = vmatpush2.bf16.msra.mxu0 %v1078
          %1150 = vmatprep.subr.bf16.mxu0 %v1077
          %1151 = vmatpush2.bf16.msra.mxu0 %v1076
          %1152 = vmatprep.subr.bf16.mxu0 %v1075
          %1153 = vmatpush2.bf16.msra.mxu0 %v1074
          %1154 = vmatprep.mubr.bf16.mxu0 %v917
          %1155 = vmatmul.mubr.bf16.gmra.mxu0 %v916
          %v1156 = vpop.f32.mrf.mxu0
          %v1157 = vadd.f32 %v955, %v1156
          %v1158 = vpop.f32.mrf.mxu0
          %v1159 = vadd.f32 %v959, %v1158
          %v1160 = vpop.f32.mrf.mxu0
          %v1161 = vadd.f32 %v955, %v1160
          %v1162 = vpop.f32.mrf.mxu0
          %v1163 = vadd.f32 %v959, %v1162
          %1164 = vdwg.mxu0
          %v1165 = vpack.c.bf16 %v1161, %v1157
          %v1166 = vpack.c.bf16 %v1163, %v1159
          %v1169 = vunpack.c.l.b16 %v1165
          %v1170 = vunpack.c.l.b16 %v1166
          %v1171 = vunpack.c.h.b16 %v1165
          %v1172 = vunpack.c.h.b16 %v1166
          %v1173 = vpack.c.b16 %v1170, %v1169
          %v1174 = vpack.c.b16 %v1172, %v1171
          %s1177 = sshra.s32 %s463, 3
          %s1178 = sand.u32 %s463, 7
          %s1179 = smul.u32 %s1177, 2
          %s1180 = smul.addr %s1179, 4
          %s1181 = scalar_lea.vmem [#allocation2], %s1180
          %1182 = vst [vmem:[%s1181] sm:$0xff] %v1173
          %1183 = vst [vmem:[%s1181 + $0x8] sm:$0xff] %v1174
          %v1184 = vld [vmem:[#allocation4] sm:$0x3]
          %v1185 = vadd.f32 %v1157, %v1161
          %v1186 = vrot.slane %v1185, 4
          %v1187 = vadd.f32 %v1185, %v1186
          %v1188 = vrot.slane %v1187, 2
          %v1189 = vadd.f32 %v1187, %v1188
          %v1190 = vrot.slane %v1189, 1
          %v1191 = vadd.f32 %v1189, %v1190
          %v1192 = vadd.f32 %v1159, %v1163
          %v1193 = vrot.slane %v1192, 4
          %v1194 = vadd.f32 %v1192, %v1193
          %v1195 = vrot.slane %v1194, 2
          %v1196 = vadd.f32 %v1194, %v1195
          %v1197 = vrot.slane %v1196, 1
          %v1198 = vadd.f32 %v1196, %v1197
          %v1201 = vcombine.low %v1191, %v1198
          %v1203 = vunpack.c.l.s4 1966171168
          %v1204 = vunpack.c.0.s8 %v1203
          %v1205 = vlaneseq
          %v1206 = vshrl.u32 %v1205, 7
          %v1207 = vsub.s32 %v1204, %v1206
          %v1208 = vrot.slane %v1201, %v1207
          %v1210 = vunpack.c.l.s4 1966171168
          %v1211 = vunpack.c.0.s8 %v1210
          %v1212 = vlaneseq
          %v1213 = vshrl.u32 %v1212, 7
          %v1214 = vsub.s32 %v1211, %v1213
          %v1215 = vrot.slane %v1208, %v1214
          %v1217 = vadd.f32 %v1184, %v1215
          %v1218 = vlaneseq
          %vm1219 = vcmp.ge.s32.totalorder %v1218, 0
          %vm1220 = vcmp.lt.s32.totalorder %v1218, 256
          %vm1221 = vmand %vm1219, %vm1220
          %1222 = vst.msk [vmem:[#allocation4] sm:$0x3] %vm1221, %v1217
          %v1223 = vld [vmem:[#allocation5] sm:$0x3]
          %v1224 = vmul.f32 %v1157, %v1157
          %v1225 = vmul.f32 %v1159, %v1159
          %v1226 = vmul.f32 %v1161, %v1161
          %v1227 = vmul.f32 %v1163, %v1163
          %v1228 = vadd.f32 %v1224, %v1226
          %v1229 = vrot.slane %v1228, 4
          %v1230 = vadd.f32 %v1228, %v1229
          %v1231 = vrot.slane %v1230, 2
          %v1232 = vadd.f32 %v1230, %v1231
          %v1233 = vrot.slane %v1232, 1
          %v1234 = vadd.f32 %v1232, %v1233
          %v1235 = vadd.f32 %v1225, %v1227
          %v1236 = vrot.slane %v1235, 4
          %v1237 = vadd.f32 %v1235, %v1236
          %v1238 = vrot.slane %v1237, 2
          %v1239 = vadd.f32 %v1237, %v1238
          %v1240 = vrot.slane %v1239, 1
          %v1241 = vadd.f32 %v1239, %v1240
          %v1244 = vcombine.low %v1234, %v1241
          %v1246 = vunpack.c.l.s4 1966171168
          %v1247 = vunpack.c.0.s8 %v1246
          %v1248 = vlaneseq
          %v1249 = vshrl.u32 %v1248, 7
          %v1250 = vsub.s32 %v1247, %v1249
          %v1251 = vrot.slane %v1244, %v1250
          %v1253 = vunpack.c.l.s4 1966171168
          %v1254 = vunpack.c.0.s8 %v1253
          %v1255 = vlaneseq
          %v1256 = vshrl.u32 %v1255, 7
          %v1257 = vsub.s32 %v1254, %v1256
          %v1258 = vrot.slane %v1251, %v1257
          %v1260 = vadd.f32 %v1223, %v1258
          %1261 = vst.msk [vmem:[#allocation5] sm:$0x3] %vm1221, %v1260
        $region84: #{tpu_custom_call.1} parent=59 // pred_fallthru
          _
        %p1262 = scmp.eq.s32.totalorder %s34, 1
        // Predicated region
        $region89: #{tpu_custom_call.1} parent=59 // pred_check
          %p1263 = pneg %p1262
        $region90: #{tpu_custom_call.1} parent=59 // pred_check_branch
          %1265 = sbr.rel (%p1263) target = $region92
        $region91: #{tpu_custom_call.1} parent=59 // pred_region
          %v1266 = vld [vmem:[#allocation4] sm:$0x3]
          %v1267 = vmul.f32 %v1266, 0.0625
          %v1268 = vld [vmem:[#allocation5] sm:$0x3]
          %v1269 = vmul.f32 %v1268, 0.0625
          %v1270 = vmul.f32 %v1267, %v1267
          %v1271 = vsub.f32 %v1269, %v1270
          %v1272 = vmax.f32 %v1271, 0.0
          %v1273 = vld [vmem:[%s5] sm:$0x3]
          %v1274 = vadd.f32 %v1272, 1e-05
          %v1275 = vrsqrt.pop %v1274
          %v1276 = vmul.f32 %v1273, %v1275
          %v1277 = vld [vmem:[%s6] sm:$0x3]
          %v1278 = vmul.f32 %v1267, %v1276
          %v1279 = vsub.f32 %v1277, %v1278
          %s1280 = sshra.s32 %s463, 3
          %s1281 = sand.u32 %s463, 7
          %s1282 = smul.u32 %s1280, 2
          %s1283 = smul.addr %s1282, 4
          %s1284 = scalar_lea.vmem [#allocation2], %s1283
          %v1285 = vld [vmem:[%s1284] sm:$0xff]
          %v1286 = vld [vmem:[%s1284 + $0x8] sm:$0xff]
          %v1287 = vunpack.c.l.bf16 %v1285
          %v1288 = vunpack.c.h.bf16 %v1285
          %v1289 = vunpack.c.l.bf16 %v1286
          %v1290 = vunpack.c.h.bf16 %v1286
          %v1292 = vlaneseq
          %v1293 = vshrl.u32 %v1292, 7
          %v1294 = vsub.s32 0, %v1293
          %v1295 = vrot.slane %v1276, %v1294
          %v1296 = vlaneseq
          %v1297 = vshrl.u32 %v1296, 7
          %v1298 = vsub.s32 1, %v1297
          %v1299 = vrot.slane %v1276, %v1298
          %v1302 = vmul.f32 %v1287, %v1295
          %v1303 = vmul.f32 %v1288, %v1299
          %v1304 = vmul.f32 %v1289, %v1295
          %v1305 = vmul.f32 %v1290, %v1299
          %v1307 = vlaneseq
          %v1308 = vshrl.u32 %v1307, 7
          %v1309 = vsub.s32 0, %v1308
          %v1310 = vrot.slane %v1279, %v1309
          %v1311 = vlaneseq
          %v1312 = vshrl.u32 %v1311, 7
          %v1313 = vsub.s32 1, %v1312
          %v1314 = vrot.slane %v1279, %v1313
          %v1317 = vadd.f32 %v1302, %v1310
          %v1318 = vadd.f32 %v1303, %v1314
          %v1319 = vadd.f32 %v1304, %v1310
          %v1320 = vadd.f32 %v1305, %v1314
          %v1321 = vmax.f32 %v1317, 0.0
          %v1322 = vmax.f32 %v1318, 0.0
          %v1323 = vmax.f32 %v1319, 0.0
          %v1324 = vmax.f32 %v1320, 0.0
          %v1325 = vpack.c.bf16 %v1323, %v1321
          %v1326 = vpack.c.bf16 %v1324, %v1322
          %v1327 = vld [vmem:[#allocation13] sm:$0xf]
          %v1328 = vld [vmem:[#allocation13 + $0x4] sm:$0xf]
          %v1329 = vld [vmem:[#allocation13 + $0x8] sm:$0xf]
          %v1330 = vld [vmem:[#allocation13 + $0xc] sm:$0xf]
          %v1331 = vld [vmem:[#allocation13 + $0x10] sm:$0xf]
          %v1332 = vld [vmem:[#allocation13 + $0x14] sm:$0xf]
          %v1333 = vld [vmem:[#allocation13 + $0x18] sm:$0xf]
          %v1334 = vld [vmem:[#allocation13 + $0x1c] sm:$0xf]
          %v1335 = vld [vmem:[#allocation13 + $0x20] sm:$0xf]
          %v1336 = vld [vmem:[#allocation13 + $0x24] sm:$0xf]
          %v1337 = vld [vmem:[#allocation13 + $0x28] sm:$0xf]
          %v1338 = vld [vmem:[#allocation13 + $0x2c] sm:$0xf]
          %v1339 = vld [vmem:[#allocation13 + $0x30] sm:$0xf]
          %v1340 = vld [vmem:[#allocation13 + $0x34] sm:$0xf]
          %v1341 = vld [vmem:[#allocation13 + $0x38] sm:$0xf]
          %v1342 = vld [vmem:[#allocation13 + $0x3c] sm:$0xf]
          %v1343 = vld [vmem:[#allocation13 + $0x40] sm:$0xf]
          %v1344 = vld [vmem:[#allocation13 + $0x44] sm:$0xf]
          %v1345 = vld [vmem:[#allocation13 + $0x48] sm:$0xf]
          %v1346 = vld [vmem:[#allocation13 + $0x4c] sm:$0xf]
          %v1347 = vld [vmem:[#allocation13 + $0x50] sm:$0xf]
          %v1348 = vld [vmem:[#allocation13 + $0x54] sm:$0xf]
          %v1349 = vld [vmem:[#allocation13 + $0x58] sm:$0xf]
          %v1350 = vld [vmem:[#allocation13 + $0x5c] sm:$0xf]
          %v1351 = vld [vmem:[#allocation13 + $0x60] sm:$0xf]
          %v1352 = vld [vmem:[#allocation13 + $0x64] sm:$0xf]
          %v1353 = vld [vmem:[#allocation13 + $0x68] sm:$0xf]
          %v1354 = vld [vmem:[#allocation13 + $0x6c] sm:$0xf]
          %v1355 = vld [vmem:[#allocation13 + $0x70] sm:$0xf]
          %v1356 = vld [vmem:[#allocation13 + $0x74] sm:$0xf]
          %v1357 = vld [vmem:[#allocation13 + $0x78] sm:$0xf]
          %v1358 = vld [vmem:[#allocation13 + $0x7c] sm:$0xf]
          %v1359 = vld [vmem:[%s8] sm:$0x1]
          %v1361 = vlaneseq
          %v1362 = vshrl.u32 %v1361, 7
          %v1363 = vsub.s32 0, %v1362
          %v1364 = vrot.slane %v1359, %v1363
          %v1398 = vunpack.c.l.b16 %v1327
          %v1399 = vunpack.c.l.b16 %v1328
          %v1400 = vunpack.c.l.b16 %v1329
          %v1401 = vunpack.c.l.b16 %v1330
          %v1402 = vunpack.c.l.b16 %v1331
          %v1403 = vunpack.c.l.b16 %v1332
          %v1404 = vunpack.c.l.b16 %v1333
          %v1405 = vunpack.c.l.b16 %v1334
          %v1406 = vunpack.c.l.b16 %v1335
          %v1407 = vunpack.c.l.b16 %v1336
          %v1408 = vunpack.c.l.b16 %v1337
          %v1409 = vunpack.c.l.b16 %v1338
          %v1410 = vunpack.c.l.b16 %v1339
          %v1411 = vunpack.c.l.b16 %v1340
          %v1412 = vunpack.c.l.b16 %v1341
          %v1413 = vunpack.c.l.b16 %v1342
          %v1414 = vunpack.c.l.b16 %v1343
          %v1415 = vunpack.c.l.b16 %v1344
          %v1416 = vunpack.c.l.b16 %v1345
          %v1417 = vunpack.c.l.b16 %v1346
          %v1418 = vunpack.c.l.b16 %v1347
          %v1419 = vunpack.c.l.b16 %v1348
          %v1420 = vunpack.c.l.b16 %v1349
          %v1421 = vunpack.c.l.b16 %v1350
          %v1422 = vunpack.c.l.b16 %v1351
          %v1423 = vunpack.c.l.b16 %v1352
          %v1424 = vunpack.c.l.b16 %v1353
          %v1425 = vunpack.c.l.b16 %v1354
          %v1426 = vunpack.c.l.b16 %v1355
          %v1427 = vunpack.c.l.b16 %v1356
          %v1428 = vunpack.c.l.b16 %v1357
          %v1429 = vunpack.c.l.b16 %v1358
          %v1430 = vpack.c.b16 %v1399, %v1398
          %v1431 = vpack.c.b16 %v1401, %v1400
          %v1432 = vpack.c.b16 %v1403, %v1402
          %v1433 = vpack.c.b16 %v1405, %v1404
          %v1434 = vpack.c.b16 %v1407, %v1406
          %v1435 = vpack.c.b16 %v1409, %v1408
          %v1436 = vpack.c.b16 %v1411, %v1410
          %v1437 = vpack.c.b16 %v1413, %v1412
          %v1438 = vpack.c.b16 %v1415, %v1414
          %v1439 = vpack.c.b16 %v1417, %v1416
          %v1440 = vpack.c.b16 %v1419, %v1418
          %v1441 = vpack.c.b16 %v1421, %v1420
          %v1442 = vpack.c.b16 %v1423, %v1422
          %v1443 = vpack.c.b16 %v1425, %v1424
          %v1444 = vpack.c.b16 %v1427, %v1426
          %v1445 = vpack.c.b16 %v1429, %v1428
          %1462 = vmatprep.subr.bf16.mxu0 0
          %1463 = vmatpush1.bf16.msra.mxu0 %v1437
          %1464 = vmatprep.subr.bf16.mxu0 0
          %1465 = vmatpush1.bf16.msra.mxu0 %v1436
          %1466 = vmatprep.subr.bf16.mxu0 0
          %1467 = vmatpush1.bf16.msra.mxu0 %v1435
          %1468 = vmatprep.subr.bf16.mxu0 0
          %1469 = vmatpush1.bf16.msra.mxu0 %v1434
          %1470 = vmatprep.subr.bf16.mxu0 0
          %1471 = vmatpush1.bf16.msra.mxu0 %v1433
          %1472 = vmatprep.subr.bf16.mxu0 0
          %1473 = vmatpush1.bf16.msra.mxu0 %v1432
          %1474 = vmatprep.subr.bf16.mxu0 0
          %1475 = vmatpush1.bf16.msra.mxu0 %v1431
          %1476 = vmatprep.subr.bf16.mxu0 0
          %1477 = vmatpush1.bf16.msra.mxu0 %v1430
          %1478 = vmatprep.subr.bf16.mxu0 0
          %1479 = vmatpush2.bf16.msra.mxu0 %v1445
          %1480 = vmatprep.subr.bf16.mxu0 0
          %1481 = vmatpush2.bf16.msra.mxu0 %v1444
          %1482 = vmatprep.subr.bf16.mxu0 0
          %1483 = vmatpush2.bf16.msra.mxu0 %v1443
          %1484 = vmatprep.subr.bf16.mxu0 0
          %1485 = vmatpush2.bf16.msra.mxu0 %v1442
          %1486 = vmatprep.subr.bf16.mxu0 0
          %1487 = vmatpush2.bf16.msra.mxu0 %v1441
          %1488 = vmatprep.subr.bf16.mxu0 0
          %1489 = vmatpush2.bf16.msra.mxu0 %v1440
          %1490 = vmatprep.subr.bf16.mxu0 0
          %1491 = vmatpush2.bf16.msra.mxu0 %v1439
          %1492 = vmatprep.subr.bf16.mxu0 0
          %1493 = vmatpush2.bf16.msra.mxu0 %v1438
          %1494 = vmatprep.mubr.bf16.mxu0 %v1326
          %1495 = vmatmul.mubr.bf16.gmra.mxu0 %v1325
          %v1496 = vpop.f32.mrf.mxu0
          %v1497 = vadd.f32 %v1364, %v1496
          %v1498 = vpop.f32.mrf.mxu0
          %v1499 = vpop.f32.mrf.mxu0
          %v1500 = vadd.f32 %v1364, %v1499
          %v1501 = vpop.f32.mrf.mxu0
          %1502 = vdwg.mxu0
          %s1503 = scalar_lea.vmem [#allocation3], %s463
          %v1504 = vld [vmem:[%s1503] sm:$0xff]
          %v1505 = vld [vmem:[%s1503 + $0x8] sm:$0xff]
          %s1506 = sld [smem:[#allocation15]]
          %v1507 = vstv %s1506
          %v1508 = vmul.f32 %v1507, %v1504
          %v1509 = vmul.f32 %v1507, %v1505
          %s1510 = sld [smem:[#allocation15 + $0x1]]
          %v1511 = vmul.f32 %v1497, %v1497
          %v1512 = vmul.f32 %v1500, %v1500
          %1513 = vadd.xlane.f32.xlu0 %v1511
          %v1514 = vpop.xlane.xlu0 %1513
          %1515 = vadd.xlane.f32.xlu0 %v1512
          %v1516 = vpop.xlane.xlu0 %1515
          %v1517 = vmax.f32 %v1514, 1e-30
          %v1518 = vmax.f32 %v1516, 1e-30
          %v1519 = vrsqrt.pop %v1517
          %v1520 = vrsqrt.pop %v1518
          %v1521 = vmul.f32 %v1497, %v1519
          %v1522 = vmul.f32 %v1500, %v1520
          %v1523 = vstv %s1510
          %v1524 = vmul.f32 %v1523, %v1521
          %v1525 = vmul.f32 %v1523, %v1522
          %v1526 = vadd.f32 %v1508, %v1524
          %v1527 = vadd.f32 %v1509, %v1525
          %1528 = vst [vmem:[%s456] sm:$0xff] %v1526
          %1529 = vst [vmem:[%s456 + $0x8] sm:$0xff] %v1527
        $region92: #{tpu_custom_call.1} parent=59 // pred_fallthru
          _
        %s1530 = sand.u32 %s271, 1
        %s1531 = scalar_lea.sflag [#allocation8], %s1530
        %s1532 = sand.u32 %s271, 1
        %s1533 = smul.addr %s1532, 16
        %s1534 = scalar_lea.vmem [#allocation16], %s1533
        // Predicated region
        $region93: #{tpu_custom_call.1} parent=59 // pred_check
          %p1535 = pneg %p281
        $region94: #{tpu_custom_call.1} parent=59 // pred_check_branch
          %1537 = sbr.rel (%p1535) target = $region96
        $region95: #{tpu_custom_call.1} parent=59 // pred_region
          %s1538 = smul.u32 %s35, %s34
          %s1539 = smul.u32 2, %s1538
          %s1541 = ssub.s32 256, 256
          %1542 = vsyncadd %s1531, %s1541
          %s1543 = smul.addr %s1539, 128
          %s1544 = scalar_lea.hbm %s10, %s1543
          %s1545 = sshll.u32 %s1534, 4
          %s1546 = int_to_ptr.vmem [resolvable:$true] %s1545
          %1551 = dma.vmem_to_hbm [thread:$0]  %s1546, 256, %s1544, %s1531, 128, 128, 8
        $region96: #{tpu_custom_call.1} parent=59 // pred_fallthru
          _
      $region60: #{tpu_custom_call.1} parent=5 // pred_fallthru
        _
      %p1552 = scmp.le.s32.totalorder 2, %s25
      // Predicated region
      $region97: #{tpu_custom_call.1} parent=5 // pred_check
        %p1553 = pneg %p1552
      $region98: #{tpu_custom_call.1} parent=5 // pred_check_branch
        %1555 = sbr.rel (%p1553) target = $region100
      $region99: #{tpu_custom_call.1} parent=5 // pred_region
        %s1556 = ssub.s32 %s25, 2
        // Predicated region
        $region101: #{tpu_custom_call.1} parent=99 // pred_check
          %p1557 = pneg %p287
        $region102: #{tpu_custom_call.1} parent=99 // pred_check_branch
          %1559 = sbr.rel (%p1557) target = $region104
        $region103: #{tpu_custom_call.1} parent=99 // pred_region
          %s1560 = sand.u32 %s272, 1
          %s1561 = scalar_lea.sflag [#allocation8], %s1560
          %s1562 = sand.u32 %s272, 1
          %s1563 = smul.addr %s1562, 16
          %s1564 = scalar_lea.vmem [#allocation16], %s1563
          %1565 = dma.done %s1561, 256
        $region104: #{tpu_custom_call.1} parent=99 // pred_fallthru
          _
      $region100: #{tpu_custom_call.1} parent=5 // pred_fallthru
        _
    $region6: #{tpu_custom_call.1} parent=1 // loop_footer
      %s29 = sadd.s32 1, %s25
    $region7: #{tpu_custom_call.1} parent=1 // loop_footer_branch
      %24 = sbr.rel target = $region3
    $region8: #{tpu_custom_call.1} parent=1 // loop_exit
      _
    %1566 = vsyncpa [#allocation7], 1
    %s1567 = scalar_lea.sflag [#allocation7], 1
    %1568 = vsyncpa %s1567, 1
    %1569 = vsyncpa [#allocation11], 1
    %1570 = vsyncpa [#allocation14], 1
    %1571 = vsyncpa [#allocation8], 1
    %s1572 = scalar_lea.sflag [#allocation8], 1
    %1573 = vsyncpa %s1572, 1
    %1574 = vsyncpa [#allocation9], 1
    %s1575 = scalar_lea.sflag [#allocation9], 1
    %1576 = vsyncpa %s1575, 1

</llo_original>
